<compile_context>
chip_gen: v6e
topology: v6e:2x2x1
jax: 0.10.0
libtpu: 0.0.40
codegen_flags: <defaults>
</compile_context>

<pallas_src>
import jax
import jax.numpy as jnp
from jax import lax
from jax.experimental import pallas as pl
from jax.experimental.pallas import tpu as pltpu


def _relu(v):
    return jnp.maximum(v, 0.0)


def _softplus(v):
    # numerically stable softplus (matches the reference)
    return jnp.maximum(v, 0.0) + jnp.log1p(jnp.exp(-jnp.abs(v)))


def _sigmoid(v):
    # exact identity, one EUP op, no inf intermediates
    return 0.5 * (jnp.tanh(0.5 * v) + 1.0)


def vrnn_kernel(
    # ---- inputs (whole arrays, resident in VMEM) ----
    x_ref,            # (steps*B, X)  time-reversed x (t = T-1 .. 1), flattened
    eps_ref,          # (steps, B, Z) reparameterization noise
    phix_w1, phix_b1, phix_w2, phix_b2,
    wx_fused, bx_fused,        # phi_x -> [enc_w1x | gru_wih_x], bias [enc_b1|0]
    w_eh_gru,                  # h     -> [enc_w1h | gru_whh]
    enc_w2, enc_b2, enc_ms_w, enc_ms_b,
    phiz_w, phiz_b,
    gru_wih_z,
    w_h_epi, b_h_epi,          # h     -> [prior_w | dec_w1h], bias [prior_b|dec_b1]
    prior_ms_w, prior_ms_b,
    dec_w1z, dec_w2, dec_b2, dec_ms_w, dec_ms_b,
    # ---- outputs ----
    encms_out,        # (steps*B, 2Z) packed [enc_mean | softplus(enc_std)]
    decms_out,        # (steps*B, 2X) packed [sigmoid(dec_mean) | softplus(dec_std)]
    kld_out,          # (1, 1)
    nll_out,          # (1, 1)
    # ---- scratch ----
    xe_scr,           # (steps*B, H)   phi_x @ enc_w1x + enc_b1
    xg_scr,           # (steps*B, 3H)  phi_x @ gru_wih_x
    h_scr,            # (steps*B, H)   pre-update h at each step
    phiz_scr,         # (steps*B, H)   phi_z at each step
):
    N, X = x_ref.shape
    steps, B, Z = eps_ref.shape
    H = w_eh_gru.shape[0]

    def dot(a, b):
        return jnp.dot(a, b, preferred_element_type=jnp.float32)

    # ---------------------------------------------------------------------
    # (1) x-only subgraph precomputed for ALL steps as 56-row matmuls
    # ---------------------------------------------------------------------
    xr = x_ref[...]                                            # (N, X)
    h1 = _relu(dot(xr, phix_w1[...]) + phix_b1[...])
    phi_x = _relu(dot(h1, phix_w2[...]) + phix_b2[...])        # (N, H)
    xproj = dot(phi_x, wx_fused[...]) + bx_fused[...]          # (N, 4H)
    xe_scr[...] = xproj[:, :H]                                 # enc layer-1 x part
    xg_scr[...] = xproj[:, H:]                                 # GRU gi x part

    # ---------------------------------------------------------------------
    # (2) serial recurrence: only the enc -> z -> phi_z -> GRU chain
    #     (small hoisted weight set; epilogue weights read at use site)
    # ---------------------------------------------------------------------
    w_hg = w_eh_gru[...]                                       # (H, 4H)
    w_e2 = enc_w2[...]
    b_e2 = jnp.broadcast_to(enc_b2[...], (B, H))
    w_ems = enc_ms_w[...]
    b_ems = jnp.broadcast_to(enc_ms_b[...], (B, 2 * Z))
    w_pz = phiz_w[...]
    b_pz = jnp.broadcast_to(phiz_b[...], (B, H))
    w_ihz = gru_wih_z[...]                                     # (H, 3H)
    zmask = lax.broadcasted_iota(jnp.int32, (B, 2 * Z), 1) < Z

    def step(i, h):
        row = pl.multiple_of(i * B, B)
        xe = xe_scr[pl.ds(row, B), :]          # (B, H)
        xg = xg_scr[pl.ds(row, B), :]          # (B, 3H)
        eps_t = eps_ref[i]                     # (B, Z)

        # fused h-side dot: [h@enc_w1h | h@gru_whh]  (128 output lanes)
        hp = dot(h, w_hg)                      # (B, 4H)

        # encoder -> z -> phi_z
        enc1 = _relu(xe + hp[:, :H])           # enc_b1 folded into xe
        enc_h = _relu(dot(enc1, w_e2) + b_e2)
        enc_ms = dot(enc_h, w_ems) + b_ems     # (B, 2Z) raw [mean | std_pre]
        enc_blend = jnp.where(zmask, enc_ms, _softplus(enc_ms))
        enc_mean = enc_ms[:, :Z]
        enc_std = enc_blend[:, Z:]
        z_t = eps_t * enc_std + enc_mean
        phi_z = _relu(dot(z_t, w_pz) + b_pz)

        # GRU step (n_layers = 1, bias = False), PyTorch gate order [r, z, n]
        gi = xg + dot(phi_z, w_ihz)            # (B, 3H)
        gh = hp[:, H:]                         # (B, 3H)
        r = _sigmoid(gi[:, :H] + gh[:, :H])
        zg = _sigmoid(gi[:, H:2 * H] + gh[:, H:2 * H])
        n = jnp.tanh(gi[:, 2 * H:] + r * gh[:, 2 * H:])

        # stash everything the deferred epilogue needs
        h_scr[pl.ds(row, B), :] = h            # pre-update h
        phiz_scr[pl.ds(row, B), :] = phi_z
        encms_out[pl.ds(row, B), :] = enc_blend

        return (1.0 - zg) * n + zg * h

    lax.fori_loop(0, steps, step, jnp.zeros((B, H), jnp.float32), unroll=True)

    # ---------------------------------------------------------------------
    # (3) deferred epilogue: prior / decoder / kld / nll as 56-row matmuls
    # ---------------------------------------------------------------------
    h_all = h_scr[...]                                         # (N, H)
    phiz_all = phiz_scr[...]                                   # (N, H)

    hproj = dot(h_all, w_h_epi[...]) + b_h_epi[...]            # (N, 2H)
    prior_h = _relu(hproj[:, :H])
    prior_ms = dot(prior_h, prior_ms_w[...]) + prior_ms_b[...]  # (N, 2Z)
    prior_mean = prior_ms[:, :Z]
    prior_std = _softplus(prior_ms[:, Z:])

    d1 = _relu(hproj[:, H:] + dot(phiz_all, dec_w1z[...]))     # dec_b1 folded in
    dec_h = _relu(dot(d1, dec_w2[...]) + dec_b2[...])
    dec_ms = dot(dec_h, dec_ms_w[...]) + dec_ms_b[...]         # (N, 2X)
    dec_sig = _sigmoid(dec_ms)
    xmask = lax.broadcasted_iota(jnp.int32, (N, 2 * X), 1) < X
    decms_out[...] = jnp.where(xmask, dec_sig, _softplus(dec_ms))

    encms_all = encms_out[...]                                 # (N, 2Z)
    enc_mean_a = encms_all[:, :Z]
    enc_std_a = encms_all[:, Z:]
    kld_elem = (2.0 * jnp.log(prior_std / enc_std_a)
                + (enc_std_a * enc_std_a + (enc_mean_a - prior_mean) ** 2)
                / (prior_std * prior_std) - 1.0)
    kld_out[...] = 0.5 * jnp.sum(kld_elem, keepdims=True)

    dec_mean_a = dec_sig[:, :X]
    nll_out[...] = jnp.sum((x_ref[...] - dec_mean_a) ** 2, keepdims=True)


# ordered parameter shapes (all Linear layers have bias=True; GRU has none)
def _param_shapes(x_dim, h_dim, z_dim):
    return [
        ("phix_w1", (x_dim, h_dim)), ("phix_b1", (1, h_dim)),
        ("phix_w2", (h_dim, h_dim)), ("phix_b2", (1, h_dim)),
        ("phiz_w", (z_dim, h_dim)), ("phiz_b", (1, h_dim)),
        ("enc_w1", (2 * h_dim, h_dim)), ("enc_b1", (1, h_dim)),
        ("enc_w2", (h_dim, h_dim)), ("enc_b2", (1, h_dim)),
        ("encm_w", (h_dim, z_dim)), ("encm_b", (1, z_dim)),
        ("encs_w", (h_dim, z_dim)), ("encs_b", (1, z_dim)),
        ("prior_w", (h_dim, h_dim)), ("prior_b", (1, h_dim)),
        ("priorm_w", (h_dim, z_dim)), ("priorm_b", (1, z_dim)),
        ("priors_w", (h_dim, z_dim)), ("priors_b", (1, z_dim)),
        ("dec_w1", (2 * h_dim, h_dim)), ("dec_b1", (1, h_dim)),
        ("dec_w2", (h_dim, h_dim)), ("dec_b2", (1, h_dim)),
        ("decs_w", (h_dim, x_dim)), ("decs_b", (1, x_dim)),
        ("decm_w", (h_dim, x_dim)), ("decm_b", (1, x_dim)),
        ("gru_wih", (2 * h_dim, 3 * h_dim)), ("gru_whh", (h_dim, 3 * h_dim)),
    ]


def init_params(key, x_dim, h_dim, z_dim, stdv=0.1):
    shapes = _param_shapes(x_dim, h_dim, z_dim)
    keys = jax.random.split(key, len(shapes))
    return {name: stdv * jax.random.normal(k, shape, jnp.float32)
            for (name, shape), k in zip(shapes, keys)}


def vrnn_forward(x, eps, params, h_dim):
    T, B, X = x.shape
    steps, _, Z = eps.shape
    H = h_dim
    N = steps * B
    p = params

    # ---- host-side weight splitting / fusion (column order preserved) ----
    enc_w1x, enc_w1h = p["enc_w1"][:H], p["enc_w1"][H:]           # [phi_x | h]
    dec_w1z, dec_w1h = p["dec_w1"][:H], p["dec_w1"][H:]           # [phi_z | h]
    gru_wih_x, gru_wih_z = p["gru_wih"][:H], p["gru_wih"][H:]     # [phi_x | phi_z]

    wx_fused = jnp.concatenate([enc_w1x, gru_wih_x], axis=1)      # (H, 4H)
    bx_fused = jnp.concatenate(
        [p["enc_b1"], jnp.zeros((1, 3 * H), jnp.float32)], axis=1)
    w_eh_gru = jnp.concatenate([enc_w1h, p["gru_whh"]], axis=1)   # (H, 4H)
    enc_ms_w = jnp.concatenate([p["encm_w"], p["encs_w"]], axis=1)
    enc_ms_b = jnp.concatenate([p["encm_b"], p["encs_b"]], axis=1)
    w_h_epi = jnp.concatenate([p["prior_w"], dec_w1h], axis=1)    # (H, 2H)
    b_h_epi = jnp.concatenate([p["prior_b"], p["dec_b1"]], axis=1)
    prior_ms_w = jnp.concatenate([p["priorm_w"], p["priors_w"]], axis=1)
    prior_ms_b = jnp.concatenate([p["priorm_b"], p["priors_b"]], axis=1)
    dec_ms_w = jnp.concatenate([p["decm_w"], p["decs_w"]], axis=1)
    dec_ms_b = jnp.concatenate([p["decm_b"], p["decs_b"]], axis=1)

    # time-reversed input (t = T-1 .. 1; x[0] is never consumed, as in the
    # PyTorch forward loop), flattened so the kernel needs no reshapes.
    x_rev = x[1:][::-1].reshape(N, X)

    args = (
        x_rev, eps,
        p["phix_w1"], p["phix_b1"], p["phix_w2"], p["phix_b2"],
        wx_fused, bx_fused, w_eh_gru,
        p["enc_w2"], p["enc_b2"], enc_ms_w, enc_ms_b,
        p["phiz_w"], p["phiz_b"], gru_wih_z,
        w_h_epi, b_h_epi, prior_ms_w, prior_ms_b,
        dec_w1z, p["dec_w2"], p["dec_b2"], dec_ms_w, dec_ms_b,
    )

    out_shape = (
        jax.ShapeDtypeStruct((N, 2 * Z), jnp.float32),   # [enc_mean | enc_std]
        jax.ShapeDtypeStruct((N, 2 * X), jnp.float32),   # [dec_mean | dec_std]
        jax.ShapeDtypeStruct((1, 1), jnp.float32),       # kld_loss
        jax.ShapeDtypeStruct((1, 1), jnp.float32),       # nll_loss
    )

    scratch_shapes = [
        pltpu.VMEM((N, H), jnp.float32),        # xe:  phi_x @ enc_w1x + b_e1
        pltpu.VMEM((N, 3 * H), jnp.float32),    # xg:  phi_x @ gru_wih_x
        pltpu.VMEM((N, H), jnp.float32),        # h (pre-update) per step
        pltpu.VMEM((N, H), jnp.float32),        # phi_z per step
    ]

    # advisory cost estimate so XLA schedules this tiny kernel sensibly
    mm_pre = X * H + H * H + H * 4 * H
    mm_loop = H * 4 * H + H * H + H * 2 * Z + Z * H + H * 3 * H
    mm_epi = H * 2 * H + H * 2 * Z + H * H + H * H + H * 2 * X
    flops = 2 * N * (mm_pre + mm_loop + mm_epi)
    transc = N * (2 * Z + 3 * H) + N * (2 * Z + 2 * Z + 4 * X)
    in_bytes = sum(int(a.size) * 4 for a in args)
    out_bytes = (N * 2 * Z + N * 2 * X + 2) * 4
    cost = pl.CostEstimate(flops=int(flops), transcendentals=int(transc),
                           bytes_accessed=int(in_bytes + out_bytes))

    # Single kernel invocation, no grid: every operand/result/scratch lives
    # wholly in VMEM (total footprint is a few tens of KiB on any generation).
    # TODO(synk): for large T*B (esp. v7x's 64 MiB VMEM) switch to streamed
    # BlockSpecs / HBM inputs, and split the batch across the 2 TCs on v7x.
    encms, decms, kld, nll = pl.pallas_call(
        vrnn_kernel,
        out_shape=out_shape,
        scratch_shapes=scratch_shapes,
        cost_estimate=cost,
    )(*args)

    encms = encms.reshape(steps, B, 2 * Z)
    decms = decms.reshape(steps, B, 2 * X)
    return (encms[..., :Z], encms[..., Z:],
            decms[..., :X], decms[..., X:], kld, nll)


def vrnn_ref(x, eps, p, h_dim):
    """Pure-JAX reference with the original (unfused) math."""
    T, B, X = x.shape
    H = h_dim
    sig = lambda v: 1.0 / (1.0 + jnp.exp(-v))       # exp-form sigmoid
    lin = lambda v, w, b: v @ p[w] + p[b]
    h = jnp.zeros((B, H), jnp.float32)
    kld = jnp.zeros((1, 1), jnp.float32)
    nll = jnp.zeros((1, 1), jnp.float32)
    em, es, dm, ds = [], [], [], []
    for step in range(T - 1):
        t = T - 1 - step
        x_t, e = x[t], eps[step]
        phi_x = _relu(lin(_relu(lin(x_t, "phix_w1", "phix_b1")), "phix_w2", "phix_b2"))
        enc_t = _relu(lin(_relu(lin(jnp.concatenate([phi_x, h], 1),
                                    "enc_w1", "enc_b1")), "enc_w2", "enc_b2"))
        enc_mean = lin(enc_t, "encm_w", "encm_b")
        enc_std = _softplus(lin(enc_t, "encs_w", "encs_b"))
        prior_t = _relu(lin(h, "prior_w", "prior_b"))
        prior_mean = lin(prior_t, "priorm_w", "priorm_b")
        prior_std = _softplus(lin(prior_t, "priors_w", "priors_b"))
        z_t = e * enc_std + enc_mean
        phi_z = _relu(lin(z_t, "phiz_w", "phiz_b"))
        dec_t = _relu(lin(_relu(lin(jnp.concatenate([phi_z, h], 1),
                                    "dec_w1", "dec_b1")), "dec_w2", "dec_b2"))
        dec_mean = sig(lin(dec_t, "decm_w", "decm_b"))
        dec_std = _softplus(lin(dec_t, "decs_w", "decs_b"))
        gi = jnp.concatenate([phi_x, phi_z], 1) @ p["gru_wih"]
        gh = h @ p["gru_whh"]
        r = sig(gi[:, :H] + gh[:, :H])
        zg = sig(gi[:, H:2 * H] + gh[:, H:2 * H])
        n = jnp.tanh(gi[:, 2 * H:] + r * gh[:, 2 * H:])
        h = (1.0 - zg) * n + zg * h
        kld = kld + 0.5 * jnp.sum(
            2 * jnp.log(prior_std) - 2 * jnp.log(enc_std)
            + (enc_std ** 2 + (enc_mean - prior_mean) ** 2) / prior_std ** 2 - 1.0,
            keepdims=True)
        nll = nll + jnp.sum((x_t - dec_mean) ** 2, keepdims=True)
        em.append(enc_mean); es.append(enc_std)
        dm.append(dec_mean); ds.append(dec_std)
    return (jnp.stack(em), jnp.stack(es), jnp.stack(dm), jnp.stack(ds), kld, nll)


if __name__ == "__main__":
    x_dim, h_dim, z_dim, n_layers = 16, 32, 16, 1
    T, B = 8, 8

    key = jax.random.PRNGKey(0)
    kx, ke, kp = jax.random.split(key, 3)
    x = jax.random.uniform(kx, (T, B, x_dim), dtype=jnp.float32)
    eps = jax.random.normal(ke, (T - 1, B, z_dim), dtype=jnp.float32)
    params = init_params(kp, x_dim, h_dim, z_dim)

    outs = vrnn_forward(x, eps, params, h_dim)
    outs = jax.block_until_ready(outs)

    ref = vrnn_ref(x, eps, params, h_dim)
    for got, want in zip(outs, ref):
        assert got.shape == want.shape, (got.shape, want.shape)
        assert jnp.allclose(got, want, rtol=2e-3, atol=2e-3), float(
            jnp.max(jnp.abs(got - want)))

    print("KERNEL_OK")
</pallas_src>

<mosaic_0001>
module attributes {stable_mosaic.version = 11 : i64} {
  func.func @vrnn_kernel(%arg0: memref<56x16xf32, #tpu.memory_space<vmem>>, %arg1: memref<7x8x16xf32, #tpu.memory_space<vmem>>, %arg2: memref<16x32xf32, #tpu.memory_space<vmem>>, %arg3: memref<1x32xf32, #tpu.memory_space<vmem>>, %arg4: memref<32x32xf32, #tpu.memory_space<vmem>>, %arg5: memref<1x32xf32, #tpu.memory_space<vmem>>, %arg6: memref<32x128xf32, #tpu.memory_space<vmem>>, %arg7: memref<1x128xf32, #tpu.memory_space<vmem>>, %arg8: memref<32x128xf32, #tpu.memory_space<vmem>>, %arg9: memref<32x32xf32, #tpu.memory_space<vmem>>, %arg10: memref<1x32xf32, #tpu.memory_space<vmem>>, %arg11: memref<32x32xf32, #tpu.memory_space<vmem>>, %arg12: memref<1x32xf32, #tpu.memory_space<vmem>>, %arg13: memref<16x32xf32, #tpu.memory_space<vmem>>, %arg14: memref<1x32xf32, #tpu.memory_space<vmem>>, %arg15: memref<32x96xf32, #tpu.memory_space<vmem>>, %arg16: memref<32x64xf32, #tpu.memory_space<vmem>>, %arg17: memref<1x64xf32, #tpu.memory_space<vmem>>, %arg18: memref<32x32xf32, #tpu.memory_space<vmem>>, %arg19: memref<1x32xf32, #tpu.memory_space<vmem>>, %arg20: memref<32x32xf32, #tpu.memory_space<vmem>>, %arg21: memref<32x32xf32, #tpu.memory_space<vmem>>, %arg22: memref<1x32xf32, #tpu.memory_space<vmem>>, %arg23: memref<32x32xf32, #tpu.memory_space<vmem>>, %arg24: memref<1x32xf32, #tpu.memory_space<vmem>>, %arg25: memref<56x32xf32, #tpu.memory_space<vmem>>, %arg26: memref<56x32xf32, #tpu.memory_space<vmem>>, %arg27: memref<1x1xf32, #tpu.memory_space<vmem>>, %arg28: memref<1x1xf32, #tpu.memory_space<vmem>>, %arg29: memref<56x32xf32, #tpu.memory_space<vmem>>, %arg30: memref<56x96xf32, #tpu.memory_space<vmem>>, %arg31: memref<56x32xf32, #tpu.memory_space<vmem>>, %arg32: memref<56x32xf32, #tpu.memory_space<vmem>>) attributes {dimension_semantics = [], scalar_prefetch = 0 : i64, scratch_operands = 4 : i64, tpu.core_type = #tpu.core_type<tc>} {
    %c0 = arith.constant 0 : index
    %c0_0 = arith.constant 0 : index
    %0 = vector.load %arg0[%c0, %c0_0] : memref<56x16xf32, #tpu.memory_space<vmem>>, vector<56x16xf32>
    %c0_1 = arith.constant 0 : index
    %c0_2 = arith.constant 0 : index
    %1 = vector.load %arg2[%c0_1, %c0_2] : memref<16x32xf32, #tpu.memory_space<vmem>>, vector<16x32xf32>
    %cst = arith.constant dense<0.000000e+00> : vector<56x32xf32>
    %2 = tpu.matmul %0, %1, %cst {dimension_numbers = #tpu.dot_dimension_numbers<[1], [0], [0], [1], [0, 0, 1, 1], [], []>} : vector<56x16xf32>, vector<16x32xf32>, vector<56x32xf32> -> vector<56x32xf32>
    %c0_3 = arith.constant 0 : index
    %c0_4 = arith.constant 0 : index
    %3 = vector.load %arg3[%c0_3, %c0_4] : memref<1x32xf32, #tpu.memory_space<vmem>>, vector<1x32xf32>
    %4 = vector.broadcast %3 : vector<1x32xf32> to vector<56x32xf32>
    %5 = arith.addf %2, %4 : vector<56x32xf32>
    %cst_5 = arith.constant 0.000000e+00 : f32
    %6 = vector.broadcast %cst_5 : f32 to vector<56x32xf32>
    %7 = arith.maximumf %5, %6 : vector<56x32xf32>
    %c0_6 = arith.constant 0 : index
    %c0_7 = arith.constant 0 : index
    %8 = vector.load %arg4[%c0_6, %c0_7] : memref<32x32xf32, #tpu.memory_space<vmem>>, vector<32x32xf32>
    %cst_8 = arith.constant dense<0.000000e+00> : vector<56x32xf32>
    %9 = tpu.matmul %7, %8, %cst_8 {dimension_numbers = #tpu.dot_dimension_numbers<[1], [0], [0], [1], [0, 0, 1, 1], [], []>} : vector<56x32xf32>, vector<32x32xf32>, vector<56x32xf32> -> vector<56x32xf32>
    %c0_9 = arith.constant 0 : index
    %c0_10 = arith.constant 0 : index
    %10 = vector.load %arg5[%c0_9, %c0_10] : memref<1x32xf32, #tpu.memory_space<vmem>>, vector<1x32xf32>
    %11 = vector.broadcast %10 : vector<1x32xf32> to vector<56x32xf32>
    %12 = arith.addf %9, %11 : vector<56x32xf32>
    %cst_11 = arith.constant 0.000000e+00 : f32
    %13 = vector.broadcast %cst_11 : f32 to vector<56x32xf32>
    %14 = arith.maximumf %12, %13 : vector<56x32xf32>
    %c0_12 = arith.constant 0 : index
    %c0_13 = arith.constant 0 : index
    %15 = vector.load %arg6[%c0_12, %c0_13] : memref<32x128xf32, #tpu.memory_space<vmem>>, vector<32x128xf32>
    %cst_14 = arith.constant dense<0.000000e+00> : vector<56x128xf32>
    %16 = tpu.matmul %14, %15, %cst_14 {dimension_numbers = #tpu.dot_dimension_numbers<[1], [0], [0], [1], [0, 0, 1, 1], [], []>} : vector<56x32xf32>, vector<32x128xf32>, vector<56x128xf32> -> vector<56x128xf32>
    %c0_15 = arith.constant 0 : index
    %c0_16 = arith.constant 0 : index
    %17 = vector.load %arg7[%c0_15, %c0_16] : memref<1x128xf32, #tpu.memory_space<vmem>>, vector<1x128xf32>
    %18 = vector.broadcast %17 : vector<1x128xf32> to vector<56x128xf32>
    %19 = arith.addf %16, %18 : vector<56x128xf32>
    %20 = vector.extract_strided_slice %19 {offsets = [0, 0], sizes = [56, 32], strides = [1, 1]} : vector<56x128xf32> to vector<56x32xf32>
    %c0_17 = arith.constant 0 : index
    %c0_18 = arith.constant 0 : index
    %21 = vector.load %arg29[%c0_17, %c0_18] : memref<56x32xf32, #tpu.memory_space<vmem>>, vector<56x32xf32>
    tpu.vector_store %arg29[%c0_17, %c0_18], %20 {strides = array<i32>} : memref<56x32xf32, #tpu.memory_space<vmem>>, vector<56x32xf32>,
    %22 = vector.extract_strided_slice %19 {offsets = [0, 32], sizes = [56, 96], strides = [1, 1]} : vector<56x128xf32> to vector<56x96xf32>
    %c0_19 = arith.constant 0 : index
    %c0_20 = arith.constant 0 : index
    %23 = vector.load %arg30[%c0_19, %c0_20] : memref<56x96xf32, #tpu.memory_space<vmem>>, vector<56x96xf32>
    tpu.vector_store %arg30[%c0_19, %c0_20], %22 {strides = array<i32>} : memref<56x96xf32, #tpu.memory_space<vmem>>, vector<56x96xf32>,
    %c0_21 = arith.constant 0 : index
    %c0_22 = arith.constant 0 : index
    %24 = vector.load %arg8[%c0_21, %c0_22] : memref<32x128xf32, #tpu.memory_space<vmem>>, vector<32x128xf32>
    %c0_23 = arith.constant 0 : index
    %c0_24 = arith.constant 0 : index
    %25 = vector.load %arg9[%c0_23, %c0_24] : memref<32x32xf32, #tpu.memory_space<vmem>>, vector<32x32xf32>
    %c0_25 = arith.constant 0 : index
    %c0_26 = arith.constant 0 : index
    %26 = vector.load %arg10[%c0_25, %c0_26] : memref<1x32xf32, #tpu.memory_space<vmem>>, vector<1x32xf32>
    %27 = vector.shape_cast %26 : vector<1x32xf32> to vector<1x32xf32>
    %28 = vector.broadcast %27 : vector<1x32xf32> to vector<8x32xf32>
    %c0_27 = arith.constant 0 : index
    %c0_28 = arith.constant 0 : index
    %29 = vector.load %arg11[%c0_27, %c0_28] : memref<32x32xf32, #tpu.memory_space<vmem>>, vector<32x32xf32>
    %c0_29 = arith.constant 0 : index
    %c0_30 = arith.constant 0 : index
    %30 = vector.load %arg12[%c0_29, %c0_30] : memref<1x32xf32, #tpu.memory_space<vmem>>, vector<1x32xf32>
    %31 = vector.shape_cast %30 : vector<1x32xf32> to vector<1x32xf32>
    %32 = vector.broadcast %31 : vector<1x32xf32> to vector<8x32xf32>
    %c0_31 = arith.constant 0 : index
    %c0_32 = arith.constant 0 : index
    %33 = vector.load %arg13[%c0_31, %c0_32] : memref<16x32xf32, #tpu.memory_space<vmem>>, vector<16x32xf32>
    %c0_33 = arith.constant 0 : index
    %c0_34 = arith.constant 0 : index
    %34 = vector.load %arg14[%c0_33, %c0_34] : memref<1x32xf32, #tpu.memory_space<vmem>>, vector<1x32xf32>
    %35 = vector.shape_cast %34 : vector<1x32xf32> to vector<1x32xf32>
    %36 = vector.broadcast %35 : vector<1x32xf32> to vector<8x32xf32>
    %c0_35 = arith.constant 0 : index
    %c0_36 = arith.constant 0 : index
    %37 = vector.load %arg15[%c0_35, %c0_36] : memref<32x96xf32, #tpu.memory_space<vmem>>, vector<32x96xf32>
    %38 = tpu.iota {dimensions = array<i32: 1>} : vector<8x32xi32>
    %c16_i32 = arith.constant 16 : i32
    %39 = vector.broadcast %c16_i32 : i32 to vector<8x32xi32>
    %40 = arith.cmpi slt, %38, %39 : vector<8x32xi32>
    %cst_37 = arith.constant 0.000000e+00 : f32
    %41 = vector.broadcast %cst_37 : f32 to vector<8x32xf32>
    %c0_i32 = arith.constant 0 : i32
    %c8_i32 = arith.constant 8 : i32
    %42 = arith.muli %c0_i32, %c8_i32 : i32
    %43 = tpu.assume_multiple %42, 8 : i32
    %44 = arith.index_cast %43 : i32 to index
    %c0_38 = arith.constant 0 : index
    %45 = vector.load %arg29[%44, %c0_38] : memref<56x32xf32, #tpu.memory_space<vmem>>, vector<8x32xf32>
    %46 = arith.index_cast %43 : i32 to index
    %c0_39 = arith.constant 0 : index
    %47 = vector.load %arg30[%46, %c0_39] : memref<56x96xf32, #tpu.memory_space<vmem>>, vector<8x96xf32>
    %48 = arith.index_cast %c0_i32 : i32 to index
    %c0_40 = arith.constant 0 : index
    %c0_41 = arith.constant 0 : index
    %49 = vector.load %arg1[%48, %c0_40, %c0_41] : memref<7x8x16xf32, #tpu.memory_space<vmem>>, vector<1x8x16xf32>
    %50 = vector.shape_cast %49 : vector<1x8x16xf32> to vector<8x16xf32>
    %cst_42 = arith.constant dense<0.000000e+00> : vector<8x128xf32>
    %51 = tpu.matmul %41, %24, %cst_42 {dimension_numbers = #tpu.dot_dimension_numbers<[1], [0], [0], [1], [0, 0, 1, 1], [], []>} : vector<8x32xf32>, vector<32x128xf32>, vector<8x128xf32> -> vector<8x128xf32>
    %52 = vector.extract_strided_slice %51 {offsets = [0, 0], sizes = [8, 32], strides = [1, 1]} : vector<8x128xf32> to vector<8x32xf32>
    %53 = arith.addf %45, %52 : vector<8x32xf32>
    %cst_43 = arith.constant 0.000000e+00 : f32
    %54 = vector.broadcast %cst_43 : f32 to vector<8x32xf32>
    %55 = arith.maximumf %53, %54 : vector<8x32xf32>
    %cst_44 = arith.constant dense<0.000000e+00> : vector<8x32xf32>
    %56 = tpu.matmul %55, %25, %cst_44 {dimension_numbers = #tpu.dot_dimension_numbers<[1], [0], [0], [1], [0, 0, 1, 1], [], []>} : vector<8x32xf32>, vector<32x32xf32>, vector<8x32xf32> -> vector<8x32xf32>
    %57 = arith.addf %56, %28 : vector<8x32xf32>
    %cst_45 = arith.constant 0.000000e+00 : f32
    %58 = vector.broadcast %cst_45 : f32 to vector<8x32xf32>
    %59 = arith.maximumf %57, %58 : vector<8x32xf32>
    %cst_46 = arith.constant dense<0.000000e+00> : vector<8x32xf32>
    %60 = tpu.matmul %59, %29, %cst_46 {dimension_numbers = #tpu.dot_dimension_numbers<[1], [0], [0], [1], [0, 0, 1, 1], [], []>} : vector<8x32xf32>, vector<32x32xf32>, vector<8x32xf32> -> vector<8x32xf32>
    %61 = arith.addf %60, %32 : vector<8x32xf32>
    %cst_47 = arith.constant 0.000000e+00 : f32
    %62 = vector.broadcast %cst_47 : f32 to vector<8x32xf32>
    %63 = arith.maximumf %61, %62 : vector<8x32xf32>
    %64 = math.absf %61 : vector<8x32xf32>
    %cst_48 = arith.constant 0.000000e+00 : f32
    %65 = vector.broadcast %cst_48 : f32 to vector<8x32xf32>
    %66 = arith.subf %65, %64 : vector<8x32xf32>
    %67 = math.exp %66 : vector<8x32xf32>
    %68 = math.log1p %67 : vector<8x32xf32>
    %69 = arith.addf %63, %68 : vector<8x32xf32>
    %70 = arith.select %40, %61, %69 : vector<8x32xi1>, vector<8x32xf32>
    %71 = vector.extract_strided_slice %61 {offsets = [0, 0], sizes = [8, 16], strides = [1, 1]} : vector<8x32xf32> to vector<8x16xf32>
    %72 = vector.extract_strided_slice %70 {offsets = [0, 16], sizes = [8, 16], strides = [1, 1]} : vector<8x32xf32> to vector<8x16xf32>
    %73 = arith.mulf %50, %72 : vector<8x16xf32>
    %74 = arith.addf %73, %71 : vector<8x16xf32>
    %cst_49 = arith.constant dense<0.000000e+00> : vector<8x32xf32>
    %75 = tpu.matmul %74, %33, %cst_49 {dimension_numbers = #tpu.dot_dimension_numbers<[1], [0], [0], [1], [0, 0, 1, 1], [], []>} : vector<8x16xf32>, vector<16x32xf32>, vector<8x32xf32> -> vector<8x32xf32>
    %76 = arith.addf %75, %36 : vector<8x32xf32>
    %cst_50 = arith.constant 0.000000e+00 : f32
    %77 = vector.broadcast %cst_50 : f32 to vector<8x32xf32>
    %78 = arith.maximumf %76, %77 : vector<8x32xf32>
    %cst_51 = arith.constant dense<0.000000e+00> : vector<8x96xf32>
    %79 = tpu.matmul %78, %37, %cst_51 {dimension_numbers = #tpu.dot_dimension_numbers<[1], [0], [0], [1], [0, 0, 1, 1], [], []>} : vector<8x32xf32>, vector<32x96xf32>, vector<8x96xf32> -> vector<8x96xf32>
    %80 = arith.addf %47, %79 : vector<8x96xf32>
    %81 = vector.extract_strided_slice %51 {offsets = [0, 32], sizes = [8, 96], strides = [1, 1]} : vector<8x128xf32> to vector<8x96xf32>
    %82 = vector.extract_strided_slice %80 {offsets = [0, 0], sizes = [8, 32], strides = [1, 1]} : vector<8x96xf32> to vector<8x32xf32>
    %83 = vector.extract_strided_slice %81 {offsets = [0, 0], sizes = [8, 32], strides = [1, 1]} : vector<8x96xf32> to vector<8x32xf32>
    %84 = arith.addf %82, %83 : vector<8x32xf32>
    %cst_52 = arith.constant 5.000000e-01 : f32
    %85 = vector.broadcast %cst_52 : f32 to vector<8x32xf32>
    %86 = arith.mulf %85, %84 : vector<8x32xf32>
    %87 = math.tanh %86 : vector<8x32xf32>
    %cst_53 = arith.constant 1.000000e+00 : f32
    %88 = vector.broadcast %cst_53 : f32 to vector<8x32xf32>
    %89 = arith.addf %87, %88 : vector<8x32xf32>
    %cst_54 = arith.constant 5.000000e-01 : f32
    %90 = vector.broadcast %cst_54 : f32 to vector<8x32xf32>
    %91 = arith.mulf %90, %89 : vector<8x32xf32>
    %92 = vector.extract_strided_slice %80 {offsets = [0, 32], sizes = [8, 32], strides = [1, 1]} : vector<8x96xf32> to vector<8x32xf32>
    %93 = vector.extract_strided_slice %81 {offsets = [0, 32], sizes = [8, 32], strides = [1, 1]} : vector<8x96xf32> to vector<8x32xf32>
    %94 = arith.addf %92, %93 : vector<8x32xf32>
    %cst_55 = arith.constant 5.000000e-01 : f32
    %95 = vector.broadcast %cst_55 : f32 to vector<8x32xf32>
    %96 = arith.mulf %95, %94 : vector<8x32xf32>
    %97 = math.tanh %96 : vector<8x32xf32>
    %cst_56 = arith.constant 1.000000e+00 : f32
    %98 = vector.broadcast %cst_56 : f32 to vector<8x32xf32>
    %99 = arith.addf %97, %98 : vector<8x32xf32>
    %cst_57 = arith.constant 5.000000e-01 : f32
    %100 = vector.broadcast %cst_57 : f32 to vector<8x32xf32>
    %101 = arith.mulf %100, %99 : vector<8x32xf32>
    %102 = vector.extract_strided_slice %80 {offsets = [0, 64], sizes = [8, 32], strides = [1, 1]} : vector<8x96xf32> to vector<8x32xf32>
    %103 = vector.extract_strided_slice %81 {offsets = [0, 64], sizes = [8, 32], strides = [1, 1]} : vector<8x96xf32> to vector<8x32xf32>
    %104 = arith.mulf %91, %103 : vector<8x32xf32>
    %105 = arith.addf %102, %104 : vector<8x32xf32>
    %106 = math.tanh %105 : vector<8x32xf32>
    %107 = arith.index_cast %43 : i32 to index
    %c0_58 = arith.constant 0 : index
    %108 = vector.load %arg31[%107, %c0_58] : memref<56x32xf32, #tpu.memory_space<vmem>>, vector<8x32xf32>
    tpu.vector_store %arg31[%107, %c0_58], %41 {strides = array<i32>} : memref<56x32xf32, #tpu.memory_space<vmem>>, vector<8x32xf32>,
    %109 = arith.index_cast %43 : i32 to index
    %c0_59 = arith.constant 0 : index
    %110 = vector.load %arg32[%109, %c0_59] : memref<56x32xf32, #tpu.memory_space<vmem>>, vector<8x32xf32>
    tpu.vector_store %arg32[%109, %c0_59], %78 {strides = array<i32>} : memref<56x32xf32, #tpu.memory_space<vmem>>, vector<8x32xf32>,
    %111 = arith.index_cast %43 : i32 to index
    %c0_60 = arith.constant 0 : index
    %112 = vector.load %arg25[%111, %c0_60] : memref<56x32xf32, #tpu.memory_space<vmem>>, vector<8x32xf32>
    tpu.vector_store %arg25[%111, %c0_60], %70 {strides = array<i32>} : memref<56x32xf32, #tpu.memory_space<vmem>>, vector<8x32xf32>,
    %cst_61 = arith.constant 1.000000e+00 : f32
    %113 = vector.broadcast %cst_61 : f32 to vector<8x32xf32>
    %114 = arith.subf %113, %101 : vector<8x32xf32>
    %115 = arith.mulf %114, %106 : vector<8x32xf32>
    %116 = arith.mulf %101, %41 : vector<8x32xf32>
    %117 = arith.addf %115, %116 : vector<8x32xf32>
    %c1_i32 = arith.constant 1 : i32
    %c8_i32_62 = arith.constant 8 : i32
    %118 = arith.muli %c1_i32, %c8_i32_62 : i32
    %119 = tpu.assume_multiple %118, 8 : i32
    %120 = arith.index_cast %119 : i32 to index
    %c0_63 = arith.constant 0 : index
    %121 = vector.load %arg29[%120, %c0_63] : memref<56x32xf32, #tpu.memory_space<vmem>>, vector<8x32xf32>
    %122 = arith.index_cast %119 : i32 to index
    %c0_64 = arith.constant 0 : index
    %123 = vector.load %arg30[%122, %c0_64] : memref<56x96xf32, #tpu.memory_space<vmem>>, vector<8x96xf32>
    %124 = arith.index_cast %c1_i32 : i32 to index
    %c0_65 = arith.constant 0 : index
    %c0_66 = arith.constant 0 : index
    %125 = vector.load %arg1[%124, %c0_65, %c0_66] : memref<7x8x16xf32, #tpu.memory_space<vmem>>, vector<1x8x16xf32>
    %126 = vector.shape_cast %125 : vector<1x8x16xf32> to vector<8x16xf32>
    %cst_67 = arith.constant dense<0.000000e+00> : vector<8x128xf32>
    %127 = tpu.matmul %117, %24, %cst_67 {dimension_numbers = #tpu.dot_dimension_numbers<[1], [0], [0], [1], [0, 0, 1, 1], [], []>} : vector<8x32xf32>, vector<32x128xf32>, vector<8x128xf32> -> vector<8x128xf32>
    %128 = vector.extract_strided_slice %127 {offsets = [0, 0], sizes = [8, 32], strides = [1, 1]} : vector<8x128xf32> to vector<8x32xf32>
    %129 = arith.addf %121, %128 : vector<8x32xf32>
    %cst_68 = arith.constant 0.000000e+00 : f32
    %130 = vector.broadcast %cst_68 : f32 to vector<8x32xf32>
    %131 = arith.maximumf %129, %130 : vector<8x32xf32>
    %cst_69 = arith.constant dense<0.000000e+00> : vector<8x32xf32>
    %132 = tpu.matmul %131, %25, %cst_69 {dimension_numbers = #tpu.dot_dimension_numbers<[1], [0], [0], [1], [0, 0, 1, 1], [], []>} : vector<8x32xf32>, vector<32x32xf32>, vector<8x32xf32> -> vector<8x32xf32>
    %133 = arith.addf %132, %28 : vector<8x32xf32>
    %cst_70 = arith.constant 0.000000e+00 : f32
    %134 = vector.broadcast %cst_70 : f32 to vector<8x32xf32>
    %135 = arith.maximumf %133, %134 : vector<8x32xf32>
    %cst_71 = arith.constant dense<0.000000e+00> : vector<8x32xf32>
    %136 = tpu.matmul %135, %29, %cst_71 {dimension_numbers = #tpu.dot_dimension_numbers<[1], [0], [0], [1], [0, 0, 1, 1], [], []>} : vector<8x32xf32>, vector<32x32xf32>, vector<8x32xf32> -> vector<8x32xf32>
    %137 = arith.addf %136, %32 : vector<8x32xf32>
    %cst_72 = arith.constant 0.000000e+00 : f32
    %138 = vector.broadcast %cst_72 : f32 to vector<8x32xf32>
    %139 = arith.maximumf %137, %138 : vector<8x32xf32>
    %140 = math.absf %137 : vector<8x32xf32>
    %cst_73 = arith.constant 0.000000e+00 : f32
    %141 = vector.broadcast %cst_73 : f32 to vector<8x32xf32>
    %142 = arith.subf %141, %140 : vector<8x32xf32>
    %143 = math.exp %142 : vector<8x32xf32>
    %144 = math.log1p %143 : vector<8x32xf32>
    %145 = arith.addf %139, %144 : vector<8x32xf32>
    %146 = arith.select %40, %137, %145 : vector<8x32xi1>, vector<8x32xf32>
    %147 = vector.extract_strided_slice %137 {offsets = [0, 0], sizes = [8, 16], strides = [1, 1]} : vector<8x32xf32> to vector<8x16xf32>
    %148 = vector.extract_strided_slice %146 {offsets = [0, 16], sizes = [8, 16], strides = [1, 1]} : vector<8x32xf32> to vector<8x16xf32>
    %149 = arith.mulf %126, %148 : vector<8x16xf32>
    %150 = arith.addf %149, %147 : vector<8x16xf32>
    %cst_74 = arith.constant dense<0.000000e+00> : vector<8x32xf32>
    %151 = tpu.matmul %150, %33, %cst_74 {dimension_numbers = #tpu.dot_dimension_numbers<[1], [0], [0], [1], [0, 0, 1, 1], [], []>} : vector<8x16xf32>, vector<16x32xf32>, vector<8x32xf32> -> vector<8x32xf32>
    %152 = arith.addf %151, %36 : vector<8x32xf32>
    %cst_75 = arith.constant 0.000000e+00 : f32
    %153 = vector.broadcast %cst_75 : f32 to vector<8x32xf32>
    %154 = arith.maximumf %152, %153 : vector<8x32xf32>
    %cst_76 = arith.constant dense<0.000000e+00> : vector<8x96xf32>
    %155 = tpu.matmul %154, %37, %cst_76 {dimension_numbers = #tpu.dot_dimension_numbers<[1], [0], [0], [1], [0, 0, 1, 1], [], []>} : vector<8x32xf32>, vector<32x96xf32>, vector<8x96xf32> -> vector<8x96xf32>
    %156 = arith.addf %123, %155 : vector<8x96xf32>
    %157 = vector.extract_strided_slice %127 {offsets = [0, 32], sizes = [8, 96], strides = [1, 1]} : vector<8x128xf32> to vector<8x96xf32>
    %158 = vector.extract_strided_slice %156 {offsets = [0, 0], sizes = [8, 32], strides = [1, 1]} : vector<8x96xf32> to vector<8x32xf32>
    %159 = vector.extract_strided_slice %157 {offsets = [0, 0], sizes = [8, 32], strides = [1, 1]} : vector<8x96xf32> to vector<8x32xf32>
    %160 = arith.addf %158, %159 : vector<8x32xf32>
    %cst_77 = arith.constant 5.000000e-01 : f32
    %161 = vector.broadcast %cst_77 : f32 to vector<8x32xf32>
    %162 = arith.mulf %161, %160 : vector<8x32xf32>
    %163 = math.tanh %162 : vector<8x32xf32>
    %cst_78 = arith.constant 1.000000e+00 : f32
    %164 = vector.broadcast %cst_78 : f32 to vector<8x32xf32>
    %165 = arith.addf %163, %164 : vector<8x32xf32>
    %cst_79 = arith.constant 5.000000e-01 : f32
    %166 = vector.broadcast %cst_79 : f32 to vector<8x32xf32>
    %167 = arith.mulf %166, %165 : vector<8x32xf32>
    %168 = vector.extract_strided_slice %156 {offsets = [0, 32], sizes = [8, 32], strides = [1, 1]} : vector<8x96xf32> to vector<8x32xf32>
    %169 = vector.extract_strided_slice %157 {offsets = [0, 32], sizes = [8, 32], strides = [1, 1]} : vector<8x96xf32> to vector<8x32xf32>
    %170 = arith.addf %168, %169 : vector<8x32xf32>
    %cst_80 = arith.constant 5.000000e-01 : f32
    %171 = vector.broadcast %cst_80 : f32 to vector<8x32xf32>
    %172 = arith.mulf %171, %170 : vector<8x32xf32>
    %173 = math.tanh %172 : vector<8x32xf32>
    %cst_81 = arith.constant 1.000000e+00 : f32
    %174 = vector.broadcast %cst_81 : f32 to vector<8x32xf32>
    %175 = arith.addf %173, %174 : vector<8x32xf32>
    %cst_82 = arith.constant 5.000000e-01 : f32
    %176 = vector.broadcast %cst_82 : f32 to vector<8x32xf32>
    %177 = arith.mulf %176, %175 : vector<8x32xf32>
    %178 = vector.extract_strided_slice %156 {offsets = [0, 64], sizes = [8, 32], strides = [1, 1]} : vector<8x96xf32> to vector<8x32xf32>
    %179 = vector.extract_strided_slice %157 {offsets = [0, 64], sizes = [8, 32], strides = [1, 1]} : vector<8x96xf32> to vector<8x32xf32>
    %180 = arith.mulf %167, %179 : vector<8x32xf32>
    %181 = arith.addf %178, %180 : vector<8x32xf32>
    %182 = math.tanh %181 : vector<8x32xf32>
    %183 = arith.index_cast %119 : i32 to index
    %c0_83 = arith.constant 0 : index
    %184 = vector.load %arg31[%183, %c0_83] : memref<56x32xf32, #tpu.memory_space<vmem>>, vector<8x32xf32>
    tpu.vector_store %arg31[%183, %c0_83], %117 {strides = array<i32>} : memref<56x32xf32, #tpu.memory_space<vmem>>, vector<8x32xf32>,
    %185 = arith.index_cast %119 : i32 to index
    %c0_84 = arith.constant 0 : index
    %186 = vector.load %arg32[%185, %c0_84] : memref<56x32xf32, #tpu.memory_space<vmem>>, vector<8x32xf32>
    tpu.vector_store %arg32[%185, %c0_84], %154 {strides = array<i32>} : memref<56x32xf32, #tpu.memory_space<vmem>>, vector<8x32xf32>,
    %187 = arith.index_cast %119 : i32 to index
    %c0_85 = arith.constant 0 : index
    %188 = vector.load %arg25[%187, %c0_85] : memref<56x32xf32, #tpu.memory_space<vmem>>, vector<8x32xf32>
    tpu.vector_store %arg25[%187, %c0_85], %146 {strides = array<i32>} : memref<56x32xf32, #tpu.memory_space<vmem>>, vector<8x32xf32>,
    %cst_86 = arith.constant 1.000000e+00 : f32
    %189 = vector.broadcast %cst_86 : f32 to vector<8x32xf32>
    %190 = arith.subf %189, %177 : vector<8x32xf32>
    %191 = arith.mulf %190, %182 : vector<8x32xf32>
    %192 = arith.mulf %177, %117 : vector<8x32xf32>
    %193 = arith.addf %191, %192 : vector<8x32xf32>
    %c2_i32 = arith.constant 2 : i32
    %c8_i32_87 = arith.constant 8 : i32
    %194 = arith.muli %c2_i32, %c8_i32_87 : i32
    %195 = tpu.assume_multiple %194, 8 : i32
    %196 = arith.index_cast %195 : i32 to index
    %c0_88 = arith.constant 0 : index
    %197 = vector.load %arg29[%196, %c0_88] : memref<56x32xf32, #tpu.memory_space<vmem>>, vector<8x32xf32>
    %198 = arith.index_cast %195 : i32 to index
    %c0_89 = arith.constant 0 : index
    %199 = vector.load %arg30[%198, %c0_89] : memref<56x96xf32, #tpu.memory_space<vmem>>, vector<8x96xf32>
    %200 = arith.index_cast %c2_i32 : i32 to index
    %c0_90 = arith.constant 0 : index
    %c0_91 = arith.constant 0 : index
    %201 = vector.load %arg1[%200, %c0_90, %c0_91] : memref<7x8x16xf32, #tpu.memory_space<vmem>>, vector<1x8x16xf32>
    %202 = vector.shape_cast %201 : vector<1x8x16xf32> to vector<8x16xf32>
    %cst_92 = arith.constant dense<0.000000e+00> : vector<8x128xf32>
    %203 = tpu.matmul %193, %24, %cst_92 {dimension_numbers = #tpu.dot_dimension_numbers<[1], [0], [0], [1], [0, 0, 1, 1], [], []>} : vector<8x32xf32>, vector<32x128xf32>, vector<8x128xf32> -> vector<8x128xf32>
    %204 = vector.extract_strided_slice %203 {offsets = [0, 0], sizes = [8, 32], strides = [1, 1]} : vector<8x128xf32> to vector<8x32xf32>
    %205 = arith.addf %197, %204 : vector<8x32xf32>
    %cst_93 = arith.constant 0.000000e+00 : f32
    %206 = vector.broadcast %cst_93 : f32 to vector<8x32xf32>
    %207 = arith.maximumf %205, %206 : vector<8x32xf32>
    %cst_94 = arith.constant dense<0.000000e+00> : vector<8x32xf32>
    %208 = tpu.matmul %207, %25, %cst_94 {dimension_numbers = #tpu.dot_dimension_numbers<[1], [0], [0], [1], [0, 0, 1, 1], [], []>} : vector<8x32xf32>, vector<32x32xf32>, vector<8x32xf32> -> vector<8x32xf32>
    %209 = arith.addf %208, %28 : vector<8x32xf32>
    %cst_95 = arith.constant 0.000000e+00 : f32
    %210 = vector.broadcast %cst_95 : f32 to vector<8x32xf32>
    %211 = arith.maximumf %209, %210 : vector<8x32xf32>
    %cst_96 = arith.constant dense<0.000000e+00> : vector<8x32xf32>
    %212 = tpu.matmul %211, %29, %cst_96 {dimension_numbers = #tpu.dot_dimension_numbers<[1], [0], [0], [1], [0, 0, 1, 1], [], []>} : vector<8x32xf32>, vector<32x32xf32>, vector<8x32xf32> -> vector<8x32xf32>
    %213 = arith.addf %212, %32 : vector<8x32xf32>
    %cst_97 = arith.constant 0.000000e+00 : f32
    %214 = vector.broadcast %cst_97 : f32 to vector<8x32xf32>
    %215 = arith.maximumf %213, %214 : vector<8x32xf32>
    %216 = math.absf %213 : vector<8x32xf32>
    %cst_98 = arith.constant 0.000000e+00 : f32
    %217 = vector.broadcast %cst_98 : f32 to vector<8x32xf32>
    %218 = arith.subf %217, %216 : vector<8x32xf32>
    %219 = math.exp %218 : vector<8x32xf32>
    %220 = math.log1p %219 : vector<8x32xf32>
    %221 = arith.addf %215, %220 : vector<8x32xf32>
    %222 = arith.select %40, %213, %221 : vector<8x32xi1>, vector<8x32xf32>
    %223 = vector.extract_strided_slice %213 {offsets = [0, 0], sizes = [8, 16], strides = [1, 1]} : vector<8x32xf32> to vector<8x16xf32>
    %224 = vector.extract_strided_slice %222 {offsets = [0, 16], sizes = [8, 16], strides = [1, 1]} : vector<8x32xf32> to vector<8x16xf32>
    %225 = arith.mulf %202, %224 : vector<8x16xf32>
    %226 = arith.addf %225, %223 : vector<8x16xf32>
    %cst_99 = arith.constant dense<0.000000e+00> : vector<8x32xf32>
    %227 = tpu.matmul %226, %33, %cst_99 {dimension_numbers = #tpu.dot_dimension_numbers<[1], [0], [0], [1], [0, 0, 1, 1], [], []>} : vector<8x16xf32>, vector<16x32xf32>, vector<8x32xf32> -> vector<8x32xf32>
    %228 = arith.addf %227, %36 : vector<8x32xf32>
    %cst_100 = arith.constant 0.000000e+00 : f32
    %229 = vector.broadcast %cst_100 : f32 to vector<8x32xf32>
    %230 = arith.maximumf %228, %229 : vector<8x32xf32>
    %cst_101 = arith.constant dense<0.000000e+00> : vector<8x96xf32>
    %231 = tpu.matmul %230, %37, %cst_101 {dimension_numbers = #tpu.dot_dimension_numbers<[1], [0], [0], [1], [0, 0, 1, 1], [], []>} : vector<8x32xf32>, vector<32x96xf32>, vector<8x96xf32> -> vector<8x96xf32>
    %232 = arith.addf %199, %231 : vector<8x96xf32>
    %233 = vector.extract_strided_slice %203 {offsets = [0, 32], sizes = [8, 96], strides = [1, 1]} : vector<8x128xf32> to vector<8x96xf32>
    %234 = vector.extract_strided_slice %232 {offsets = [0, 0], sizes = [8, 32], strides = [1, 1]} : vector<8x96xf32> to vector<8x32xf32>
    %235 = vector.extract_strided_slice %233 {offsets = [0, 0], sizes = [8, 32], strides = [1, 1]} : vector<8x96xf32> to vector<8x32xf32>
    %236 = arith.addf %234, %235 : vector<8x32xf32>
    %cst_102 = arith.constant 5.000000e-01 : f32
    %237 = vector.broadcast %cst_102 : f32 to vector<8x32xf32>
    %238 = arith.mulf %237, %236 : vector<8x32xf32>
    %239 = math.tanh %238 : vector<8x32xf32>
    %cst_103 = arith.constant 1.000000e+00 : f32
    %240 = vector.broadcast %cst_103 : f32 to vector<8x32xf32>
    %241 = arith.addf %239, %240 : vector<8x32xf32>
    %cst_104 = arith.constant 5.000000e-01 : f32
    %242 = vector.broadcast %cst_104 : f32 to vector<8x32xf32>
    %243 = arith.mulf %242, %241 : vector<8x32xf32>
    %244 = vector.extract_strided_slice %232 {offsets = [0, 32], sizes = [8, 32], strides = [1, 1]} : vector<8x96xf32> to vector<8x32xf32>
    %245 = vector.extract_strided_slice %233 {offsets = [0, 32], sizes = [8, 32], strides = [1, 1]} : vector<8x96xf32> to vector<8x32xf32>
    %246 = arith.addf %244, %245 : vector<8x32xf32>
    %cst_105 = arith.constant 5.000000e-01 : f32
    %247 = vector.broadcast %cst_105 : f32 to vector<8x32xf32>
    %248 = arith.mulf %247, %246 : vector<8x32xf32>
    %249 = math.tanh %248 : vector<8x32xf32>
    %cst_106 = arith.constant 1.000000e+00 : f32
    %250 = vector.broadcast %cst_106 : f32 to vector<8x32xf32>
    %251 = arith.addf %249, %250 : vector<8x32xf32>
    %cst_107 = arith.constant 5.000000e-01 : f32
    %252 = vector.broadcast %cst_107 : f32 to vector<8x32xf32>
    %253 = arith.mulf %252, %251 : vector<8x32xf32>
    %254 = vector.extract_strided_slice %232 {offsets = [0, 64], sizes = [8, 32], strides = [1, 1]} : vector<8x96xf32> to vector<8x32xf32>
    %255 = vector.extract_strided_slice %233 {offsets = [0, 64], sizes = [8, 32], strides = [1, 1]} : vector<8x96xf32> to vector<8x32xf32>
    %256 = arith.mulf %243, %255 : vector<8x32xf32>
    %257 = arith.addf %254, %256 : vector<8x32xf32>
    %258 = math.tanh %257 : vector<8x32xf32>
    %259 = arith.index_cast %195 : i32 to index
    %c0_108 = arith.constant 0 : index
    %260 = vector.load %arg31[%259, %c0_108] : memref<56x32xf32, #tpu.memory_space<vmem>>, vector<8x32xf32>
    tpu.vector_store %arg31[%259, %c0_108], %193 {strides = array<i32>} : memref<56x32xf32, #tpu.memory_space<vmem>>, vector<8x32xf32>,
    %261 = arith.index_cast %195 : i32 to index
    %c0_109 = arith.constant 0 : index
    %262 = vector.load %arg32[%261, %c0_109] : memref<56x32xf32, #tpu.memory_space<vmem>>, vector<8x32xf32>
    tpu.vector_store %arg32[%261, %c0_109], %230 {strides = array<i32>} : memref<56x32xf32, #tpu.memory_space<vmem>>, vector<8x32xf32>,
    %263 = arith.index_cast %195 : i32 to index
    %c0_110 = arith.constant 0 : index
    %264 = vector.load %arg25[%263, %c0_110] : memref<56x32xf32, #tpu.memory_space<vmem>>, vector<8x32xf32>
    tpu.vector_store %arg25[%263, %c0_110], %222 {strides = array<i32>} : memref<56x32xf32, #tpu.memory_space<vmem>>, vector<8x32xf32>,
    %cst_111 = arith.constant 1.000000e+00 : f32
    %265 = vector.broadcast %cst_111 : f32 to vector<8x32xf32>
    %266 = arith.subf %265, %253 : vector<8x32xf32>
    %267 = arith.mulf %266, %258 : vector<8x32xf32>
    %268 = arith.mulf %253, %193 : vector<8x32xf32>
    %269 = arith.addf %267, %268 : vector<8x32xf32>
    %c3_i32 = arith.constant 3 : i32
    %c8_i32_112 = arith.constant 8 : i32
    %270 = arith.muli %c3_i32, %c8_i32_112 : i32
    %271 = tpu.assume_multiple %270, 8 : i32
    %272 = arith.index_cast %271 : i32 to index
    %c0_113 = arith.constant 0 : index
    %273 = vector.load %arg29[%272, %c0_113] : memref<56x32xf32, #tpu.memory_space<vmem>>, vector<8x32xf32>
    %274 = arith.index_cast %271 : i32 to index
    %c0_114 = arith.constant 0 : index
    %275 = vector.load %arg30[%274, %c0_114] : memref<56x96xf32, #tpu.memory_space<vmem>>, vector<8x96xf32>
    %276 = arith.index_cast %c3_i32 : i32 to index
    %c0_115 = arith.constant 0 : index
    %c0_116 = arith.constant 0 : index
    %277 = vector.load %arg1[%276, %c0_115, %c0_116] : memref<7x8x16xf32, #tpu.memory_space<vmem>>, vector<1x8x16xf32>
    %278 = vector.shape_cast %277 : vector<1x8x16xf32> to vector<8x16xf32>
    %cst_117 = arith.constant dense<0.000000e+00> : vector<8x128xf32>
    %279 = tpu.matmul %269, %24, %cst_117 {dimension_numbers = #tpu.dot_dimension_numbers<[1], [0], [0], [1], [0, 0, 1, 1], [], []>} : vector<8x32xf32>, vector<32x128xf32>, vector<8x128xf32> -> vector<8x128xf32>
    %280 = vector.extract_strided_slice %279 {offsets = [0, 0], sizes = [8, 32], strides = [1, 1]} : vector<8x128xf32> to vector<8x32xf32>
    %281 = arith.addf %273, %280 : vector<8x32xf32>
    %cst_118 = arith.constant 0.000000e+00 : f32
    %282 = vector.broadcast %cst_118 : f32 to vector<8x32xf32>
    %283 = arith.maximumf %281, %282 : vector<8x32xf32>
    %cst_119 = arith.constant dense<0.000000e+00> : vector<8x32xf32>
    %284 = tpu.matmul %283, %25, %cst_119 {dimension_numbers = #tpu.dot_dimension_numbers<[1], [0], [0], [1], [0, 0, 1, 1], [], []>} : vector<8x32xf32>, vector<32x32xf32>, vector<8x32xf32> -> vector<8x32xf32>
    %285 = arith.addf %284, %28 : vector<8x32xf32>
    %cst_120 = arith.constant 0.000000e+00 : f32
    %286 = vector.broadcast %cst_120 : f32 to vector<8x32xf32>
    %287 = arith.maximumf %285, %286 : vector<8x32xf32>
    %cst_121 = arith.constant dense<0.000000e+00> : vector<8x32xf32>
    %288 = tpu.matmul %287, %29, %cst_121 {dimension_numbers = #tpu.dot_dimension_numbers<[1], [0], [0], [1], [0, 0, 1, 1], [], []>} : vector<8x32xf32>, vector<32x32xf32>, vector<8x32xf32> -> vector<8x32xf32>
    %289 = arith.addf %288, %32 : vector<8x32xf32>
    %cst_122 = arith.constant 0.000000e+00 : f32
    %290 = vector.broadcast %cst_122 : f32 to vector<8x32xf32>
    %291 = arith.maximumf %289, %290 : vector<8x32xf32>
    %292 = math.absf %289 : vector<8x32xf32>
    %cst_123 = arith.constant 0.000000e+00 : f32
    %293 = vector.broadcast %cst_123 : f32 to vector<8x32xf32>
    %294 = arith.subf %293, %292 : vector<8x32xf32>
    %295 = math.exp %294 : vector<8x32xf32>
    %296 = math.log1p %295 : vector<8x32xf32>
    %297 = arith.addf %291, %296 : vector<8x32xf32>
    %298 = arith.select %40, %289, %297 : vector<8x32xi1>, vector<8x32xf32>
    %299 = vector.extract_strided_slice %289 {offsets = [0, 0], sizes = [8, 16], strides = [1, 1]} : vector<8x32xf32> to vector<8x16xf32>
    %300 = vector.extract_strided_slice %298 {offsets = [0, 16], sizes = [8, 16], strides = [1, 1]} : vector<8x32xf32> to vector<8x16xf32>
    %301 = arith.mulf %278, %300 : vector<8x16xf32>
    %302 = arith.addf %301, %299 : vector<8x16xf32>
    %cst_124 = arith.constant dense<0.000000e+00> : vector<8x32xf32>
    %303 = tpu.matmul %302, %33, %cst_124 {dimension_numbers = #tpu.dot_dimension_numbers<[1], [0], [0], [1], [0, 0, 1, 1], [], []>} : vector<8x16xf32>, vector<16x32xf32>, vector<8x32xf32> -> vector<8x32xf32>
    %304 = arith.addf %303, %36 : vector<8x32xf32>
    %cst_125 = arith.constant 0.000000e+00 : f32
    %305 = vector.broadcast %cst_125 : f32 to vector<8x32xf32>
    %306 = arith.maximumf %304, %305 : vector<8x32xf32>
    %cst_126 = arith.constant dense<0.000000e+00> : vector<8x96xf32>
    %307 = tpu.matmul %306, %37, %cst_126 {dimension_numbers = #tpu.dot_dimension_numbers<[1], [0], [0], [1], [0, 0, 1, 1], [], []>} : vector<8x32xf32>, vector<32x96xf32>, vector<8x96xf32> -> vector<8x96xf32>
    %308 = arith.addf %275, %307 : vector<8x96xf32>
    %309 = vector.extract_strided_slice %279 {offsets = [0, 32], sizes = [8, 96], strides = [1, 1]} : vector<8x128xf32> to vector<8x96xf32>
    %310 = vector.extract_strided_slice %308 {offsets = [0, 0], sizes = [8, 32], strides = [1, 1]} : vector<8x96xf32> to vector<8x32xf32>
    %311 = vector.extract_strided_slice %309 {offsets = [0, 0], sizes = [8, 32], strides = [1, 1]} : vector<8x96xf32> to vector<8x32xf32>
    %312 = arith.addf %310, %311 : vector<8x32xf32>
    %cst_127 = arith.constant 5.000000e-01 : f32
    %313 = vector.broadcast %cst_127 : f32 to vector<8x32xf32>
    %314 = arith.mulf %313, %312 : vector<8x32xf32>
    %315 = math.tanh %314 : vector<8x32xf32>
    %cst_128 = arith.constant 1.000000e+00 : f32
    %316 = vector.broadcast %cst_128 : f32 to vector<8x32xf32>
    %317 = arith.addf %315, %316 : vector<8x32xf32>
    %cst_129 = arith.constant 5.000000e-01 : f32
    %318 = vector.broadcast %cst_129 : f32 to vector<8x32xf32>
    %319 = arith.mulf %318, %317 : vector<8x32xf32>
    %320 = vector.extract_strided_slice %308 {offsets = [0, 32], sizes = [8, 32], strides = [1, 1]} : vector<8x96xf32> to vector<8x32xf32>
    %321 = vector.extract_strided_slice %309 {offsets = [0, 32], sizes = [8, 32], strides = [1, 1]} : vector<8x96xf32> to vector<8x32xf32>
    %322 = arith.addf %320, %321 : vector<8x32xf32>
    %cst_130 = arith.constant 5.000000e-01 : f32
    %323 = vector.broadcast %cst_130 : f32 to vector<8x32xf32>
    %324 = arith.mulf %323, %322 : vector<8x32xf32>
    %325 = math.tanh %324 : vector<8x32xf32>
    %cst_131 = arith.constant 1.000000e+00 : f32
    %326 = vector.broadcast %cst_131 : f32 to vector<8x32xf32>
    %327 = arith.addf %325, %326 : vector<8x32xf32>
    %cst_132 = arith.constant 5.000000e-01 : f32
    %328 = vector.broadcast %cst_132 : f32 to vector<8x32xf32>
    %329 = arith.mulf %328, %327 : vector<8x32xf32>
    %330 = vector.extract_strided_slice %308 {offsets = [0, 64], sizes = [8, 32], strides = [1, 1]} : vector<8x96xf32> to vector<8x32xf32>
    %331 = vector.extract_strided_slice %309 {offsets = [0, 64], sizes = [8, 32], strides = [1, 1]} : vector<8x96xf32> to vector<8x32xf32>
    %332 = arith.mulf %319, %331 : vector<8x32xf32>
    %333 = arith.addf %330, %332 : vector<8x32xf32>
    %334 = math.tanh %333 : vector<8x32xf32>
    %335 = arith.index_cast %271 : i32 to index
    %c0_133 = arith.constant 0 : index
    %336 = vector.load %arg31[%335, %c0_133] : memref<56x32xf32, #tpu.memory_space<vmem>>, vector<8x32xf32>
    tpu.vector_store %arg31[%335, %c0_133], %269 {strides = array<i32>} : memref<56x32xf32, #tpu.memory_space<vmem>>, vector<8x32xf32>,
    %337 = arith.index_cast %271 : i32 to index
    %c0_134 = arith.constant 0 : index
    %338 = vector.load %arg32[%337, %c0_134] : memref<56x32xf32, #tpu.memory_space<vmem>>, vector<8x32xf32>
    tpu.vector_store %arg32[%337, %c0_134], %306 {strides = array<i32>} : memref<56x32xf32, #tpu.memory_space<vmem>>, vector<8x32xf32>,
    %339 = arith.index_cast %271 : i32 to index
    %c0_135 = arith.constant 0 : index
    %340 = vector.load %arg25[%339, %c0_135] : memref<56x32xf32, #tpu.memory_space<vmem>>, vector<8x32xf32>
    tpu.vector_store %arg25[%339, %c0_135], %298 {strides = array<i32>} : memref<56x32xf32, #tpu.memory_space<vmem>>, vector<8x32xf32>,
    %cst_136 = arith.constant 1.000000e+00 : f32
    %341 = vector.broadcast %cst_136 : f32 to vector<8x32xf32>
    %342 = arith.subf %341, %329 : vector<8x32xf32>
    %343 = arith.mulf %342, %334 : vector<8x32xf32>
    %344 = arith.mulf %329, %269 : vector<8x32xf32>
    %345 = arith.addf %343, %344 : vector<8x32xf32>
    %c4_i32 = arith.constant 4 : i32
    %c8_i32_137 = arith.constant 8 : i32
    %346 = arith.muli %c4_i32, %c8_i32_137 : i32
    %347 = tpu.assume_multiple %346, 8 : i32
    %348 = arith.index_cast %347 : i32 to index
    %c0_138 = arith.constant 0 : index
    %349 = vector.load %arg29[%348, %c0_138] : memref<56x32xf32, #tpu.memory_space<vmem>>, vector<8x32xf32>
    %350 = arith.index_cast %347 : i32 to index
    %c0_139 = arith.constant 0 : index
    %351 = vector.load %arg30[%350, %c0_139] : memref<56x96xf32, #tpu.memory_space<vmem>>, vector<8x96xf32>
    %352 = arith.index_cast %c4_i32 : i32 to index
    %c0_140 = arith.constant 0 : index
    %c0_141 = arith.constant 0 : index
    %353 = vector.load %arg1[%352, %c0_140, %c0_141] : memref<7x8x16xf32, #tpu.memory_space<vmem>>, vector<1x8x16xf32>
    %354 = vector.shape_cast %353 : vector<1x8x16xf32> to vector<8x16xf32>
    %cst_142 = arith.constant dense<0.000000e+00> : vector<8x128xf32>
    %355 = tpu.matmul %345, %24, %cst_142 {dimension_numbers = #tpu.dot_dimension_numbers<[1], [0], [0], [1], [0, 0, 1, 1], [], []>} : vector<8x32xf32>, vector<32x128xf32>, vector<8x128xf32> -> vector<8x128xf32>
    %356 = vector.extract_strided_slice %355 {offsets = [0, 0], sizes = [8, 32], strides = [1, 1]} : vector<8x128xf32> to vector<8x32xf32>
    %357 = arith.addf %349, %356 : vector<8x32xf32>
    %cst_143 = arith.constant 0.000000e+00 : f32
    %358 = vector.broadcast %cst_143 : f32 to vector<8x32xf32>
    %359 = arith.maximumf %357, %358 : vector<8x32xf32>
    %cst_144 = arith.constant dense<0.000000e+00> : vector<8x32xf32>
    %360 = tpu.matmul %359, %25, %cst_144 {dimension_numbers = #tpu.dot_dimension_numbers<[1], [0], [0], [1], [0, 0, 1, 1], [], []>} : vector<8x32xf32>, vector<32x32xf32>, vector<8x32xf32> -> vector<8x32xf32>
    %361 = arith.addf %360, %28 : vector<8x32xf32>
    %cst_145 = arith.constant 0.000000e+00 : f32
    %362 = vector.broadcast %cst_145 : f32 to vector<8x32xf32>
    %363 = arith.maximumf %361, %362 : vector<8x32xf32>
    %cst_146 = arith.constant dense<0.000000e+00> : vector<8x32xf32>
    %364 = tpu.matmul %363, %29, %cst_146 {dimension_numbers = #tpu.dot_dimension_numbers<[1], [0], [0], [1], [0, 0, 1, 1], [], []>} : vector<8x32xf32>, vector<32x32xf32>, vector<8x32xf32> -> vector<8x32xf32>
    %365 = arith.addf %364, %32 : vector<8x32xf32>
    %cst_147 = arith.constant 0.000000e+00 : f32
    %366 = vector.broadcast %cst_147 : f32 to vector<8x32xf32>
    %367 = arith.maximumf %365, %366 : vector<8x32xf32>
    %368 = math.absf %365 : vector<8x32xf32>
    %cst_148 = arith.constant 0.000000e+00 : f32
    %369 = vector.broadcast %cst_148 : f32 to vector<8x32xf32>
    %370 = arith.subf %369, %368 : vector<8x32xf32>
    %371 = math.exp %370 : vector<8x32xf32>
    %372 = math.log1p %371 : vector<8x32xf32>
    %373 = arith.addf %367, %372 : vector<8x32xf32>
    %374 = arith.select %40, %365, %373 : vector<8x32xi1>, vector<8x32xf32>
    %375 = vector.extract_strided_slice %365 {offsets = [0, 0], sizes = [8, 16], strides = [1, 1]} : vector<8x32xf32> to vector<8x16xf32>
    %376 = vector.extract_strided_slice %374 {offsets = [0, 16], sizes = [8, 16], strides = [1, 1]} : vector<8x32xf32> to vector<8x16xf32>
    %377 = arith.mulf %354, %376 : vector<8x16xf32>
    %378 = arith.addf %377, %375 : vector<8x16xf32>
    %cst_149 = arith.constant dense<0.000000e+00> : vector<8x32xf32>
    %379 = tpu.matmul %378, %33, %cst_149 {dimension_numbers = #tpu.dot_dimension_numbers<[1], [0], [0], [1], [0, 0, 1, 1], [], []>} : vector<8x16xf32>, vector<16x32xf32>, vector<8x32xf32> -> vector<8x32xf32>
    %380 = arith.addf %379, %36 : vector<8x32xf32>
    %cst_150 = arith.constant 0.000000e+00 : f32
    %381 = vector.broadcast %cst_150 : f32 to vector<8x32xf32>
    %382 = arith.maximumf %380, %381 : vector<8x32xf32>
    %cst_151 = arith.constant dense<0.000000e+00> : vector<8x96xf32>
    %383 = tpu.matmul %382, %37, %cst_151 {dimension_numbers = #tpu.dot_dimension_numbers<[1], [0], [0], [1], [0, 0, 1, 1], [], []>} : vector<8x32xf32>, vector<32x96xf32>, vector<8x96xf32> -> vector<8x96xf32>
    %384 = arith.addf %351, %383 : vector<8x96xf32>
    %385 = vector.extract_strided_slice %355 {offsets = [0, 32], sizes = [8, 96], strides = [1, 1]} : vector<8x128xf32> to vector<8x96xf32>
    %386 = vector.extract_strided_slice %384 {offsets = [0, 0], sizes = [8, 32], strides = [1, 1]} : vector<8x96xf32> to vector<8x32xf32>
    %387 = vector.extract_strided_slice %385 {offsets = [0, 0], sizes = [8, 32], strides = [1, 1]} : vector<8x96xf32> to vector<8x32xf32>
    %388 = arith.addf %386, %387 : vector<8x32xf32>
    %cst_152 = arith.constant 5.000000e-01 : f32
    %389 = vector.broadcast %cst_152 : f32 to vector<8x32xf32>
    %390 = arith.mulf %389, %388 : vector<8x32xf32>
    %391 = math.tanh %390 : vector<8x32xf32>
    %cst_153 = arith.constant 1.000000e+00 : f32
    %392 = vector.broadcast %cst_153 : f32 to vector<8x32xf32>
    %393 = arith.addf %391, %392 : vector<8x32xf32>
    %cst_154 = arith.constant 5.000000e-01 : f32
    %394 = vector.broadcast %cst_154 : f32 to vector<8x32xf32>
    %395 = arith.mulf %394, %393 : vector<8x32xf32>
    %396 = vector.extract_strided_slice %384 {offsets = [0, 32], sizes = [8, 32], strides = [1, 1]} : vector<8x96xf32> to vector<8x32xf32>
    %397 = vector.extract_strided_slice %385 {offsets = [0, 32], sizes = [8, 32], strides = [1, 1]} : vector<8x96xf32> to vector<8x32xf32>
    %398 = arith.addf %396, %397 : vector<8x32xf32>
    %cst_155 = arith.constant 5.000000e-01 : f32
    %399 = vector.broadcast %cst_155 : f32 to vector<8x32xf32>
    %400 = arith.mulf %399, %398 : vector<8x32xf32>
    %401 = math.tanh %400 : vector<8x32xf32>
    %cst_156 = arith.constant 1.000000e+00 : f32
    %402 = vector.broadcast %cst_156 : f32 to vector<8x32xf32>
    %403 = arith.addf %401, %402 : vector<8x32xf32>
    %cst_157 = arith.constant 5.000000e-01 : f32
    %404 = vector.broadcast %cst_157 : f32 to vector<8x32xf32>
    %405 = arith.mulf %404, %403 : vector<8x32xf32>
    %406 = vector.extract_strided_slice %384 {offsets = [0, 64], sizes = [8, 32], strides = [1, 1]} : vector<8x96xf32> to vector<8x32xf32>
    %407 = vector.extract_strided_slice %385 {offsets = [0, 64], sizes = [8, 32], strides = [1, 1]} : vector<8x96xf32> to vector<8x32xf32>
    %408 = arith.mulf %395, %407 : vector<8x32xf32>
    %409 = arith.addf %406, %408 : vector<8x32xf32>
    %410 = math.tanh %409 : vector<8x32xf32>
    %411 = arith.index_cast %347 : i32 to index
    %c0_158 = arith.constant 0 : index
    %412 = vector.load %arg31[%411, %c0_158] : memref<56x32xf32, #tpu.memory_space<vmem>>, vector<8x32xf32>
    tpu.vector_store %arg31[%411, %c0_158], %345 {strides = array<i32>} : memref<56x32xf32, #tpu.memory_space<vmem>>, vector<8x32xf32>,
    %413 = arith.index_cast %347 : i32 to index
    %c0_159 = arith.constant 0 : index
    %414 = vector.load %arg32[%413, %c0_159] : memref<56x32xf32, #tpu.memory_space<vmem>>, vector<8x32xf32>
    tpu.vector_store %arg32[%413, %c0_159], %382 {strides = array<i32>} : memref<56x32xf32, #tpu.memory_space<vmem>>, vector<8x32xf32>,
    %415 = arith.index_cast %347 : i32 to index
    %c0_160 = arith.constant 0 : index
    %416 = vector.load %arg25[%415, %c0_160] : memref<56x32xf32, #tpu.memory_space<vmem>>, vector<8x32xf32>
    tpu.vector_store %arg25[%415, %c0_160], %374 {strides = array<i32>} : memref<56x32xf32, #tpu.memory_space<vmem>>, vector<8x32xf32>,
    %cst_161 = arith.constant 1.000000e+00 : f32
    %417 = vector.broadcast %cst_161 : f32 to vector<8x32xf32>
    %418 = arith.subf %417, %405 : vector<8x32xf32>
    %419 = arith.mulf %418, %410 : vector<8x32xf32>
    %420 = arith.mulf %405, %345 : vector<8x32xf32>
    %421 = arith.addf %419, %420 : vector<8x32xf32>
    %c5_i32 = arith.constant 5 : i32
    %c8_i32_162 = arith.constant 8 : i32
    %422 = arith.muli %c5_i32, %c8_i32_162 : i32
    %423 = tpu.assume_multiple %422, 8 : i32
    %424 = arith.index_cast %423 : i32 to index
    %c0_163 = arith.constant 0 : index
    %425 = vector.load %arg29[%424, %c0_163] : memref<56x32xf32, #tpu.memory_space<vmem>>, vector<8x32xf32>
    %426 = arith.index_cast %423 : i32 to index
    %c0_164 = arith.constant 0 : index
    %427 = vector.load %arg30[%426, %c0_164] : memref<56x96xf32, #tpu.memory_space<vmem>>, vector<8x96xf32>
    %428 = arith.index_cast %c5_i32 : i32 to index
    %c0_165 = arith.constant 0 : index
    %c0_166 = arith.constant 0 : index
    %429 = vector.load %arg1[%428, %c0_165, %c0_166] : memref<7x8x16xf32, #tpu.memory_space<vmem>>, vector<1x8x16xf32>
    %430 = vector.shape_cast %429 : vector<1x8x16xf32> to vector<8x16xf32>
    %cst_167 = arith.constant dense<0.000000e+00> : vector<8x128xf32>
    %431 = tpu.matmul %421, %24, %cst_167 {dimension_numbers = #tpu.dot_dimension_numbers<[1], [0], [0], [1], [0, 0, 1, 1], [], []>} : vector<8x32xf32>, vector<32x128xf32>, vector<8x128xf32> -> vector<8x128xf32>
    %432 = vector.extract_strided_slice %431 {offsets = [0, 0], sizes = [8, 32], strides = [1, 1]} : vector<8x128xf32> to vector<8x32xf32>
    %433 = arith.addf %425, %432 : vector<8x32xf32>
    %cst_168 = arith.constant 0.000000e+00 : f32
    %434 = vector.broadcast %cst_168 : f32 to vector<8x32xf32>
    %435 = arith.maximumf %433, %434 : vector<8x32xf32>
    %cst_169 = arith.constant dense<0.000000e+00> : vector<8x32xf32>
    %436 = tpu.matmul %435, %25, %cst_169 {dimension_numbers = #tpu.dot_dimension_numbers<[1], [0], [0], [1], [0, 0, 1, 1], [], []>} : vector<8x32xf32>, vector<32x32xf32>, vector<8x32xf32> -> vector<8x32xf32>
    %437 = arith.addf %436, %28 : vector<8x32xf32>
    %cst_170 = arith.constant 0.000000e+00 : f32
    %438 = vector.broadcast %cst_170 : f32 to vector<8x32xf32>
    %439 = arith.maximumf %437, %438 : vector<8x32xf32>
    %cst_171 = arith.constant dense<0.000000e+00> : vector<8x32xf32>
    %440 = tpu.matmul %439, %29, %cst_171 {dimension_numbers = #tpu.dot_dimension_numbers<[1], [0], [0], [1], [0, 0, 1, 1], [], []>} : vector<8x32xf32>, vector<32x32xf32>, vector<8x32xf32> -> vector<8x32xf32>
    %441 = arith.addf %440, %32 : vector<8x32xf32>
    %cst_172 = arith.constant 0.000000e+00 : f32
    %442 = vector.broadcast %cst_172 : f32 to vector<8x32xf32>
    %443 = arith.maximumf %441, %442 : vector<8x32xf32>
    %444 = math.absf %441 : vector<8x32xf32>
    %cst_173 = arith.constant 0.000000e+00 : f32
    %445 = vector.broadcast %cst_173 : f32 to vector<8x32xf32>
    %446 = arith.subf %445, %444 : vector<8x32xf32>
    %447 = math.exp %446 : vector<8x32xf32>
    %448 = math.log1p %447 : vector<8x32xf32>
    %449 = arith.addf %443, %448 : vector<8x32xf32>
    %450 = arith.select %40, %441, %449 : vector<8x32xi1>, vector<8x32xf32>
    %451 = vector.extract_strided_slice %441 {offsets = [0, 0], sizes = [8, 16], strides = [1, 1]} : vector<8x32xf32> to vector<8x16xf32>
    %452 = vector.extract_strided_slice %450 {offsets = [0, 16], sizes = [8, 16], strides = [1, 1]} : vector<8x32xf32> to vector<8x16xf32>
    %453 = arith.mulf %430, %452 : vector<8x16xf32>
    %454 = arith.addf %453, %451 : vector<8x16xf32>
    %cst_174 = arith.constant dense<0.000000e+00> : vector<8x32xf32>
    %455 = tpu.matmul %454, %33, %cst_174 {dimension_numbers = #tpu.dot_dimension_numbers<[1], [0], [0], [1], [0, 0, 1, 1], [], []>} : vector<8x16xf32>, vector<16x32xf32>, vector<8x32xf32> -> vector<8x32xf32>
    %456 = arith.addf %455, %36 : vector<8x32xf32>
    %cst_175 = arith.constant 0.000000e+00 : f32
    %457 = vector.broadcast %cst_175 : f32 to vector<8x32xf32>
    %458 = arith.maximumf %456, %457 : vector<8x32xf32>
    %cst_176 = arith.constant dense<0.000000e+00> : vector<8x96xf32>
    %459 = tpu.matmul %458, %37, %cst_176 {dimension_numbers = #tpu.dot_dimension_numbers<[1], [0], [0], [1], [0, 0, 1, 1], [], []>} : vector<8x32xf32>, vector<32x96xf32>, vector<8x96xf32> -> vector<8x96xf32>
    %460 = arith.addf %427, %459 : vector<8x96xf32>
    %461 = vector.extract_strided_slice %431 {offsets = [0, 32], sizes = [8, 96], strides = [1, 1]} : vector<8x128xf32> to vector<8x96xf32>
    %462 = vector.extract_strided_slice %460 {offsets = [0, 0], sizes = [8, 32], strides = [1, 1]} : vector<8x96xf32> to vector<8x32xf32>
    %463 = vector.extract_strided_slice %461 {offsets = [0, 0], sizes = [8, 32], strides = [1, 1]} : vector<8x96xf32> to vector<8x32xf32>
    %464 = arith.addf %462, %463 : vector<8x32xf32>
    %cst_177 = arith.constant 5.000000e-01 : f32
    %465 = vector.broadcast %cst_177 : f32 to vector<8x32xf32>
    %466 = arith.mulf %465, %464 : vector<8x32xf32>
    %467 = math.tanh %466 : vector<8x32xf32>
    %cst_178 = arith.constant 1.000000e+00 : f32
    %468 = vector.broadcast %cst_178 : f32 to vector<8x32xf32>
    %469 = arith.addf %467, %468 : vector<8x32xf32>
    %cst_179 = arith.constant 5.000000e-01 : f32
    %470 = vector.broadcast %cst_179 : f32 to vector<8x32xf32>
    %471 = arith.mulf %470, %469 : vector<8x32xf32>
    %472 = vector.extract_strided_slice %460 {offsets = [0, 32], sizes = [8, 32], strides = [1, 1]} : vector<8x96xf32> to vector<8x32xf32>
    %473 = vector.extract_strided_slice %461 {offsets = [0, 32], sizes = [8, 32], strides = [1, 1]} : vector<8x96xf32> to vector<8x32xf32>
    %474 = arith.addf %472, %473 : vector<8x32xf32>
    %cst_180 = arith.constant 5.000000e-01 : f32
    %475 = vector.broadcast %cst_180 : f32 to vector<8x32xf32>
    %476 = arith.mulf %475, %474 : vector<8x32xf32>
    %477 = math.tanh %476 : vector<8x32xf32>
    %cst_181 = arith.constant 1.000000e+00 : f32
    %478 = vector.broadcast %cst_181 : f32 to vector<8x32xf32>
    %479 = arith.addf %477, %478 : vector<8x32xf32>
    %cst_182 = arith.constant 5.000000e-01 : f32
    %480 = vector.broadcast %cst_182 : f32 to vector<8x32xf32>
    %481 = arith.mulf %480, %479 : vector<8x32xf32>
    %482 = vector.extract_strided_slice %460 {offsets = [0, 64], sizes = [8, 32], strides = [1, 1]} : vector<8x96xf32> to vector<8x32xf32>
    %483 = vector.extract_strided_slice %461 {offsets = [0, 64], sizes = [8, 32], strides = [1, 1]} : vector<8x96xf32> to vector<8x32xf32>
    %484 = arith.mulf %471, %483 : vector<8x32xf32>
    %485 = arith.addf %482, %484 : vector<8x32xf32>
    %486 = math.tanh %485 : vector<8x32xf32>
    %487 = arith.index_cast %423 : i32 to index
    %c0_183 = arith.constant 0 : index
    %488 = vector.load %arg31[%487, %c0_183] : memref<56x32xf32, #tpu.memory_space<vmem>>, vector<8x32xf32>
    tpu.vector_store %arg31[%487, %c0_183], %421 {strides = array<i32>} : memref<56x32xf32, #tpu.memory_space<vmem>>, vector<8x32xf32>,
    %489 = arith.index_cast %423 : i32 to index
    %c0_184 = arith.constant 0 : index
    %490 = vector.load %arg32[%489, %c0_184] : memref<56x32xf32, #tpu.memory_space<vmem>>, vector<8x32xf32>
    tpu.vector_store %arg32[%489, %c0_184], %458 {strides = array<i32>} : memref<56x32xf32, #tpu.memory_space<vmem>>, vector<8x32xf32>,
    %491 = arith.index_cast %423 : i32 to index
    %c0_185 = arith.constant 0 : index
    %492 = vector.load %arg25[%491, %c0_185] : memref<56x32xf32, #tpu.memory_space<vmem>>, vector<8x32xf32>
    tpu.vector_store %arg25[%491, %c0_185], %450 {strides = array<i32>} : memref<56x32xf32, #tpu.memory_space<vmem>>, vector<8x32xf32>,
    %cst_186 = arith.constant 1.000000e+00 : f32
    %493 = vector.broadcast %cst_186 : f32 to vector<8x32xf32>
    %494 = arith.subf %493, %481 : vector<8x32xf32>
    %495 = arith.mulf %494, %486 : vector<8x32xf32>
    %496 = arith.mulf %481, %421 : vector<8x32xf32>
    %497 = arith.addf %495, %496 : vector<8x32xf32>
    %c6_i32 = arith.constant 6 : i32
    %c8_i32_187 = arith.constant 8 : i32
    %498 = arith.muli %c6_i32, %c8_i32_187 : i32
    %499 = tpu.assume_multiple %498, 8 : i32
    %500 = arith.index_cast %499 : i32 to index
    %c0_188 = arith.constant 0 : index
    %501 = vector.load %arg29[%500, %c0_188] : memref<56x32xf32, #tpu.memory_space<vmem>>, vector<8x32xf32>
    %502 = arith.index_cast %499 : i32 to index
    %c0_189 = arith.constant 0 : index
    %503 = vector.load %arg30[%502, %c0_189] : memref<56x96xf32, #tpu.memory_space<vmem>>, vector<8x96xf32>
    %504 = arith.index_cast %c6_i32 : i32 to index
    %c0_190 = arith.constant 0 : index
    %c0_191 = arith.constant 0 : index
    %505 = vector.load %arg1[%504, %c0_190, %c0_191] : memref<7x8x16xf32, #tpu.memory_space<vmem>>, vector<1x8x16xf32>
    %506 = vector.shape_cast %505 : vector<1x8x16xf32> to vector<8x16xf32>
    %cst_192 = arith.constant dense<0.000000e+00> : vector<8x128xf32>
    %507 = tpu.matmul %497, %24, %cst_192 {dimension_numbers = #tpu.dot_dimension_numbers<[1], [0], [0], [1], [0, 0, 1, 1], [], []>} : vector<8x32xf32>, vector<32x128xf32>, vector<8x128xf32> -> vector<8x128xf32>
    %508 = vector.extract_strided_slice %507 {offsets = [0, 0], sizes = [8, 32], strides = [1, 1]} : vector<8x128xf32> to vector<8x32xf32>
    %509 = arith.addf %501, %508 : vector<8x32xf32>
    %cst_193 = arith.constant 0.000000e+00 : f32
    %510 = vector.broadcast %cst_193 : f32 to vector<8x32xf32>
    %511 = arith.maximumf %509, %510 : vector<8x32xf32>
    %cst_194 = arith.constant dense<0.000000e+00> : vector<8x32xf32>
    %512 = tpu.matmul %511, %25, %cst_194 {dimension_numbers = #tpu.dot_dimension_numbers<[1], [0], [0], [1], [0, 0, 1, 1], [], []>} : vector<8x32xf32>, vector<32x32xf32>, vector<8x32xf32> -> vector<8x32xf32>
    %513 = arith.addf %512, %28 : vector<8x32xf32>
    %cst_195 = arith.constant 0.000000e+00 : f32
    %514 = vector.broadcast %cst_195 : f32 to vector<8x32xf32>
    %515 = arith.maximumf %513, %514 : vector<8x32xf32>
    %cst_196 = arith.constant dense<0.000000e+00> : vector<8x32xf32>
    %516 = tpu.matmul %515, %29, %cst_196 {dimension_numbers = #tpu.dot_dimension_numbers<[1], [0], [0], [1], [0, 0, 1, 1], [], []>} : vector<8x32xf32>, vector<32x32xf32>, vector<8x32xf32> -> vector<8x32xf32>
    %517 = arith.addf %516, %32 : vector<8x32xf32>
    %cst_197 = arith.constant 0.000000e+00 : f32
    %518 = vector.broadcast %cst_197 : f32 to vector<8x32xf32>
    %519 = arith.maximumf %517, %518 : vector<8x32xf32>
    %520 = math.absf %517 : vector<8x32xf32>
    %cst_198 = arith.constant 0.000000e+00 : f32
    %521 = vector.broadcast %cst_198 : f32 to vector<8x32xf32>
    %522 = arith.subf %521, %520 : vector<8x32xf32>
    %523 = math.exp %522 : vector<8x32xf32>
    %524 = math.log1p %523 : vector<8x32xf32>
    %525 = arith.addf %519, %524 : vector<8x32xf32>
    %526 = arith.select %40, %517, %525 : vector<8x32xi1>, vector<8x32xf32>
    %527 = vector.extract_strided_slice %517 {offsets = [0, 0], sizes = [8, 16], strides = [1, 1]} : vector<8x32xf32> to vector<8x16xf32>
    %528 = vector.extract_strided_slice %526 {offsets = [0, 16], sizes = [8, 16], strides = [1, 1]} : vector<8x32xf32> to vector<8x16xf32>
    %529 = arith.mulf %506, %528 : vector<8x16xf32>
    %530 = arith.addf %529, %527 : vector<8x16xf32>
    %cst_199 = arith.constant dense<0.000000e+00> : vector<8x32xf32>
    %531 = tpu.matmul %530, %33, %cst_199 {dimension_numbers = #tpu.dot_dimension_numbers<[1], [0], [0], [1], [0, 0, 1, 1], [], []>} : vector<8x16xf32>, vector<16x32xf32>, vector<8x32xf32> -> vector<8x32xf32>
    %532 = arith.addf %531, %36 : vector<8x32xf32>
    %cst_200 = arith.constant 0.000000e+00 : f32
    %533 = vector.broadcast %cst_200 : f32 to vector<8x32xf32>
    %534 = arith.maximumf %532, %533 : vector<8x32xf32>
    %cst_201 = arith.constant dense<0.000000e+00> : vector<8x96xf32>
    %535 = tpu.matmul %534, %37, %cst_201 {dimension_numbers = #tpu.dot_dimension_numbers<[1], [0], [0], [1], [0, 0, 1, 1], [], []>} : vector<8x32xf32>, vector<32x96xf32>, vector<8x96xf32> -> vector<8x96xf32>
    %536 = arith.addf %503, %535 : vector<8x96xf32>
    %537 = vector.extract_strided_slice %507 {offsets = [0, 32], sizes = [8, 96], strides = [1, 1]} : vector<8x128xf32> to vector<8x96xf32>
    %538 = vector.extract_strided_slice %536 {offsets = [0, 0], sizes = [8, 32], strides = [1, 1]} : vector<8x96xf32> to vector<8x32xf32>
    %539 = vector.extract_strided_slice %537 {offsets = [0, 0], sizes = [8, 32], strides = [1, 1]} : vector<8x96xf32> to vector<8x32xf32>
    %540 = arith.addf %538, %539 : vector<8x32xf32>
    %cst_202 = arith.constant 5.000000e-01 : f32
    %541 = vector.broadcast %cst_202 : f32 to vector<8x32xf32>
    %542 = arith.mulf %541, %540 : vector<8x32xf32>
    %543 = math.tanh %542 : vector<8x32xf32>
    %cst_203 = arith.constant 1.000000e+00 : f32
    %544 = vector.broadcast %cst_203 : f32 to vector<8x32xf32>
    %545 = arith.addf %543, %544 : vector<8x32xf32>
    %cst_204 = arith.constant 5.000000e-01 : f32
    %546 = vector.broadcast %cst_204 : f32 to vector<8x32xf32>
    %547 = arith.mulf %546, %545 : vector<8x32xf32>
    %548 = vector.extract_strided_slice %536 {offsets = [0, 32], sizes = [8, 32], strides = [1, 1]} : vector<8x96xf32> to vector<8x32xf32>
    %549 = vector.extract_strided_slice %537 {offsets = [0, 32], sizes = [8, 32], strides = [1, 1]} : vector<8x96xf32> to vector<8x32xf32>
    %550 = arith.addf %548, %549 : vector<8x32xf32>
    %cst_205 = arith.constant 5.000000e-01 : f32
    %551 = vector.broadcast %cst_205 : f32 to vector<8x32xf32>
    %552 = arith.mulf %551, %550 : vector<8x32xf32>
    %553 = math.tanh %552 : vector<8x32xf32>
    %cst_206 = arith.constant 1.000000e+00 : f32
    %554 = vector.broadcast %cst_206 : f32 to vector<8x32xf32>
    %555 = arith.addf %553, %554 : vector<8x32xf32>
    %cst_207 = arith.constant 5.000000e-01 : f32
    %556 = vector.broadcast %cst_207 : f32 to vector<8x32xf32>
    %557 = arith.mulf %556, %555 : vector<8x32xf32>
    %558 = vector.extract_strided_slice %536 {offsets = [0, 64], sizes = [8, 32], strides = [1, 1]} : vector<8x96xf32> to vector<8x32xf32>
    %559 = vector.extract_strided_slice %537 {offsets = [0, 64], sizes = [8, 32], strides = [1, 1]} : vector<8x96xf32> to vector<8x32xf32>
    %560 = arith.mulf %547, %559 : vector<8x32xf32>
    %561 = arith.addf %558, %560 : vector<8x32xf32>
    %562 = math.tanh %561 : vector<8x32xf32>
    %563 = arith.index_cast %499 : i32 to index
    %c0_208 = arith.constant 0 : index
    %564 = vector.load %arg31[%563, %c0_208] : memref<56x32xf32, #tpu.memory_space<vmem>>, vector<8x32xf32>
    tpu.vector_store %arg31[%563, %c0_208], %497 {strides = array<i32>} : memref<56x32xf32, #tpu.memory_space<vmem>>, vector<8x32xf32>,
    %565 = arith.index_cast %499 : i32 to index
    %c0_209 = arith.constant 0 : index
    %566 = vector.load %arg32[%565, %c0_209] : memref<56x32xf32, #tpu.memory_space<vmem>>, vector<8x32xf32>
    tpu.vector_store %arg32[%565, %c0_209], %534 {strides = array<i32>} : memref<56x32xf32, #tpu.memory_space<vmem>>, vector<8x32xf32>,
    %567 = arith.index_cast %499 : i32 to index
    %c0_210 = arith.constant 0 : index
    %568 = vector.load %arg25[%567, %c0_210] : memref<56x32xf32, #tpu.memory_space<vmem>>, vector<8x32xf32>
    tpu.vector_store %arg25[%567, %c0_210], %526 {strides = array<i32>} : memref<56x32xf32, #tpu.memory_space<vmem>>, vector<8x32xf32>,
    %cst_211 = arith.constant 1.000000e+00 : f32
    %569 = vector.broadcast %cst_211 : f32 to vector<8x32xf32>
    %570 = arith.subf %569, %557 : vector<8x32xf32>
    %571 = arith.mulf %570, %562 : vector<8x32xf32>
    %572 = arith.mulf %557, %497 : vector<8x32xf32>
    %573 = arith.addf %571, %572 : vector<8x32xf32>
    %c7_i32 = arith.constant 7 : i32
    %c0_212 = arith.constant 0 : index
    %c0_213 = arith.constant 0 : index
    %574 = vector.load %arg31[%c0_212, %c0_213] : memref<56x32xf32, #tpu.memory_space<vmem>>, vector<56x32xf32>
    %c0_214 = arith.constant 0 : index
    %c0_215 = arith.constant 0 : index
    %575 = vector.load %arg32[%c0_214, %c0_215] : memref<56x32xf32, #tpu.memory_space<vmem>>, vector<56x32xf32>
    %c0_216 = arith.constant 0 : index
    %c0_217 = arith.constant 0 : index
    %576 = vector.load %arg16[%c0_216, %c0_217] : memref<32x64xf32, #tpu.memory_space<vmem>>, vector<32x64xf32>
    %cst_218 = arith.constant dense<0.000000e+00> : vector<56x64xf32>
    %577 = tpu.matmul %574, %576, %cst_218 {dimension_numbers = #tpu.dot_dimension_numbers<[1], [0], [0], [1], [0, 0, 1, 1], [], []>} : vector<56x32xf32>, vector<32x64xf32>, vector<56x64xf32> -> vector<56x64xf32>
    %c0_219 = arith.constant 0 : index
    %c0_220 = arith.constant 0 : index
    %578 = vector.load %arg17[%c0_219, %c0_220] : memref<1x64xf32, #tpu.memory_space<vmem>>, vector<1x64xf32>
    %579 = vector.broadcast %578 : vector<1x64xf32> to vector<56x64xf32>
    %580 = arith.addf %577, %579 : vector<56x64xf32>
    %581 = vector.extract_strided_slice %580 {offsets = [0, 0], sizes = [56, 32], strides = [1, 1]} : vector<56x64xf32> to vector<56x32xf32>
    %cst_221 = arith.constant 0.000000e+00 : f32
    %582 = vector.broadcast %cst_221 : f32 to vector<56x32xf32>
    %583 = arith.maximumf %581, %582 : vector<56x32xf32>
    %c0_222 = arith.constant 0 : index
    %c0_223 = arith.constant 0 : index
    %584 = vector.load %arg18[%c0_222, %c0_223] : memref<32x32xf32, #tpu.memory_space<vmem>>, vector<32x32xf32>
    %cst_224 = arith.constant dense<0.000000e+00> : vector<56x32xf32>
    %585 = tpu.matmul %583, %584, %cst_224 {dimension_numbers = #tpu.dot_dimension_numbers<[1], [0], [0], [1], [0, 0, 1, 1], [], []>} : vector<56x32xf32>, vector<32x32xf32>, vector<56x32xf32> -> vector<56x32xf32>
    %c0_225 = arith.constant 0 : index
    %c0_226 = arith.constant 0 : index
    %586 = vector.load %arg19[%c0_225, %c0_226] : memref<1x32xf32, #tpu.memory_space<vmem>>, vector<1x32xf32>
    %587 = vector.broadcast %586 : vector<1x32xf32> to vector<56x32xf32>
    %588 = arith.addf %585, %587 : vector<56x32xf32>
    %589 = vector.extract_strided_slice %588 {offsets = [0, 0], sizes = [56, 16], strides = [1, 1]} : vector<56x32xf32> to vector<56x16xf32>
    %590 = vector.extract_strided_slice %588 {offsets = [0, 16], sizes = [56, 16], strides = [1, 1]} : vector<56x32xf32> to vector<56x16xf32>
    %cst_227 = arith.constant 0.000000e+00 : f32
    %591 = vector.broadcast %cst_227 : f32 to vector<56x16xf32>
    %592 = arith.maximumf %590, %591 : vector<56x16xf32>
    %593 = math.absf %590 : vector<56x16xf32>
    %cst_228 = arith.constant 0.000000e+00 : f32
    %594 = vector.broadcast %cst_228 : f32 to vector<56x16xf32>
    %595 = arith.subf %594, %593 : vector<56x16xf32>
    %596 = math.exp %595 : vector<56x16xf32>
    %597 = math.log1p %596 : vector<56x16xf32>
    %598 = arith.addf %592, %597 : vector<56x16xf32>
    %599 = vector.extract_strided_slice %580 {offsets = [0, 32], sizes = [56, 32], strides = [1, 1]} : vector<56x64xf32> to vector<56x32xf32>
    %c0_229 = arith.constant 0 : index
    %c0_230 = arith.constant 0 : index
    %600 = vector.load %arg20[%c0_229, %c0_230] : memref<32x32xf32, #tpu.memory_space<vmem>>, vector<32x32xf32>
    %cst_231 = arith.constant dense<0.000000e+00> : vector<56x32xf32>
    %601 = tpu.matmul %575, %600, %cst_231 {dimension_numbers = #tpu.dot_dimension_numbers<[1], [0], [0], [1], [0, 0, 1, 1], [], []>} : vector<56x32xf32>, vector<32x32xf32>, vector<56x32xf32> -> vector<56x32xf32>
    %602 = arith.addf %599, %601 : vector<56x32xf32>
    %cst_232 = arith.constant 0.000000e+00 : f32
    %603 = vector.broadcast %cst_232 : f32 to vector<56x32xf32>
    %604 = arith.maximumf %602, %603 : vector<56x32xf32>
    %c0_233 = arith.constant 0 : index
    %c0_234 = arith.constant 0 : index
    %605 = vector.load %arg21[%c0_233, %c0_234] : memref<32x32xf32, #tpu.memory_space<vmem>>, vector<32x32xf32>
    %cst_235 = arith.constant dense<0.000000e+00> : vector<56x32xf32>
    %606 = tpu.matmul %604, %605, %cst_235 {dimension_numbers = #tpu.dot_dimension_numbers<[1], [0], [0], [1], [0, 0, 1, 1], [], []>} : vector<56x32xf32>, vector<32x32xf32>, vector<56x32xf32> -> vector<56x32xf32>
    %c0_236 = arith.constant 0 : index
    %c0_237 = arith.constant 0 : index
    %607 = vector.load %arg22[%c0_236, %c0_237] : memref<1x32xf32, #tpu.memory_space<vmem>>, vector<1x32xf32>
    %608 = vector.broadcast %607 : vector<1x32xf32> to vector<56x32xf32>
    %609 = arith.addf %606, %608 : vector<56x32xf32>
    %cst_238 = arith.constant 0.000000e+00 : f32
    %610 = vector.broadcast %cst_238 : f32 to vector<56x32xf32>
    %611 = arith.maximumf %609, %610 : vector<56x32xf32>
    %c0_239 = arith.constant 0 : index
    %c0_240 = arith.constant 0 : index
    %612 = vector.load %arg23[%c0_239, %c0_240] : memref<32x32xf32, #tpu.memory_space<vmem>>, vector<32x32xf32>
    %cst_241 = arith.constant dense<0.000000e+00> : vector<56x32xf32>
    %613 = tpu.matmul %611, %612, %cst_241 {dimension_numbers = #tpu.dot_dimension_numbers<[1], [0], [0], [1], [0, 0, 1, 1], [], []>} : vector<56x32xf32>, vector<32x32xf32>, vector<56x32xf32> -> vector<56x32xf32>
    %c0_242 = arith.constant 0 : index
    %c0_243 = arith.constant 0 : index
    %614 = vector.load %arg24[%c0_242, %c0_243] : memref<1x32xf32, #tpu.memory_space<vmem>>, vector<1x32xf32>
    %615 = vector.broadcast %614 : vector<1x32xf32> to vector<56x32xf32>
    %616 = arith.addf %613, %615 : vector<56x32xf32>
    %cst_244 = arith.constant 5.000000e-01 : f32
    %617 = vector.broadcast %cst_244 : f32 to vector<56x32xf32>
    %618 = arith.mulf %617, %616 : vector<56x32xf32>
    %619 = math.tanh %618 : vector<56x32xf32>
    %cst_245 = arith.constant 1.000000e+00 : f32
    %620 = vector.broadcast %cst_245 : f32 to vector<56x32xf32>
    %621 = arith.addf %619, %620 : vector<56x32xf32>
    %cst_246 = arith.constant 5.000000e-01 : f32
    %622 = vector.broadcast %cst_246 : f32 to vector<56x32xf32>
    %623 = arith.mulf %622, %621 : vector<56x32xf32>
    %624 = tpu.iota {dimensions = array<i32: 1>} : vector<56x32xi32>
    %c16_i32_247 = arith.constant 16 : i32
    %625 = vector.broadcast %c16_i32_247 : i32 to vector<56x32xi32>
    %626 = arith.cmpi slt, %624, %625 : vector<56x32xi32>
    %cst_248 = arith.constant 0.000000e+00 : f32
    %627 = vector.broadcast %cst_248 : f32 to vector<56x32xf32>
    %628 = arith.maximumf %616, %627 : vector<56x32xf32>
    %629 = math.absf %616 : vector<56x32xf32>
    %cst_249 = arith.constant 0.000000e+00 : f32
    %630 = vector.broadcast %cst_249 : f32 to vector<56x32xf32>
    %631 = arith.subf %630, %629 : vector<56x32xf32>
    %632 = math.exp %631 : vector<56x32xf32>
    %633 = math.log1p %632 : vector<56x32xf32>
    %634 = arith.addf %628, %633 : vector<56x32xf32>
    %635 = arith.select %626, %623, %634 : vector<56x32xi1>, vector<56x32xf32>
    %c0_250 = arith.constant 0 : index
    %c0_251 = arith.constant 0 : index
    %636 = vector.load %arg26[%c0_250, %c0_251] : memref<56x32xf32, #tpu.memory_space<vmem>>, vector<56x32xf32>
    tpu.vector_store %arg26[%c0_250, %c0_251], %635 {strides = array<i32>} : memref<56x32xf32, #tpu.memory_space<vmem>>, vector<56x32xf32>,
    %c0_252 = arith.constant 0 : index
    %c0_253 = arith.constant 0 : index
    %637 = vector.load %arg25[%c0_252, %c0_253] : memref<56x32xf32, #tpu.memory_space<vmem>>, vector<56x32xf32>
    %638 = vector.extract_strided_slice %637 {offsets = [0, 0], sizes = [56, 16], strides = [1, 1]} : vector<56x32xf32> to vector<56x16xf32>
    %639 = vector.extract_strided_slice %637 {offsets = [0, 16], sizes = [56, 16], strides = [1, 1]} : vector<56x32xf32> to vector<56x16xf32>
    %640 = arith.divf %598, %639 : vector<56x16xf32>
    %641 = math.log %640 : vector<56x16xf32>
    %cst_254 = arith.constant 2.000000e+00 : f32
    %642 = vector.broadcast %cst_254 : f32 to vector<56x16xf32>
    %643 = arith.mulf %642, %641 : vector<56x16xf32>
    %644 = arith.mulf %639, %639 : vector<56x16xf32>
    %645 = arith.subf %638, %589 : vector<56x16xf32>
    %646 = arith.mulf %645, %645 : vector<56x16xf32>
    %647 = arith.addf %644, %646 : vector<56x16xf32>
    %648 = arith.mulf %598, %598 : vector<56x16xf32>
    %649 = arith.divf %647, %648 : vector<56x16xf32>
    %650 = arith.addf %643, %649 : vector<56x16xf32>
    %cst_255 = arith.constant 1.000000e+00 : f32
    %651 = vector.broadcast %cst_255 : f32 to vector<56x16xf32>
    %652 = arith.subf %650, %651 : vector<56x16xf32>
    %653 = vector.shape_cast %652 : vector<56x16xf32> to vector<1x56x16xf32>
    %cst_256 = arith.constant dense<0.000000e+00> : vector<1xf32>
    %654 = vector.multi_reduction <add>, %653, %cst_256 [1, 2] : vector<1x56x16xf32> to vector<1xf32>
    %655 = vector.shape_cast %654 : vector<1xf32> to vector<1x1x1xf32>
    %656 = vector.extract %655[0, 0, 0] : f32 from vector<1x1x1xf32>
    %657 = vector.broadcast %656 : f32 to vector<1x1xf32>
    %cst_257 = arith.constant 5.000000e-01 : f32
    %658 = vector.broadcast %cst_257 : f32 to vector<1x1xf32>
    %659 = arith.mulf %658, %657 : vector<1x1xf32>
    %c0_258 = arith.constant 0 : index
    %c0_259 = arith.constant 0 : index
    %660 = vector.load %arg27[%c0_258, %c0_259] : memref<1x1xf32, #tpu.memory_space<vmem>>, vector<1x1xf32>
    tpu.vector_store %arg27[%c0_258, %c0_259], %659 {strides = array<i32>} : memref<1x1xf32, #tpu.memory_space<vmem>>, vector<1x1xf32>,
    %661 = vector.extract_strided_slice %623 {offsets = [0, 0], sizes = [56, 16], strides = [1, 1]} : vector<56x32xf32> to vector<56x16xf32>
    %c0_260 = arith.constant 0 : index
    %c0_261 = arith.constant 0 : index
    %662 = vector.load %arg0[%c0_260, %c0_261] : memref<56x16xf32, #tpu.memory_space<vmem>>, vector<56x16xf32>
    %663 = arith.subf %662, %661 : vector<56x16xf32>
    %664 = arith.mulf %663, %663 : vector<56x16xf32>
    %665 = vector.shape_cast %664 : vector<56x16xf32> to vector<1x56x16xf32>
    %cst_262 = arith.constant dense<0.000000e+00> : vector<1xf32>
    %666 = vector.multi_reduction <add>, %665, %cst_262 [1, 2] : vector<1x56x16xf32> to vector<1xf32>
    %667 = vector.shape_cast %666 : vector<1xf32> to vector<1x1x1xf32>
    %668 = vector.extract %667[0, 0, 0] : f32 from vector<1x1x1xf32>
    %669 = vector.broadcast %668 : f32 to vector<1x1xf32>
    %c0_263 = arith.constant 0 : index
    %c0_264 = arith.constant 0 : index
    %670 = vector.load %arg28[%c0_263, %c0_264] : memref<1x1xf32, #tpu.memory_space<vmem>>, vector<1x1xf32>
    tpu.vector_store %arg28[%c0_263, %c0_264], %669 {strides = array<i32>} : memref<1x1xf32, #tpu.memory_space<vmem>>, vector<1x1xf32>,
    return
  }
}

</mosaic_0001>

<llo_original>
// kernel: tpu_custom_call.1
$region0: #{tpu_custom_call.1}
  #allocation0 [shape = 'u32[]', space=smem, size = 0x4, offset = 0x4, fixed_abs, tag = 'smem constant byte address 0x4 - core index']
  #allocation1 [shape = 'u32[144,128]{1,0:T(1,128)}', space=vmem, size = 0x12000, scoped, tag = 'internal scratch']
  #allocation2 [shape = 'f32[56,32]{1,0:T(8,128)}', space=vmem, size = 0x7000, scoped, tag = 'scratch operand']
  #allocation3 [shape = 'f32[56,96]{1,0:T(8,128)}', space=vmem, size = 0x7000, scoped, tag = 'scratch operand']
  #allocation4 [shape = 'f32[56,32]{1,0:T(8,128)}', space=vmem, size = 0x7000, scoped, tag = 'scratch operand']
  #allocation5 [shape = 'f32[56,32]{1,0:T(8,128)}', space=vmem, size = 0x7000, scoped, tag = 'scratch operand']
  %s0 = inlined_call_operand.vmem [shape: f32[56,16], index: 0, kind: input, shape index: {}]
  %s1 = inlined_call_operand.vmem [shape: f32[7,8,16], index: 1, kind: input, shape index: {}]
  %s2 = inlined_call_operand.hbm [shape: f32[16,32], index: 2, kind: input, shape index: {}]
  %s3 = inlined_call_operand.hbm [shape: f32[1,32], index: 3, kind: input, shape index: {}]
  %s4 = inlined_call_operand.hbm [shape: f32[32,32], index: 4, kind: input, shape index: {}]
  %s5 = inlined_call_operand.hbm [shape: f32[1,32], index: 5, kind: input, shape index: {}]
  %s6 = inlined_call_operand.hbm [shape: f32[32,128], index: 6, kind: input, shape index: {}]
  %s7 = inlined_call_operand.hbm [shape: f32[1,128], index: 7, kind: input, shape index: {}]
  %s8 = inlined_call_operand.hbm [shape: f32[32,128], index: 8, kind: input, shape index: {}]
  %s9 = inlined_call_operand.vmem [shape: f32[32,32], index: 9, kind: input, shape index: {}]
  %s10 = inlined_call_operand.vmem [shape: f32[1,32], index: 10, kind: input, shape index: {}]
  %s11 = inlined_call_operand.hbm [shape: f32[32,32], index: 11, kind: input, shape index: {}]
  %s12 = inlined_call_operand.vmem [shape: f32[1,32], index: 12, kind: input, shape index: {}]
  %s13 = inlined_call_operand.hbm [shape: f32[16,32], index: 13, kind: input, shape index: {}]
  %s14 = inlined_call_operand.vmem [shape: f32[1,32], index: 14, kind: input, shape index: {}]
  %s15 = inlined_call_operand.hbm [shape: f32[32,96], index: 15, kind: input, shape index: {}]
  %s16 = inlined_call_operand.hbm [shape: f32[32,64], index: 16, kind: input, shape index: {}]
  %s17 = inlined_call_operand.vmem [shape: f32[1,64], index: 17, kind: input, shape index: {}]
  %s18 = inlined_call_operand.hbm [shape: f32[32,32], index: 18, kind: input, shape index: {}]
  %s19 = inlined_call_operand.vmem [shape: f32[1,32], index: 19, kind: input, shape index: {}]
  %s20 = inlined_call_operand.hbm [shape: f32[32,32], index: 20, kind: input, shape index: {}]
  %s21 = inlined_call_operand.hbm [shape: f32[32,32], index: 21, kind: input, shape index: {}]
  %s22 = inlined_call_operand.vmem [shape: f32[1,32], index: 22, kind: input, shape index: {}]
  %s23 = inlined_call_operand.hbm [shape: f32[32,32], index: 23, kind: input, shape index: {}]
  %s24 = inlined_call_operand.vmem [shape: f32[1,32], index: 24, kind: input, shape index: {}]
  %s25 = inlined_call_operand.vmem [shape: f32[56,32], index: 25, kind: output, shape index: {0}]
  %s26 = inlined_call_operand.vmem [shape: f32[56,32], index: 26, kind: output, shape index: {1}]
  %s27 = inlined_call_operand.hbm [shape: f32[1,1], index: 27, kind: output, shape index: {2}]
  %s28 = inlined_call_operand.hbm [shape: f32[1,1], index: 28, kind: output, shape index: {3}]
  %29 = xla_tuple %s25, %s26, %s27, %s28
  %s30 = sld [smem:[#allocation0]]
  $region194: #{tpu_custom_call.1} parent=0
    _
  %s32 = ssub.s32 1, %s30
  %s33 = scalar_select 0, %s32, %s30
  $region1: #{tpu_custom_call.1} parent=0
    #allocation6 [shape = 'u8[8192]{0}', space=vmem, size = 0x2000, scoped, tag = 'input window, operand 2, single buffered']
    #allocation7 [shape = 's32[1]{0}', space=sflag, size = 0x4, scoped, tag = 'scoped memory for tpu_custom_call.1']
    #allocation8 [shape = 's32[1]{0}', space=sflag, size = 0x4, scoped, tag = 'scoped memory for tpu_custom_call.1']
    #allocation9 [shape = 'u8[512]{0}', space=vmem, size = 0x400, scoped, tag = 'input window, operand 3, single buffered']
    #allocation10 [shape = 's32[1]{0}', space=sflag, size = 0x4, scoped, tag = 'scoped memory for tpu_custom_call.1']
    #allocation11 [shape = 'u8[16384]{0}', space=vmem, size = 0x4000, scoped, tag = 'input window, operand 4, single buffered']
    #allocation12 [shape = 'u8[512]{0}', space=vmem, size = 0x400, scoped, tag = 'input window, operand 5, single buffered']
    #allocation13 [shape = 's32[1]{0}', space=sflag, size = 0x4, scoped, tag = 'scoped memory for tpu_custom_call.1']
    #allocation14 [shape = 'u8[16384]{0}', space=vmem, size = 0x4000, scoped, tag = 'input window, operand 6, single buffered']
    #allocation15 [shape = 'u8[512]{0}', space=vmem, size = 0x400, scoped, tag = 'input window, operand 7, single buffered']
    #allocation16 [shape = 's32[1]{0}', space=sflag, size = 0x4, scoped, tag = 'scoped memory for tpu_custom_call.1']
    #allocation17 [shape = 'u8[16384]{0}', space=vmem, size = 0x4000, scoped, tag = 'input window, operand 8, single buffered']
    #allocation18 [shape = 'u8[16384]{0}', space=vmem, size = 0x4000, scoped, tag = 'input window, operand 11, single buffered']
    #allocation19 [shape = 's32[1]{0}', space=sflag, size = 0x4, scoped, tag = 'scoped memory for tpu_custom_call.1']
    #allocation20 [shape = 'u8[8192]{0}', space=vmem, size = 0x2000, scoped, tag = 'input window, operand 13, single buffered']
    #allocation21 [shape = 'u8[16384]{0}', space=vmem, size = 0x4000, scoped, tag = 'input window, operand 15, single buffered']
    #allocation22 [shape = 's32[1]{0}', space=sflag, size = 0x4, scoped, tag = 'scoped memory for tpu_custom_call.1']
    #allocation23 [shape = 'u8[16384]{0}', space=vmem, size = 0x4000, scoped, tag = 'input window, operand 16, single buffered']
    #allocation24 [shape = 'u8[16384]{0}', space=vmem, size = 0x4000, scoped, tag = 'input window, operand 18, single buffered']
    #allocation25 [shape = 's32[1]{0}', space=sflag, size = 0x4, scoped, tag = 'scoped memory for tpu_custom_call.1']
    #allocation26 [shape = 'u8[16384]{0}', space=vmem, size = 0x4000, scoped, tag = 'input window, operand 20, single buffered']
    #allocation27 [shape = 'u8[16384]{0}', space=vmem, size = 0x4000, scoped, tag = 'input window, operand 21, single buffered']
    #allocation28 [shape = 's32[1]{0}', space=sflag, size = 0x4, scoped, tag = 'scoped memory for tpu_custom_call.1']
    #allocation29 [shape = 'u8[16384]{0}', space=vmem, size = 0x4000, scoped, tag = 'input window, operand 23, single buffered']
    #allocation30 [shape = 'u8[512]{0}', space=vmem, size = 0x400, scoped, tag = 'output window, operand 2, single buffered']
    #allocation31 [shape = 'u8[512]{0}', space=vmem, size = 0x400, scoped, tag = 'output window, operand 3, single buffered']
    #allocation32 [shape = 's32[1]{0}', space=sflag, size = 0x4, scoped, tag = 'scoped memory for tpu_custom_call.1']
    %34 = vsyncpa [#allocation7], 0
    %35 = vsyncpa [#allocation10], 0
    %36 = vsyncpa [#allocation13], 0
    %37 = vsyncpa [#allocation16], 0
    %38 = vsyncpa [#allocation19], 0
    %39 = vsyncpa [#allocation22], 0
    %40 = vsyncpa [#allocation25], 0
    %41 = vsyncpa [#allocation28], 0
    %42 = vsyncpa [#allocation8], 0
    %43 = vsyncpa [#allocation32], 0
    // Predicated region
    $region2: #{tpu_custom_call.1} parent=1 // pred_check
      _
    $region3: #{tpu_custom_call.1} parent=1 // pred_check_branch
      %45 = sbr.rel (0) target = $region5
    $region4: #{tpu_custom_call.1} parent=1 // pred_region
      _
    $region5: #{tpu_custom_call.1} parent=1 // pred_fallthru
      _
    // Predicated region
    $region6: #{tpu_custom_call.1} parent=1 // pred_check
      _
    $region7: #{tpu_custom_call.1} parent=1 // pred_check_branch
      %47 = sbr.rel (0) target = $region9
    $region8: #{tpu_custom_call.1} parent=1 // pred_region
      _
    $region9: #{tpu_custom_call.1} parent=1 // pred_fallthru
      _
    // Predicated region
    $region10: #{tpu_custom_call.1} parent=1 // pred_check
      _
    $region11: #{tpu_custom_call.1} parent=1 // pred_check_branch
      %49 = sbr.rel (0) target = $region13
    $region12: #{tpu_custom_call.1} parent=1 // pred_region
      %s51 = ssub.s32 256, 256
      %52 = vsyncadd [#allocation7], %s51
      %s53 = sshll.u32 [#allocation6], 4
      %s54 = int_to_ptr.vmem [resolvable:$true] %s53
      %59 = dma.hbm_to_vmem [thread:$0]  %s2, 256, %s54, [#allocation7], 128, 128, 8
    $region13: #{tpu_custom_call.1} parent=1 // pred_fallthru
      _
    // Predicated region
    $region14: #{tpu_custom_call.1} parent=1 // pred_check
      _
    $region15: #{tpu_custom_call.1} parent=1 // pred_check_branch
      %61 = sbr.rel (0) target = $region17
    $region16: #{tpu_custom_call.1} parent=1 // pred_region
      %s63 = ssub.s32 16, 16
      %64 = vsyncadd [#allocation10], %s63
      %s66 = sshll.u32 [#allocation9], 4
      %s67 = int_to_ptr.vmem [resolvable:$true] %s66
      %69 = dma.hbm_to_vmem [thread:$0]  %s3, 16, %s67, [#allocation10]
    $region17: #{tpu_custom_call.1} parent=1 // pred_fallthru
      _
    // Predicated region
    $region18: #{tpu_custom_call.1} parent=1 // pred_check
      _
    $region19: #{tpu_custom_call.1} parent=1 // pred_check_branch
      %71 = sbr.rel (0) target = $region21
    $region20: #{tpu_custom_call.1} parent=1 // pred_region
      %s73 = ssub.s32 512, 512
      %74 = vsyncadd [#allocation10], %s73
      %s75 = sshll.u32 [#allocation11], 4
      %s76 = int_to_ptr.vmem [resolvable:$true] %s75
      %81 = dma.hbm_to_vmem [thread:$0]  %s4, 512, %s76, [#allocation10], 128, 128, 8
    $region21: #{tpu_custom_call.1} parent=1 // pred_fallthru
      _
    // Predicated region
    $region22: #{tpu_custom_call.1} parent=1 // pred_check
      _
    $region23: #{tpu_custom_call.1} parent=1 // pred_check_branch
      %83 = sbr.rel (0) target = $region25
    $region24: #{tpu_custom_call.1} parent=1 // pred_region
      %s85 = ssub.s32 16, 16
      %86 = vsyncadd [#allocation13], %s85
      %s88 = sshll.u32 [#allocation12], 4
      %s89 = int_to_ptr.vmem [resolvable:$true] %s88
      %91 = dma.hbm_to_vmem [thread:$0]  %s5, 16, %s89, [#allocation13]
    $region25: #{tpu_custom_call.1} parent=1 // pred_fallthru
      _
    // Predicated region
    $region26: #{tpu_custom_call.1} parent=1 // pred_check
      _
    $region27: #{tpu_custom_call.1} parent=1 // pred_check_branch
      %93 = sbr.rel (0) target = $region29
    $region28: #{tpu_custom_call.1} parent=1 // pred_region
      %s95 = ssub.s32 512, 512
      %96 = vsyncadd [#allocation13], %s95
      %s97 = sshll.u32 [#allocation14], 4
      %s98 = int_to_ptr.vmem [resolvable:$true] %s97
      %103 = dma.hbm_to_vmem [thread:$0]  %s6, 512, %s98, [#allocation13], 128, 128, 8
    $region29: #{tpu_custom_call.1} parent=1 // pred_fallthru
      _
    // Predicated region
    $region30: #{tpu_custom_call.1} parent=1 // pred_check
      _
    $region31: #{tpu_custom_call.1} parent=1 // pred_check_branch
      %105 = sbr.rel (0) target = $region33
    $region32: #{tpu_custom_call.1} parent=1 // pred_region
      %s107 = ssub.s32 16, 16
      %108 = vsyncadd [#allocation16], %s107
      %s110 = sshll.u32 [#allocation15], 4
      %s111 = int_to_ptr.vmem [resolvable:$true] %s110
      %113 = dma.hbm_to_vmem [thread:$0]  %s7, 16, %s111, [#allocation16]
    $region33: #{tpu_custom_call.1} parent=1 // pred_fallthru
      _
    // Predicated region
    $region34: #{tpu_custom_call.1} parent=1 // pred_check
      _
    $region35: #{tpu_custom_call.1} parent=1 // pred_check_branch
      %115 = sbr.rel (0) target = $region37
    $region36: #{tpu_custom_call.1} parent=1 // pred_region
      %s117 = ssub.s32 512, 512
      %118 = vsyncadd [#allocation16], %s117
      %s119 = sshll.u32 [#allocation17], 4
      %s120 = int_to_ptr.vmem [resolvable:$true] %s119
      %125 = dma.hbm_to_vmem [thread:$0]  %s8, 512, %s120, [#allocation16], 128, 128, 8
    $region37: #{tpu_custom_call.1} parent=1 // pred_fallthru
      _
    // Predicated region
    $region38: #{tpu_custom_call.1} parent=1 // pred_check
      _
    $region39: #{tpu_custom_call.1} parent=1 // pred_check_branch
      %127 = sbr.rel (0) target = $region41
    $region40: #{tpu_custom_call.1} parent=1 // pred_region
      _
    $region41: #{tpu_custom_call.1} parent=1 // pred_fallthru
      _
    // Predicated region
    $region42: #{tpu_custom_call.1} parent=1 // pred_check
      _
    $region43: #{tpu_custom_call.1} parent=1 // pred_check_branch
      %129 = sbr.rel (0) target = $region45
    $region44: #{tpu_custom_call.1} parent=1 // pred_region
      _
    $region45: #{tpu_custom_call.1} parent=1 // pred_fallthru
      _
    // Predicated region
    $region46: #{tpu_custom_call.1} parent=1 // pred_check
      _
    $region47: #{tpu_custom_call.1} parent=1 // pred_check_branch
      %131 = sbr.rel (0) target = $region49
    $region48: #{tpu_custom_call.1} parent=1 // pred_region
      %s133 = ssub.s32 512, 512
      %134 = vsyncadd [#allocation19], %s133
      %s135 = sshll.u32 [#allocation18], 4
      %s136 = int_to_ptr.vmem [resolvable:$true] %s135
      %141 = dma.hbm_to_vmem [thread:$0]  %s11, 512, %s136, [#allocation19], 128, 128, 8
    $region49: #{tpu_custom_call.1} parent=1 // pred_fallthru
      _
    // Predicated region
    $region50: #{tpu_custom_call.1} parent=1 // pred_check
      _
    $region51: #{tpu_custom_call.1} parent=1 // pred_check_branch
      %143 = sbr.rel (0) target = $region53
    $region52: #{tpu_custom_call.1} parent=1 // pred_region
      _
    $region53: #{tpu_custom_call.1} parent=1 // pred_fallthru
      _
    // Predicated region
    $region54: #{tpu_custom_call.1} parent=1 // pred_check
      _
    $region55: #{tpu_custom_call.1} parent=1 // pred_check_branch
      %145 = sbr.rel (0) target = $region57
    $region56: #{tpu_custom_call.1} parent=1 // pred_region
      %s147 = ssub.s32 256, 256
      %148 = vsyncadd [#allocation19], %s147
      %s149 = sshll.u32 [#allocation20], 4
      %s150 = int_to_ptr.vmem [resolvable:$true] %s149
      %155 = dma.hbm_to_vmem [thread:$0]  %s13, 256, %s150, [#allocation19], 128, 128, 8
    $region57: #{tpu_custom_call.1} parent=1 // pred_fallthru
      _
    // Predicated region
    $region58: #{tpu_custom_call.1} parent=1 // pred_check
      _
    $region59: #{tpu_custom_call.1} parent=1 // pred_check_branch
      %157 = sbr.rel (0) target = $region61
    $region60: #{tpu_custom_call.1} parent=1 // pred_region
      _
    $region61: #{tpu_custom_call.1} parent=1 // pred_fallthru
      _
    // Predicated region
    $region62: #{tpu_custom_call.1} parent=1 // pred_check
      _
    $region63: #{tpu_custom_call.1} parent=1 // pred_check_branch
      %159 = sbr.rel (0) target = $region65
    $region64: #{tpu_custom_call.1} parent=1 // pred_region
      %s161 = ssub.s32 512, 512
      %162 = vsyncadd [#allocation22], %s161
      %s163 = sshll.u32 [#allocation21], 4
      %s164 = int_to_ptr.vmem [resolvable:$true] %s163
      %169 = dma.hbm_to_vmem [thread:$0]  %s15, 512, %s164, [#allocation22], 128, 128, 8
    $region65: #{tpu_custom_call.1} parent=1 // pred_fallthru
      _
    // Predicated region
    $region66: #{tpu_custom_call.1} parent=1 // pred_check
      _
    $region67: #{tpu_custom_call.1} parent=1 // pred_check_branch
      %171 = sbr.rel (0) target = $region69
    $region68: #{tpu_custom_call.1} parent=1 // pred_region
      %s173 = ssub.s32 512, 512
      %174 = vsyncadd [#allocation22], %s173
      %s175 = sshll.u32 [#allocation23], 4
      %s176 = int_to_ptr.vmem [resolvable:$true] %s175
      %181 = dma.hbm_to_vmem [thread:$0]  %s16, 512, %s176, [#allocation22], 128, 128, 8
    $region69: #{tpu_custom_call.1} parent=1 // pred_fallthru
      _
    // Predicated region
    $region70: #{tpu_custom_call.1} parent=1 // pred_check
      _
    $region71: #{tpu_custom_call.1} parent=1 // pred_check_branch
      %183 = sbr.rel (0) target = $region73
    $region72: #{tpu_custom_call.1} parent=1 // pred_region
      _
    $region73: #{tpu_custom_call.1} parent=1 // pred_fallthru
      _
    // Predicated region
    $region74: #{tpu_custom_call.1} parent=1 // pred_check
      _
    $region75: #{tpu_custom_call.1} parent=1 // pred_check_branch
      %185 = sbr.rel (0) target = $region77
    $region76: #{tpu_custom_call.1} parent=1 // pred_region
      %s187 = ssub.s32 512, 512
      %188 = vsyncadd [#allocation25], %s187
      %s189 = sshll.u32 [#allocation24], 4
      %s190 = int_to_ptr.vmem [resolvable:$true] %s189
      %195 = dma.hbm_to_vmem [thread:$0]  %s18, 512, %s190, [#allocation25], 128, 128, 8
    $region77: #{tpu_custom_call.1} parent=1 // pred_fallthru
      _
    // Predicated region
    $region78: #{tpu_custom_call.1} parent=1 // pred_check
      _
    $region79: #{tpu_custom_call.1} parent=1 // pred_check_branch
      %197 = sbr.rel (0) target = $region81
    $region80: #{tpu_custom_call.1} parent=1 // pred_region
      _
    $region81: #{tpu_custom_call.1} parent=1 // pred_fallthru
      _
    // Predicated region
    $region82: #{tpu_custom_call.1} parent=1 // pred_check
      _
    $region83: #{tpu_custom_call.1} parent=1 // pred_check_branch
      %199 = sbr.rel (0) target = $region85
    $region84: #{tpu_custom_call.1} parent=1 // pred_region
      %s201 = ssub.s32 512, 512
      %202 = vsyncadd [#allocation25], %s201
      %s203 = sshll.u32 [#allocation26], 4
      %s204 = int_to_ptr.vmem [resolvable:$true] %s203
      %209 = dma.hbm_to_vmem [thread:$0]  %s20, 512, %s204, [#allocation25], 128, 128, 8
    $region85: #{tpu_custom_call.1} parent=1 // pred_fallthru
      _
    // Predicated region
    $region86: #{tpu_custom_call.1} parent=1 // pred_check
      _
    $region87: #{tpu_custom_call.1} parent=1 // pred_check_branch
      %211 = sbr.rel (0) target = $region89
    $region88: #{tpu_custom_call.1} parent=1 // pred_region
      %s213 = ssub.s32 512, 512
      %214 = vsyncadd [#allocation28], %s213
      %s215 = sshll.u32 [#allocation27], 4
      %s216 = int_to_ptr.vmem [resolvable:$true] %s215
      %221 = dma.hbm_to_vmem [thread:$0]  %s21, 512, %s216, [#allocation28], 128, 128, 8
    $region89: #{tpu_custom_call.1} parent=1 // pred_fallthru
      _
    // Predicated region
    $region90: #{tpu_custom_call.1} parent=1 // pred_check
      _
    $region91: #{tpu_custom_call.1} parent=1 // pred_check_branch
      %223 = sbr.rel (0) target = $region93
    $region92: #{tpu_custom_call.1} parent=1 // pred_region
      _
    $region93: #{tpu_custom_call.1} parent=1 // pred_fallthru
      _
    // Predicated region
    $region94: #{tpu_custom_call.1} parent=1 // pred_check
      _
    $region95: #{tpu_custom_call.1} parent=1 // pred_check_branch
      %225 = sbr.rel (0) target = $region97
    $region96: #{tpu_custom_call.1} parent=1 // pred_region
      %s227 = ssub.s32 512, 512
      %228 = vsyncadd [#allocation28], %s227
      %s229 = sshll.u32 [#allocation29], 4
      %s230 = int_to_ptr.vmem [resolvable:$true] %s229
      %235 = dma.hbm_to_vmem [thread:$0]  %s23, 512, %s230, [#allocation28], 128, 128, 8
    $region97: #{tpu_custom_call.1} parent=1 // pred_fallthru
      _
    // Predicated region
    $region98: #{tpu_custom_call.1} parent=1 // pred_check
      _
    $region99: #{tpu_custom_call.1} parent=1 // pred_check_branch
      %237 = sbr.rel (0) target = $region101
    $region100: #{tpu_custom_call.1} parent=1 // pred_region
      _
    $region101: #{tpu_custom_call.1} parent=1 // pred_fallthru
      _
    // Predicated region
    $region102: #{tpu_custom_call.1} parent=1 // pred_check
      _
    $region103: #{tpu_custom_call.1} parent=1 // pred_check_branch
      %239 = sbr.rel (0) target = $region105
    $region104: #{tpu_custom_call.1} parent=1 // pred_region
      %240 = dma.done [#allocation7], 256
    $region105: #{tpu_custom_call.1} parent=1 // pred_fallthru
      _
    // Predicated region
    $region106: #{tpu_custom_call.1} parent=1 // pred_check
      _
    $region107: #{tpu_custom_call.1} parent=1 // pred_check_branch
      %242 = sbr.rel (0) target = $region109
    $region108: #{tpu_custom_call.1} parent=1 // pred_region
      %243 = dma.done [#allocation10], 16
    $region109: #{tpu_custom_call.1} parent=1 // pred_fallthru
      _
    // Predicated region
    $region110: #{tpu_custom_call.1} parent=1 // pred_check
      _
    $region111: #{tpu_custom_call.1} parent=1 // pred_check_branch
      %245 = sbr.rel (0) target = $region113
    $region112: #{tpu_custom_call.1} parent=1 // pred_region
      %246 = dma.done [#allocation10], 512
    $region113: #{tpu_custom_call.1} parent=1 // pred_fallthru
      _
    // Predicated region
    $region114: #{tpu_custom_call.1} parent=1 // pred_check
      _
    $region115: #{tpu_custom_call.1} parent=1 // pred_check_branch
      %248 = sbr.rel (0) target = $region117
    $region116: #{tpu_custom_call.1} parent=1 // pred_region
      %249 = dma.done [#allocation13], 16
    $region117: #{tpu_custom_call.1} parent=1 // pred_fallthru
      _
    // Predicated region
    $region118: #{tpu_custom_call.1} parent=1 // pred_check
      _
    $region119: #{tpu_custom_call.1} parent=1 // pred_check_branch
      %251 = sbr.rel (0) target = $region121
    $region120: #{tpu_custom_call.1} parent=1 // pred_region
      %252 = dma.done [#allocation13], 512
    $region121: #{tpu_custom_call.1} parent=1 // pred_fallthru
      _
    // Predicated region
    $region122: #{tpu_custom_call.1} parent=1 // pred_check
      _
    $region123: #{tpu_custom_call.1} parent=1 // pred_check_branch
      %254 = sbr.rel (0) target = $region125
    $region124: #{tpu_custom_call.1} parent=1 // pred_region
      %255 = dma.done [#allocation16], 16
    $region125: #{tpu_custom_call.1} parent=1 // pred_fallthru
      _
    // Predicated region
    $region126: #{tpu_custom_call.1} parent=1 // pred_check
      _
    $region127: #{tpu_custom_call.1} parent=1 // pred_check_branch
      %257 = sbr.rel (0) target = $region129
    $region128: #{tpu_custom_call.1} parent=1 // pred_region
      %258 = dma.done [#allocation16], 512
    $region129: #{tpu_custom_call.1} parent=1 // pred_fallthru
      _
    // Predicated region
    $region130: #{tpu_custom_call.1} parent=1 // pred_check
      _
    $region131: #{tpu_custom_call.1} parent=1 // pred_check_branch
      %260 = sbr.rel (0) target = $region133
    $region132: #{tpu_custom_call.1} parent=1 // pred_region
      %261 = dma.done [#allocation19], 512
    $region133: #{tpu_custom_call.1} parent=1 // pred_fallthru
      _
    // Predicated region
    $region134: #{tpu_custom_call.1} parent=1 // pred_check
      _
    $region135: #{tpu_custom_call.1} parent=1 // pred_check_branch
      %263 = sbr.rel (0) target = $region137
    $region136: #{tpu_custom_call.1} parent=1 // pred_region
      %264 = dma.done [#allocation19], 256
    $region137: #{tpu_custom_call.1} parent=1 // pred_fallthru
      _
    // Predicated region
    $region138: #{tpu_custom_call.1} parent=1 // pred_check
      _
    $region139: #{tpu_custom_call.1} parent=1 // pred_check_branch
      %266 = sbr.rel (0) target = $region141
    $region140: #{tpu_custom_call.1} parent=1 // pred_region
      %267 = dma.done [#allocation22], 512
    $region141: #{tpu_custom_call.1} parent=1 // pred_fallthru
      _
    // Predicated region
    $region142: #{tpu_custom_call.1} parent=1 // pred_check
      _
    $region143: #{tpu_custom_call.1} parent=1 // pred_check_branch
      %269 = sbr.rel (0) target = $region145
    $region144: #{tpu_custom_call.1} parent=1 // pred_region
      %270 = dma.done [#allocation22], 512
    $region145: #{tpu_custom_call.1} parent=1 // pred_fallthru
      _
    // Predicated region
    $region146: #{tpu_custom_call.1} parent=1 // pred_check
      _
    $region147: #{tpu_custom_call.1} parent=1 // pred_check_branch
      %272 = sbr.rel (0) target = $region149
    $region148: #{tpu_custom_call.1} parent=1 // pred_region
      %273 = dma.done [#allocation25], 512
    $region149: #{tpu_custom_call.1} parent=1 // pred_fallthru
      _
    // Predicated region
    $region150: #{tpu_custom_call.1} parent=1 // pred_check
      _
    $region151: #{tpu_custom_call.1} parent=1 // pred_check_branch
      %275 = sbr.rel (0) target = $region153
    $region152: #{tpu_custom_call.1} parent=1 // pred_region
      %276 = dma.done [#allocation25], 512
    $region153: #{tpu_custom_call.1} parent=1 // pred_fallthru
      _
    // Predicated region
    $region154: #{tpu_custom_call.1} parent=1 // pred_check
      _
    $region155: #{tpu_custom_call.1} parent=1 // pred_check_branch
      %278 = sbr.rel (0) target = $region157
    $region156: #{tpu_custom_call.1} parent=1 // pred_region
      %279 = dma.done [#allocation28], 512
    $region157: #{tpu_custom_call.1} parent=1 // pred_fallthru
      _
    // Predicated region
    $region158: #{tpu_custom_call.1} parent=1 // pred_check
      _
    $region159: #{tpu_custom_call.1} parent=1 // pred_check_branch
      %281 = sbr.rel (0) target = $region161
    $region160: #{tpu_custom_call.1} parent=1 // pred_region
      %282 = dma.done [#allocation28], 512
    $region161: #{tpu_custom_call.1} parent=1 // pred_fallthru
      _
    %v283 = vld [vmem:[%s0] sm:$0xff]
    %v284 = vld [vmem:[%s0 + $0x8] sm:$0xff]
    %v285 = vld [vmem:[%s0 + $0x10] sm:$0xff]
    %v286 = vld [vmem:[%s0 + $0x18] sm:$0xff]
    %v287 = vld [vmem:[%s0 + $0x20] sm:$0xff]
    %v288 = vld [vmem:[%s0 + $0x28] sm:$0xff]
    %v289 = vld [vmem:[%s0 + $0x30] sm:$0xff]
    %v290 = vld [vmem:[#allocation6] sm:$0xff]
    %v291 = vld [vmem:[#allocation6 + $0x8] sm:$0xff]
    %v292 = vld [vmem:[#allocation9] sm:$0x1]
    %v294 = vlaneseq
    %v295 = vshrl.u32 %v294, 7
    %v296 = vsub.s32 0, %v295
    %v297 = vrot.slane %v292, %v296
    %vm299 = vcmask 130048
    %v301 = vsel %vm299, %v283, 0
    %v304 = vsel %vm299, %v284, 0
    %v307 = vsel %vm299, %v285, 0
    %v310 = vsel %vm299, %v286, 0
    %v313 = vsel %vm299, %v287, 0
    %v316 = vsel %vm299, %v288, 0
    %v319 = vsel %vm299, %v289, 0
    %321 = vmatprep.subr.mxu0 0.0
    %322 = vmatpush1.msra.mxu0 0.0
    %323 = vmatprep.subr.mxu0 0.0
    %324 = vmatpush1.msra.mxu0 0.0
    %325 = vmatprep.subr.mxu0 0.0
    %326 = vmatpush1.msra.mxu0 0.0
    %327 = vmatprep.subr.mxu0 0.0
    %328 = vmatpush1.msra.mxu0 0.0
    %329 = vmatprep.subr.mxu0 0.0
    %330 = vmatpush1.msra.mxu0 0.0
    %331 = vmatprep.subr.mxu0 0.0
    %332 = vmatpush1.msra.mxu0 0.0
    %333 = vmatprep.subr.mxu0 0.0
    %334 = vmatpush1.msra.mxu0 0.0
    %335 = vmatprep.subr.mxu0 0.0
    %336 = vmatpush1.msra.mxu0 0.0
    %337 = vmatprep.subr.mxu0 0.0
    %338 = vmatpush1.msra.mxu0 0.0
    %339 = vmatprep.subr.mxu0 0.0
    %340 = vmatpush1.msra.mxu0 0.0
    %341 = vmatprep.subr.mxu0 0.0
    %342 = vmatpush1.msra.mxu0 0.0
    %343 = vmatprep.subr.mxu0 0.0
    %344 = vmatpush1.msra.mxu0 0.0
    %345 = vmatprep.subr.mxu0 0.0
    %346 = vmatpush1.msra.mxu0 0.0
    %347 = vmatprep.subr.mxu0 0.0
    %348 = vmatpush1.msra.mxu0 0.0
    %349 = vmatprep.subr.mxu0 0.0
    %350 = vmatpush1.msra.mxu0 %v291
    %351 = vmatprep.subr.mxu0 0.0
    %352 = vmatpush1.msra.mxu0 %v290
    %353 = vmatprep.subr.mxu0 0.0
    %354 = vmatpush2.msra.mxu0 0.0
    %355 = vmatprep.subr.mxu0 0.0
    %356 = vmatpush2.msra.mxu0 0.0
    %357 = vmatprep.subr.mxu0 0.0
    %358 = vmatpush2.msra.mxu0 0.0
    %359 = vmatprep.subr.mxu0 0.0
    %360 = vmatpush2.msra.mxu0 0.0
    %361 = vmatprep.subr.mxu0 0.0
    %362 = vmatpush2.msra.mxu0 0.0
    %363 = vmatprep.subr.mxu0 0.0
    %364 = vmatpush2.msra.mxu0 0.0
    %365 = vmatprep.subr.mxu0 0.0
    %366 = vmatpush2.msra.mxu0 0.0
    %367 = vmatprep.subr.mxu0 0.0
    %368 = vmatpush2.msra.mxu0 0.0
    %369 = vmatprep.subr.mxu0 0.0
    %370 = vmatpush2.msra.mxu0 0.0
    %371 = vmatprep.subr.mxu0 0.0
    %372 = vmatpush2.msra.mxu0 0.0
    %373 = vmatprep.subr.mxu0 0.0
    %374 = vmatpush2.msra.mxu0 0.0
    %375 = vmatprep.subr.mxu0 0.0
    %376 = vmatpush2.msra.mxu0 0.0
    %377 = vmatprep.subr.mxu0 0.0
    %378 = vmatpush2.msra.mxu0 0.0
    %379 = vmatprep.subr.mxu0 0.0
    %380 = vmatpush2.msra.mxu0 0.0
    %381 = vmatprep.subr.mxu0 0.0
    %382 = vmatpush2.msra.mxu0 0.0
    %383 = vmatprep.subr.mxu0 0.0
    %384 = vmatpush2.msra.mxu0 0.0
    %385 = vmatprep.mubr.f32.mxu0 0.0
    %386 = vmatmul.mubr.f32.gmra.mxu0 %v301
    %v387 = vpop.f32.mrf.mxu0
    %v388 = vadd.f32 %v297, %v387
    %v389 = vpop.f32.mrf.mxu0
    %390 = vmatprep.mubr.f32.mxu0 0.0
    %391 = vmatmul.mubr.f32.gmra.mxu0 %v304
    %v392 = vpop.f32.mrf.mxu0
    %v393 = vadd.f32 %v297, %v392
    %v394 = vpop.f32.mrf.mxu0
    %395 = vmatprep.mubr.f32.mxu0 0.0
    %396 = vmatmul.mubr.f32.gmra.mxu0 %v307
    %v397 = vpop.f32.mrf.mxu0
    %v398 = vadd.f32 %v297, %v397
    %v399 = vpop.f32.mrf.mxu0
    %400 = vmatprep.mubr.f32.mxu0 0.0
    %401 = vmatmul.mubr.f32.gmra.mxu0 %v310
    %v402 = vpop.f32.mrf.mxu0
    %v403 = vadd.f32 %v297, %v402
    %v404 = vpop.f32.mrf.mxu0
    %405 = vmatprep.mubr.f32.mxu0 0.0
    %406 = vmatmul.mubr.f32.gmra.mxu0 %v313
    %v407 = vpop.f32.mrf.mxu0
    %v408 = vadd.f32 %v297, %v407
    %v409 = vpop.f32.mrf.mxu0
    %410 = vmatprep.mubr.f32.mxu0 0.0
    %411 = vmatmul.mubr.f32.gmra.mxu0 %v316
    %v412 = vpop.f32.mrf.mxu0
    %v413 = vadd.f32 %v297, %v412
    %v414 = vpop.f32.mrf.mxu0
    %415 = vmatprep.mubr.f32.mxu0 0.0
    %416 = vmatmul.mubr.f32.gmra.mxu0 %v319
    %v417 = vpop.f32.mrf.mxu0
    %v418 = vadd.f32 %v297, %v417
    %v419 = vpop.f32.mrf.mxu0
    %420 = vdwg.mxu0
    %v421 = vmax.f32 %v388, 0.0
    %v422 = vmax.f32 %v393, 0.0
    %v423 = vmax.f32 %v398, 0.0
    %v424 = vmax.f32 %v403, 0.0
    %v425 = vmax.f32 %v408, 0.0
    %v426 = vmax.f32 %v413, 0.0
    %v427 = vmax.f32 %v418, 0.0
    %v428 = vld [vmem:[#allocation11] sm:$0xff]
    %v429 = vld [vmem:[#allocation11 + $0x8] sm:$0xff]
    %v430 = vld [vmem:[#allocation11 + $0x10] sm:$0xff]
    %v431 = vld [vmem:[#allocation11 + $0x18] sm:$0xff]
    %v432 = vld [vmem:[#allocation12] sm:$0x1]
    %v434 = vlaneseq
    %v435 = vshrl.u32 %v434, 7
    %v436 = vsub.s32 0, %v435
    %v437 = vrot.slane %v432, %v436
    %vm439 = vcmask 261120
    %v441 = vsel %vm439, %v421, 0
    %v444 = vsel %vm439, %v422, 0
    %v447 = vsel %vm439, %v423, 0
    %v450 = vsel %vm439, %v424, 0
    %v453 = vsel %vm439, %v425, 0
    %v456 = vsel %vm439, %v426, 0
    %v459 = vsel %vm439, %v427, 0
    %461 = vmatprep.subr.mxu0 0.0
    %462 = vmatpush1.msra.mxu0 0.0
    %463 = vmatprep.subr.mxu0 0.0
    %464 = vmatpush1.msra.mxu0 0.0
    %465 = vmatprep.subr.mxu0 0.0
    %466 = vmatpush1.msra.mxu0 0.0
    %467 = vmatprep.subr.mxu0 0.0
    %468 = vmatpush1.msra.mxu0 0.0
    %469 = vmatprep.subr.mxu0 0.0
    %470 = vmatpush1.msra.mxu0 0.0
    %471 = vmatprep.subr.mxu0 0.0
    %472 = vmatpush1.msra.mxu0 0.0
    %473 = vmatprep.subr.mxu0 0.0
    %474 = vmatpush1.msra.mxu0 0.0
    %475 = vmatprep.subr.mxu0 0.0
    %476 = vmatpush1.msra.mxu0 0.0
    %477 = vmatprep.subr.mxu0 0.0
    %478 = vmatpush1.msra.mxu0 0.0
    %479 = vmatprep.subr.mxu0 0.0
    %480 = vmatpush1.msra.mxu0 0.0
    %481 = vmatprep.subr.mxu0 0.0
    %482 = vmatpush1.msra.mxu0 0.0
    %483 = vmatprep.subr.mxu0 0.0
    %484 = vmatpush1.msra.mxu0 0.0
    %485 = vmatprep.subr.mxu0 0.0
    %486 = vmatpush1.msra.mxu0 %v431
    %487 = vmatprep.subr.mxu0 0.0
    %488 = vmatpush1.msra.mxu0 %v430
    %489 = vmatprep.subr.mxu0 0.0
    %490 = vmatpush1.msra.mxu0 %v429
    %491 = vmatprep.subr.mxu0 0.0
    %492 = vmatpush1.msra.mxu0 %v428
    %493 = vmatprep.subr.mxu0 0.0
    %494 = vmatpush2.msra.mxu0 0.0
    %495 = vmatprep.subr.mxu0 0.0
    %496 = vmatpush2.msra.mxu0 0.0
    %497 = vmatprep.subr.mxu0 0.0
    %498 = vmatpush2.msra.mxu0 0.0
    %499 = vmatprep.subr.mxu0 0.0
    %500 = vmatpush2.msra.mxu0 0.0
    %501 = vmatprep.subr.mxu0 0.0
    %502 = vmatpush2.msra.mxu0 0.0
    %503 = vmatprep.subr.mxu0 0.0
    %504 = vmatpush2.msra.mxu0 0.0
    %505 = vmatprep.subr.mxu0 0.0
    %506 = vmatpush2.msra.mxu0 0.0
    %507 = vmatprep.subr.mxu0 0.0
    %508 = vmatpush2.msra.mxu0 0.0
    %509 = vmatprep.subr.mxu0 0.0
    %510 = vmatpush2.msra.mxu0 0.0
    %511 = vmatprep.subr.mxu0 0.0
    %512 = vmatpush2.msra.mxu0 0.0
    %513 = vmatprep.subr.mxu0 0.0
    %514 = vmatpush2.msra.mxu0 0.0
    %515 = vmatprep.subr.mxu0 0.0
    %516 = vmatpush2.msra.mxu0 0.0
    %517 = vmatprep.subr.mxu0 0.0
    %518 = vmatpush2.msra.mxu0 0.0
    %519 = vmatprep.subr.mxu0 0.0
    %520 = vmatpush2.msra.mxu0 0.0
    %521 = vmatprep.subr.mxu0 0.0
    %522 = vmatpush2.msra.mxu0 0.0
    %523 = vmatprep.subr.mxu0 0.0
    %524 = vmatpush2.msra.mxu0 0.0
    %525 = vmatprep.mubr.f32.mxu0 0.0
    %526 = vmatmul.mubr.f32.gmra.mxu0 %v441
    %v527 = vpop.f32.mrf.mxu0
    %v528 = vadd.f32 %v437, %v527
    %v529 = vpop.f32.mrf.mxu0
    %530 = vmatprep.mubr.f32.mxu0 0.0
    %531 = vmatmul.mubr.f32.gmra.mxu0 %v444
    %v532 = vpop.f32.mrf.mxu0
    %v533 = vadd.f32 %v437, %v532
    %v534 = vpop.f32.mrf.mxu0
    %535 = vmatprep.mubr.f32.mxu0 0.0
    %536 = vmatmul.mubr.f32.gmra.mxu0 %v447
    %v537 = vpop.f32.mrf.mxu0
    %v538 = vadd.f32 %v437, %v537
    %v539 = vpop.f32.mrf.mxu0
    %540 = vmatprep.mubr.f32.mxu0 0.0
    %541 = vmatmul.mubr.f32.gmra.mxu0 %v450
    %v542 = vpop.f32.mrf.mxu0
    %v543 = vadd.f32 %v437, %v542
    %v544 = vpop.f32.mrf.mxu0
    %545 = vmatprep.mubr.f32.mxu0 0.0
    %546 = vmatmul.mubr.f32.gmra.mxu0 %v453
    %v547 = vpop.f32.mrf.mxu0
    %v548 = vadd.f32 %v437, %v547
    %v549 = vpop.f32.mrf.mxu0
    %550 = vmatprep.mubr.f32.mxu0 0.0
    %551 = vmatmul.mubr.f32.gmra.mxu0 %v456
    %v552 = vpop.f32.mrf.mxu0
    %v553 = vadd.f32 %v437, %v552
    %v554 = vpop.f32.mrf.mxu0
    %555 = vmatprep.mubr.f32.mxu0 0.0
    %556 = vmatmul.mubr.f32.gmra.mxu0 %v459
    %v557 = vpop.f32.mrf.mxu0
    %v558 = vadd.f32 %v437, %v557
    %v559 = vpop.f32.mrf.mxu0
    %560 = vdwg.mxu0
    %v561 = vmax.f32 %v528, 0.0
    %v562 = vmax.f32 %v533, 0.0
    %v563 = vmax.f32 %v538, 0.0
    %v564 = vmax.f32 %v543, 0.0
    %v565 = vmax.f32 %v548, 0.0
    %v566 = vmax.f32 %v553, 0.0
    %v567 = vmax.f32 %v558, 0.0
    %v568 = vld [vmem:[#allocation14] sm:$0xff]
    %v569 = vld [vmem:[#allocation14 + $0x8] sm:$0xff]
    %v570 = vld [vmem:[#allocation14 + $0x10] sm:$0xff]
    %v571 = vld [vmem:[#allocation14 + $0x18] sm:$0xff]
    %v572 = vld [vmem:[#allocation15] sm:$0x1]
    %v574 = vlaneseq
    %v575 = vshrl.u32 %v574, 7
    %v576 = vsub.s32 0, %v575
    %v577 = vrot.slane %v572, %v576
    %v580 = vsel %vm439, %v561, 0
    %v583 = vsel %vm439, %v562, 0
    %v586 = vsel %vm439, %v563, 0
    %v589 = vsel %vm439, %v564, 0
    %v592 = vsel %vm439, %v565, 0
    %v595 = vsel %vm439, %v566, 0
    %v598 = vsel %vm439, %v567, 0
    %600 = vmatprep.subr.mxu0 0.0
    %601 = vmatpush1.msra.mxu0 0.0
    %602 = vmatprep.subr.mxu0 0.0
    %603 = vmatpush1.msra.mxu0 0.0
    %604 = vmatprep.subr.mxu0 0.0
    %605 = vmatpush1.msra.mxu0 0.0
    %606 = vmatprep.subr.mxu0 0.0
    %607 = vmatpush1.msra.mxu0 0.0
    %608 = vmatprep.subr.mxu0 0.0
    %609 = vmatpush1.msra.mxu0 0.0
    %610 = vmatprep.subr.mxu0 0.0
    %611 = vmatpush1.msra.mxu0 0.0
    %612 = vmatprep.subr.mxu0 0.0
    %613 = vmatpush1.msra.mxu0 0.0
    %614 = vmatprep.subr.mxu0 0.0
    %615 = vmatpush1.msra.mxu0 0.0
    %616 = vmatprep.subr.mxu0 0.0
    %617 = vmatpush1.msra.mxu0 0.0
    %618 = vmatprep.subr.mxu0 0.0
    %619 = vmatpush1.msra.mxu0 0.0
    %620 = vmatprep.subr.mxu0 0.0
    %621 = vmatpush1.msra.mxu0 0.0
    %622 = vmatprep.subr.mxu0 0.0
    %623 = vmatpush1.msra.mxu0 0.0
    %624 = vmatprep.subr.mxu0 0.0
    %625 = vmatpush1.msra.mxu0 %v571
    %626 = vmatprep.subr.mxu0 0.0
    %627 = vmatpush1.msra.mxu0 %v570
    %628 = vmatprep.subr.mxu0 0.0
    %629 = vmatpush1.msra.mxu0 %v569
    %630 = vmatprep.subr.mxu0 0.0
    %631 = vmatpush1.msra.mxu0 %v568
    %632 = vmatprep.subr.mxu0 0.0
    %633 = vmatpush2.msra.mxu0 0.0
    %634 = vmatprep.subr.mxu0 0.0
    %635 = vmatpush2.msra.mxu0 0.0
    %636 = vmatprep.subr.mxu0 0.0
    %637 = vmatpush2.msra.mxu0 0.0
    %638 = vmatprep.subr.mxu0 0.0
    %639 = vmatpush2.msra.mxu0 0.0
    %640 = vmatprep.subr.mxu0 0.0
    %641 = vmatpush2.msra.mxu0 0.0
    %642 = vmatprep.subr.mxu0 0.0
    %643 = vmatpush2.msra.mxu0 0.0
    %644 = vmatprep.subr.mxu0 0.0
    %645 = vmatpush2.msra.mxu0 0.0
    %646 = vmatprep.subr.mxu0 0.0
    %647 = vmatpush2.msra.mxu0 0.0
    %648 = vmatprep.subr.mxu0 0.0
    %649 = vmatpush2.msra.mxu0 0.0
    %650 = vmatprep.subr.mxu0 0.0
    %651 = vmatpush2.msra.mxu0 0.0
    %652 = vmatprep.subr.mxu0 0.0
    %653 = vmatpush2.msra.mxu0 0.0
    %654 = vmatprep.subr.mxu0 0.0
    %655 = vmatpush2.msra.mxu0 0.0
    %656 = vmatprep.subr.mxu0 0.0
    %657 = vmatpush2.msra.mxu0 0.0
    %658 = vmatprep.subr.mxu0 0.0
    %659 = vmatpush2.msra.mxu0 0.0
    %660 = vmatprep.subr.mxu0 0.0
    %661 = vmatpush2.msra.mxu0 0.0
    %662 = vmatprep.subr.mxu0 0.0
    %663 = vmatpush2.msra.mxu0 0.0
    %664 = vmatprep.mubr.f32.mxu0 0.0
    %665 = vmatmul.mubr.f32.gmra.mxu0 %v580
    %v666 = vpop.f32.mrf.mxu0
    %v667 = vadd.f32 %v577, %v666
    %v668 = vpop.f32.mrf.mxu0
    %669 = vmatprep.mubr.f32.mxu0 0.0
    %670 = vmatmul.mubr.f32.gmra.mxu0 %v583
    %v671 = vpop.f32.mrf.mxu0
    %v672 = vadd.f32 %v577, %v671
    %v673 = vpop.f32.mrf.mxu0
    %674 = vmatprep.mubr.f32.mxu0 0.0
    %675 = vmatmul.mubr.f32.gmra.mxu0 %v586
    %v676 = vpop.f32.mrf.mxu0
    %v677 = vadd.f32 %v577, %v676
    %v678 = vpop.f32.mrf.mxu0
    %679 = vmatprep.mubr.f32.mxu0 0.0
    %680 = vmatmul.mubr.f32.gmra.mxu0 %v589
    %v681 = vpop.f32.mrf.mxu0
    %v682 = vadd.f32 %v577, %v681
    %v683 = vpop.f32.mrf.mxu0
    %684 = vmatprep.mubr.f32.mxu0 0.0
    %685 = vmatmul.mubr.f32.gmra.mxu0 %v592
    %v686 = vpop.f32.mrf.mxu0
    %v687 = vadd.f32 %v577, %v686
    %v688 = vpop.f32.mrf.mxu0
    %689 = vmatprep.mubr.f32.mxu0 0.0
    %690 = vmatmul.mubr.f32.gmra.mxu0 %v595
    %v691 = vpop.f32.mrf.mxu0
    %v692 = vadd.f32 %v577, %v691
    %v693 = vpop.f32.mrf.mxu0
    %694 = vmatprep.mubr.f32.mxu0 0.0
    %695 = vmatmul.mubr.f32.gmra.mxu0 %v598
    %v696 = vpop.f32.mrf.mxu0
    %v697 = vadd.f32 %v577, %v696
    %v698 = vpop.f32.mrf.mxu0
    %699 = vdwg.mxu0
    %700 = vst.msk [vmem:[#allocation2] sm:$0xff] %vm439, %v667
    %701 = vst.msk [vmem:[#allocation2 + $0x8] sm:$0xff] %vm439, %v672
    %702 = vst.msk [vmem:[#allocation2 + $0x10] sm:$0xff] %vm439, %v677
    %703 = vst.msk [vmem:[#allocation2 + $0x18] sm:$0xff] %vm439, %v682
    %704 = vst.msk [vmem:[#allocation2 + $0x20] sm:$0xff] %vm439, %v687
    %705 = vst.msk [vmem:[#allocation2 + $0x28] sm:$0xff] %vm439, %v692
    %706 = vst.msk [vmem:[#allocation2 + $0x30] sm:$0xff] %vm439, %v697
    %714 = vrot.lane.b32.xlu0 %v667, 96
    %v715 = vpop.permute.xlu0 %714
    %716 = vrot.lane.b32.xlu0 %v672, 96
    %v717 = vpop.permute.xlu0 %716
    %718 = vrot.lane.b32.xlu0 %v677, 96
    %v719 = vpop.permute.xlu0 %718
    %720 = vrot.lane.b32.xlu0 %v682, 96
    %v721 = vpop.permute.xlu0 %720
    %722 = vrot.lane.b32.xlu0 %v687, 96
    %v723 = vpop.permute.xlu0 %722
    %724 = vrot.lane.b32.xlu0 %v692, 96
    %v725 = vpop.permute.xlu0 %724
    %726 = vrot.lane.b32.xlu0 %v697, 96
    %v727 = vpop.permute.xlu0 %726
    %vm735 = vcmask 785408
    %736 = vst.msk [vmem:[#allocation3] sm:$0xff] %vm735, %v715
    %737 = vst.msk [vmem:[#allocation3 + $0x8] sm:$0xff] %vm735, %v717
    %738 = vst.msk [vmem:[#allocation3 + $0x10] sm:$0xff] %vm735, %v719
    %739 = vst.msk [vmem:[#allocation3 + $0x18] sm:$0xff] %vm735, %v721
    %740 = vst.msk [vmem:[#allocation3 + $0x20] sm:$0xff] %vm735, %v723
    %741 = vst.msk [vmem:[#allocation3 + $0x28] sm:$0xff] %vm735, %v725
    %742 = vst.msk [vmem:[#allocation3 + $0x30] sm:$0xff] %vm735, %v727
    %v743 = vld [vmem:[#allocation17] sm:$0xff]
    %v744 = vld [vmem:[#allocation17 + $0x8] sm:$0xff]
    %v745 = vld [vmem:[#allocation17 + $0x10] sm:$0xff]
    %v746 = vld [vmem:[#allocation17 + $0x18] sm:$0xff]
    %v747 = vld [vmem:[%s9] sm:$0xff]
    %v748 = vld [vmem:[%s9 + $0x8] sm:$0xff]
    %v749 = vld [vmem:[%s9 + $0x10] sm:$0xff]
    %v750 = vld [vmem:[%s9 + $0x18] sm:$0xff]
    %v751 = vld [vmem:[%s10] sm:$0x1]
    %v753 = vlaneseq
    %v754 = vshrl.u32 %v753, 7
    %v755 = vsub.s32 0, %v754
    %v756 = vrot.slane %v751, %v755
    %v758 = vld [vmem:[#allocation18] sm:$0xff]
    %v759 = vld [vmem:[#allocation18 + $0x8] sm:$0xff]
    %v760 = vld [vmem:[#allocation18 + $0x10] sm:$0xff]
    %v761 = vld [vmem:[#allocation18 + $0x18] sm:$0xff]
    %v762 = vld [vmem:[%s12] sm:$0x1]
    %v764 = vlaneseq
    %v765 = vshrl.u32 %v764, 7
    %v766 = vsub.s32 0, %v765
    %v767 = vrot.slane %v762, %v766
    %v769 = vld [vmem:[#allocation20] sm:$0xff]
    %v770 = vld [vmem:[#allocation20 + $0x8] sm:$0xff]
    %v771 = vld [vmem:[%s14] sm:$0x1]
    %v773 = vlaneseq
    %v774 = vshrl.u32 %v773, 7
    %v775 = vsub.s32 0, %v774
    %v776 = vrot.slane %v771, %v775
    %v778 = vld [vmem:[#allocation21] sm:$0xff]
    %v779 = vld [vmem:[#allocation21 + $0x8] sm:$0xff]
    %v780 = vld [vmem:[#allocation21 + $0x10] sm:$0xff]
    %v781 = vld [vmem:[#allocation21 + $0x18] sm:$0xff]
    %v782 = vlaneseq
    %v783 = vand.u32 %v782, 127
    %vm784 = vcmp.lt.s32.totalorder %v783, 16
    %v785 = vld [vmem:[#allocation2] sm:$0xff]
    %v786 = vld [vmem:[#allocation3] sm:$0xff]
    %v787 = vld [vmem:[%s1] sm:$0xff]
    %v789 = vsel %vm439, 0.0, 0
    %791 = vmatprep.subr.mxu0 0.0
    %792 = vmatpush1.msra.mxu0 0.0
    %793 = vmatprep.subr.mxu0 0.0
    %794 = vmatpush1.msra.mxu0 0.0
    %795 = vmatprep.subr.mxu0 0.0
    %796 = vmatpush1.msra.mxu0 0.0
    %797 = vmatprep.subr.mxu0 0.0
    %798 = vmatpush1.msra.mxu0 0.0
    %799 = vmatprep.subr.mxu0 0.0
    %800 = vmatpush1.msra.mxu0 0.0
    %801 = vmatprep.subr.mxu0 0.0
    %802 = vmatpush1.msra.mxu0 0.0
    %803 = vmatprep.subr.mxu0 0.0
    %804 = vmatpush1.msra.mxu0 0.0
    %805 = vmatprep.subr.mxu0 0.0
    %806 = vmatpush1.msra.mxu0 0.0
    %807 = vmatprep.subr.mxu0 0.0
    %808 = vmatpush1.msra.mxu0 0.0
    %809 = vmatprep.subr.mxu0 0.0
    %810 = vmatpush1.msra.mxu0 0.0
    %811 = vmatprep.subr.mxu0 0.0
    %812 = vmatpush1.msra.mxu0 0.0
    %813 = vmatprep.subr.mxu0 0.0
    %814 = vmatpush1.msra.mxu0 0.0
    %815 = vmatprep.subr.mxu0 0.0
    %816 = vmatpush1.msra.mxu0 %v746
    %817 = vmatprep.subr.mxu0 0.0
    %818 = vmatpush1.msra.mxu0 %v745
    %819 = vmatprep.subr.mxu0 0.0
    %820 = vmatpush1.msra.mxu0 %v744
    %821 = vmatprep.subr.mxu0 0.0
    %822 = vmatpush1.msra.mxu0 %v743
    %823 = vmatprep.subr.mxu0 0.0
    %824 = vmatpush2.msra.mxu0 0.0
    %825 = vmatprep.subr.mxu0 0.0
    %826 = vmatpush2.msra.mxu0 0.0
    %827 = vmatprep.subr.mxu0 0.0
    %828 = vmatpush2.msra.mxu0 0.0
    %829 = vmatprep.subr.mxu0 0.0
    %830 = vmatpush2.msra.mxu0 0.0
    %831 = vmatprep.subr.mxu0 0.0
    %832 = vmatpush2.msra.mxu0 0.0
    %833 = vmatprep.subr.mxu0 0.0
    %834 = vmatpush2.msra.mxu0 0.0
    %835 = vmatprep.subr.mxu0 0.0
    %836 = vmatpush2.msra.mxu0 0.0
    %837 = vmatprep.subr.mxu0 0.0
    %838 = vmatpush2.msra.mxu0 0.0
    %839 = vmatprep.subr.mxu0 0.0
    %840 = vmatpush2.msra.mxu0 0.0
    %841 = vmatprep.subr.mxu0 0.0
    %842 = vmatpush2.msra.mxu0 0.0
    %843 = vmatprep.subr.mxu0 0.0
    %844 = vmatpush2.msra.mxu0 0.0
    %845 = vmatprep.subr.mxu0 0.0
    %846 = vmatpush2.msra.mxu0 0.0
    %847 = vmatprep.subr.mxu0 0.0
    %848 = vmatpush2.msra.mxu0 0.0
    %849 = vmatprep.subr.mxu0 0.0
    %850 = vmatpush2.msra.mxu0 0.0
    %851 = vmatprep.subr.mxu0 0.0
    %852 = vmatpush2.msra.mxu0 0.0
    %853 = vmatprep.subr.mxu0 0.0
    %854 = vmatpush2.msra.mxu0 0.0
    %855 = vmatprep.mubr.f32.mxu0 0.0
    %856 = vmatmul.mubr.f32.gmra.mxu0 %v789
    %v857 = vpop.f32.mrf.mxu0
    %v858 = vadd.f32 0.0, %v857
    %v859 = vpop.f32.mrf.mxu0
    %860 = vdwg.mxu0
    %v861 = vadd.f32 %v785, %v858
    %v862 = vmax.f32 %v861, 0.0
    %v864 = vsel %vm439, %v862, 0
    %866 = vmatprep.subr.mxu0 0.0
    %867 = vmatpush1.msra.mxu0 0.0
    %868 = vmatprep.subr.mxu0 0.0
    %869 = vmatpush1.msra.mxu0 0.0
    %870 = vmatprep.subr.mxu0 0.0
    %871 = vmatpush1.msra.mxu0 0.0
    %872 = vmatprep.subr.mxu0 0.0
    %873 = vmatpush1.msra.mxu0 0.0
    %874 = vmatprep.subr.mxu0 0.0
    %875 = vmatpush1.msra.mxu0 0.0
    %876 = vmatprep.subr.mxu0 0.0
    %877 = vmatpush1.msra.mxu0 0.0
    %878 = vmatprep.subr.mxu0 0.0
    %879 = vmatpush1.msra.mxu0 0.0
    %880 = vmatprep.subr.mxu0 0.0
    %881 = vmatpush1.msra.mxu0 0.0
    %882 = vmatprep.subr.mxu0 0.0
    %883 = vmatpush1.msra.mxu0 0.0
    %884 = vmatprep.subr.mxu0 0.0
    %885 = vmatpush1.msra.mxu0 0.0
    %886 = vmatprep.subr.mxu0 0.0
    %887 = vmatpush1.msra.mxu0 0.0
    %888 = vmatprep.subr.mxu0 0.0
    %889 = vmatpush1.msra.mxu0 0.0
    %890 = vmatprep.subr.mxu0 0.0
    %891 = vmatpush1.msra.mxu0 %v750
    %892 = vmatprep.subr.mxu0 0.0
    %893 = vmatpush1.msra.mxu0 %v749
    %894 = vmatprep.subr.mxu0 0.0
    %895 = vmatpush1.msra.mxu0 %v748
    %896 = vmatprep.subr.mxu0 0.0
    %897 = vmatpush1.msra.mxu0 %v747
    %898 = vmatprep.subr.mxu0 0.0
    %899 = vmatpush2.msra.mxu0 0.0
    %900 = vmatprep.subr.mxu0 0.0
    %901 = vmatpush2.msra.mxu0 0.0
    %902 = vmatprep.subr.mxu0 0.0
    %903 = vmatpush2.msra.mxu0 0.0
    %904 = vmatprep.subr.mxu0 0.0
    %905 = vmatpush2.msra.mxu0 0.0
    %906 = vmatprep.subr.mxu0 0.0
    %907 = vmatpush2.msra.mxu0 0.0
    %908 = vmatprep.subr.mxu0 0.0
    %909 = vmatpush2.msra.mxu0 0.0
    %910 = vmatprep.subr.mxu0 0.0
    %911 = vmatpush2.msra.mxu0 0.0
    %912 = vmatprep.subr.mxu0 0.0
    %913 = vmatpush2.msra.mxu0 0.0
    %914 = vmatprep.subr.mxu0 0.0
    %915 = vmatpush2.msra.mxu0 0.0
    %916 = vmatprep.subr.mxu0 0.0
    %917 = vmatpush2.msra.mxu0 0.0
    %918 = vmatprep.subr.mxu0 0.0
    %919 = vmatpush2.msra.mxu0 0.0
    %920 = vmatprep.subr.mxu0 0.0
    %921 = vmatpush2.msra.mxu0 0.0
    %922 = vmatprep.subr.mxu0 0.0
    %923 = vmatpush2.msra.mxu0 0.0
    %924 = vmatprep.subr.mxu0 0.0
    %925 = vmatpush2.msra.mxu0 0.0
    %926 = vmatprep.subr.mxu0 0.0
    %927 = vmatpush2.msra.mxu0 0.0
    %928 = vmatprep.subr.mxu0 0.0
    %929 = vmatpush2.msra.mxu0 0.0
    %930 = vmatprep.mubr.f32.mxu0 0.0
    %931 = vmatmul.mubr.f32.gmra.mxu0 %v864
    %v932 = vpop.f32.mrf.mxu0
    %v933 = vadd.f32 %v756, %v932
    %v934 = vpop.f32.mrf.mxu0
    %935 = vdwg.mxu0
    %v936 = vmax.f32 %v933, 0.0
    %v938 = vsel %vm439, %v936, 0
    %940 = vmatprep.subr.mxu0 0.0
    %941 = vmatpush1.msra.mxu0 0.0
    %942 = vmatprep.subr.mxu0 0.0
    %943 = vmatpush1.msra.mxu0 0.0
    %944 = vmatprep.subr.mxu0 0.0
    %945 = vmatpush1.msra.mxu0 0.0
    %946 = vmatprep.subr.mxu0 0.0
    %947 = vmatpush1.msra.mxu0 0.0
    %948 = vmatprep.subr.mxu0 0.0
    %949 = vmatpush1.msra.mxu0 0.0
    %950 = vmatprep.subr.mxu0 0.0
    %951 = vmatpush1.msra.mxu0 0.0
    %952 = vmatprep.subr.mxu0 0.0
    %953 = vmatpush1.msra.mxu0 0.0
    %954 = vmatprep.subr.mxu0 0.0
    %955 = vmatpush1.msra.mxu0 0.0
    %956 = vmatprep.subr.mxu0 0.0
    %957 = vmatpush1.msra.mxu0 0.0
    %958 = vmatprep.subr.mxu0 0.0
    %959 = vmatpush1.msra.mxu0 0.0
    %960 = vmatprep.subr.mxu0 0.0
    %961 = vmatpush1.msra.mxu0 0.0
    %962 = vmatprep.subr.mxu0 0.0
    %963 = vmatpush1.msra.mxu0 0.0
    %964 = vmatprep.subr.mxu0 0.0
    %965 = vmatpush1.msra.mxu0 %v761
    %966 = vmatprep.subr.mxu0 0.0
    %967 = vmatpush1.msra.mxu0 %v760
    %968 = vmatprep.subr.mxu0 0.0
    %969 = vmatpush1.msra.mxu0 %v759
    %970 = vmatprep.subr.mxu0 0.0
    %971 = vmatpush1.msra.mxu0 %v758
    %972 = vmatprep.subr.mxu0 0.0
    %973 = vmatpush2.msra.mxu0 0.0
    %974 = vmatprep.subr.mxu0 0.0
    %975 = vmatpush2.msra.mxu0 0.0
    %976 = vmatprep.subr.mxu0 0.0
    %977 = vmatpush2.msra.mxu0 0.0
    %978 = vmatprep.subr.mxu0 0.0
    %979 = vmatpush2.msra.mxu0 0.0
    %980 = vmatprep.subr.mxu0 0.0
    %981 = vmatpush2.msra.mxu0 0.0
    %982 = vmatprep.subr.mxu0 0.0
    %983 = vmatpush2.msra.mxu0 0.0
    %984 = vmatprep.subr.mxu0 0.0
    %985 = vmatpush2.msra.mxu0 0.0
    %986 = vmatprep.subr.mxu0 0.0
    %987 = vmatpush2.msra.mxu0 0.0
    %988 = vmatprep.subr.mxu0 0.0
    %989 = vmatpush2.msra.mxu0 0.0
    %990 = vmatprep.subr.mxu0 0.0
    %991 = vmatpush2.msra.mxu0 0.0
    %992 = vmatprep.subr.mxu0 0.0
    %993 = vmatpush2.msra.mxu0 0.0
    %994 = vmatprep.subr.mxu0 0.0
    %995 = vmatpush2.msra.mxu0 0.0
    %996 = vmatprep.subr.mxu0 0.0
    %997 = vmatpush2.msra.mxu0 0.0
    %998 = vmatprep.subr.mxu0 0.0
    %999 = vmatpush2.msra.mxu0 0.0
    %1000 = vmatprep.subr.mxu0 0.0
    %1001 = vmatpush2.msra.mxu0 0.0
    %1002 = vmatprep.subr.mxu0 0.0
    %1003 = vmatpush2.msra.mxu0 0.0
    %1004 = vmatprep.mubr.f32.mxu0 0.0
    %1005 = vmatmul.mubr.f32.gmra.mxu0 %v938
    %v1006 = vpop.f32.mrf.mxu0
    %v1007 = vadd.f32 %v767, %v1006
    %v1008 = vpop.f32.mrf.mxu0
    %1009 = vdwg.mxu0
    %v1010 = vmax.f32 %v1007, 0.0
    %v1011 = vand.u32 2147483647, %v1007
    %v1012 = vsub.f32 0.0, %v1011
    %v1013 = vmul.f32 %v1012, 1.442695
    %v1014 = vpow.pop %v1013
    %v1015 = vadd.f32 %v1014, 1.0
    %v1016 = vlog2.pop %v1015
    %v1017 = vmul.f32 %v1016, 0.6931472
    %v1018 = vmul.f32 -0.5, %v1014
    %v1019 = vadd.f32 %v1018, 1.0
    %v1020 = vmul.f32 %v1019, %v1014
    %v1021 = vand.u32 2147483647, %v1014
    %vm1022 = vcmp.lt.f32.partialorder %v1021, 0.0004427343
    %v1023 = vsel %vm1022, %v1020, %v1017
    %v1024 = vadd.f32 %v1010, %v1023
    %v1025 = vsel %vm784, %v1007, %v1024
    %1027 = vrot.lane.b32.xlu0 %v1025, 112
    %v1028 = vpop.permute.xlu0 %1027
    %v1030 = vmul.f32 %v787, %v1028
    %v1031 = vadd.f32 %v1030, %v1007
    %v1033 = vsel %vm299, %v1031, 0
    %1035 = vmatprep.subr.mxu0 0.0
    %1036 = vmatpush1.msra.mxu0 0.0
    %1037 = vmatprep.subr.mxu0 0.0
    %1038 = vmatpush1.msra.mxu0 0.0
    %1039 = vmatprep.subr.mxu0 0.0
    %1040 = vmatpush1.msra.mxu0 0.0
    %1041 = vmatprep.subr.mxu0 0.0
    %1042 = vmatpush1.msra.mxu0 0.0
    %1043 = vmatprep.subr.mxu0 0.0
    %1044 = vmatpush1.msra.mxu0 0.0
    %1045 = vmatprep.subr.mxu0 0.0
    %1046 = vmatpush1.msra.mxu0 0.0
    %1047 = vmatprep.subr.mxu0 0.0
    %1048 = vmatpush1.msra.mxu0 0.0
    %1049 = vmatprep.subr.mxu0 0.0
    %1050 = vmatpush1.msra.mxu0 0.0
    %1051 = vmatprep.subr.mxu0 0.0
    %1052 = vmatpush1.msra.mxu0 0.0
    %1053 = vmatprep.subr.mxu0 0.0
    %1054 = vmatpush1.msra.mxu0 0.0
    %1055 = vmatprep.subr.mxu0 0.0
    %1056 = vmatpush1.msra.mxu0 0.0
    %1057 = vmatprep.subr.mxu0 0.0
    %1058 = vmatpush1.msra.mxu0 0.0
    %1059 = vmatprep.subr.mxu0 0.0
    %1060 = vmatpush1.msra.mxu0 0.0
    %1061 = vmatprep.subr.mxu0 0.0
    %1062 = vmatpush1.msra.mxu0 0.0
    %1063 = vmatprep.subr.mxu0 0.0
    %1064 = vmatpush1.msra.mxu0 %v770
    %1065 = vmatprep.subr.mxu0 0.0
    %1066 = vmatpush1.msra.mxu0 %v769
    %1067 = vmatprep.subr.mxu0 0.0
    %1068 = vmatpush2.msra.mxu0 0.0
    %1069 = vmatprep.subr.mxu0 0.0
    %1070 = vmatpush2.msra.mxu0 0.0
    %1071 = vmatprep.subr.mxu0 0.0
    %1072 = vmatpush2.msra.mxu0 0.0
    %1073 = vmatprep.subr.mxu0 0.0
    %1074 = vmatpush2.msra.mxu0 0.0
    %1075 = vmatprep.subr.mxu0 0.0
    %1076 = vmatpush2.msra.mxu0 0.0
    %1077 = vmatprep.subr.mxu0 0.0
    %1078 = vmatpush2.msra.mxu0 0.0
    %1079 = vmatprep.subr.mxu0 0.0
    %1080 = vmatpush2.msra.mxu0 0.0
    %1081 = vmatprep.subr.mxu0 0.0
    %1082 = vmatpush2.msra.mxu0 0.0
    %1083 = vmatprep.subr.mxu0 0.0
    %1084 = vmatpush2.msra.mxu0 0.0
    %1085 = vmatprep.subr.mxu0 0.0
    %1086 = vmatpush2.msra.mxu0 0.0
    %1087 = vmatprep.subr.mxu0 0.0
    %1088 = vmatpush2.msra.mxu0 0.0
    %1089 = vmatprep.subr.mxu0 0.0
    %1090 = vmatpush2.msra.mxu0 0.0
    %1091 = vmatprep.subr.mxu0 0.0
    %1092 = vmatpush2.msra.mxu0 0.0
    %1093 = vmatprep.subr.mxu0 0.0
    %1094 = vmatpush2.msra.mxu0 0.0
    %1095 = vmatprep.subr.mxu0 0.0
    %1096 = vmatpush2.msra.mxu0 0.0
    %1097 = vmatprep.subr.mxu0 0.0
    %1098 = vmatpush2.msra.mxu0 0.0
    %1099 = vmatprep.mubr.f32.mxu0 0.0
    %1100 = vmatmul.mubr.f32.gmra.mxu0 %v1033
    %v1101 = vpop.f32.mrf.mxu0
    %v1102 = vadd.f32 %v776, %v1101
    %v1103 = vpop.f32.mrf.mxu0
    %1104 = vdwg.mxu0
    %v1105 = vmax.f32 %v1102, 0.0
    %v1107 = vsel %vm439, %v1105, 0
    %1109 = vmatprep.subr.mxu0 0.0
    %1110 = vmatpush1.msra.mxu0 0.0
    %1111 = vmatprep.subr.mxu0 0.0
    %1112 = vmatpush1.msra.mxu0 0.0
    %1113 = vmatprep.subr.mxu0 0.0
    %1114 = vmatpush1.msra.mxu0 0.0
    %1115 = vmatprep.subr.mxu0 0.0
    %1116 = vmatpush1.msra.mxu0 0.0
    %1117 = vmatprep.subr.mxu0 0.0
    %1118 = vmatpush1.msra.mxu0 0.0
    %1119 = vmatprep.subr.mxu0 0.0
    %1120 = vmatpush1.msra.mxu0 0.0
    %1121 = vmatprep.subr.mxu0 0.0
    %1122 = vmatpush1.msra.mxu0 0.0
    %1123 = vmatprep.subr.mxu0 0.0
    %1124 = vmatpush1.msra.mxu0 0.0
    %1125 = vmatprep.subr.mxu0 0.0
    %1126 = vmatpush1.msra.mxu0 0.0
    %1127 = vmatprep.subr.mxu0 0.0
    %1128 = vmatpush1.msra.mxu0 0.0
    %1129 = vmatprep.subr.mxu0 0.0
    %1130 = vmatpush1.msra.mxu0 0.0
    %1131 = vmatprep.subr.mxu0 0.0
    %1132 = vmatpush1.msra.mxu0 0.0
    %1133 = vmatprep.subr.mxu0 0.0
    %1134 = vmatpush1.msra.mxu0 %v781
    %1135 = vmatprep.subr.mxu0 0.0
    %1136 = vmatpush1.msra.mxu0 %v780
    %1137 = vmatprep.subr.mxu0 0.0
    %1138 = vmatpush1.msra.mxu0 %v779
    %1139 = vmatprep.subr.mxu0 0.0
    %1140 = vmatpush1.msra.mxu0 %v778
    %1141 = vmatprep.subr.mxu0 0.0
    %1142 = vmatpush2.msra.mxu0 0.0
    %1143 = vmatprep.subr.mxu0 0.0
    %1144 = vmatpush2.msra.mxu0 0.0
    %1145 = vmatprep.subr.mxu0 0.0
    %1146 = vmatpush2.msra.mxu0 0.0
    %1147 = vmatprep.subr.mxu0 0.0
    %1148 = vmatpush2.msra.mxu0 0.0
    %1149 = vmatprep.subr.mxu0 0.0
    %1150 = vmatpush2.msra.mxu0 0.0
    %1151 = vmatprep.subr.mxu0 0.0
    %1152 = vmatpush2.msra.mxu0 0.0
    %1153 = vmatprep.subr.mxu0 0.0
    %1154 = vmatpush2.msra.mxu0 0.0
    %1155 = vmatprep.subr.mxu0 0.0
    %1156 = vmatpush2.msra.mxu0 0.0
    %1157 = vmatprep.subr.mxu0 0.0
    %1158 = vmatpush2.msra.mxu0 0.0
    %1159 = vmatprep.subr.mxu0 0.0
    %1160 = vmatpush2.msra.mxu0 0.0
    %1161 = vmatprep.subr.mxu0 0.0
    %1162 = vmatpush2.msra.mxu0 0.0
    %1163 = vmatprep.subr.mxu0 0.0
    %1164 = vmatpush2.msra.mxu0 0.0
    %1165 = vmatprep.subr.mxu0 0.0
    %1166 = vmatpush2.msra.mxu0 0.0
    %1167 = vmatprep.subr.mxu0 0.0
    %1168 = vmatpush2.msra.mxu0 0.0
    %1169 = vmatprep.subr.mxu0 0.0
    %1170 = vmatpush2.msra.mxu0 0.0
    %1171 = vmatprep.subr.mxu0 0.0
    %1172 = vmatpush2.msra.mxu0 0.0
    %1173 = vmatprep.mubr.f32.mxu0 0.0
    %1174 = vmatmul.mubr.f32.gmra.mxu0 %v1107
    %v1175 = vpop.f32.mrf.mxu0
    %v1176 = vadd.f32 0.0, %v1175
    %v1177 = vpop.f32.mrf.mxu0
    %1178 = vdwg.mxu0
    %v1179 = vadd.f32 %v786, %v1176
    %1181 = vrot.lane.b32.xlu0 %v858, 96
    %v1182 = vpop.permute.xlu0 %1181
    %v1184 = vadd.f32 %v1179, %v1182
    %v1185 = vmul.f32 %v1184, 0.5
    %v1186 = vtanh.pop %v1185
    %v1187 = vadd.f32 %v1186, 1.0
    %v1188 = vmul.f32 %v1187, 0.5
    %1189 = vrot.lane.b32.xlu0 %v858, 32
    %v1190 = vpop.permute.xlu0 %1189
    %v1192 = vmul.f32 %v1188, %v1190
    %1194 = vrot.lane.b32.xlu0 %v1192, 64
    %v1195 = vpop.permute.xlu0 %1194
    %v1197 = vadd.f32 %v1179, %v1195
    %v1198 = vtanh.pop %v1197
    %1199 = vst.msk [vmem:[#allocation4] sm:$0xff] %vm439, 0.0
    %1200 = vst.msk [vmem:[#allocation5] sm:$0xff] %vm439, %v1105
    %1201 = vst.msk [vmem:[%s25] sm:$0xff] %vm439, %v1025
    %v1202 = vsub.f32 1.0, %v1188
    %1204 = vrot.lane.b32.xlu0 %v1198, 96
    %v1205 = vpop.permute.xlu0 %1204
    %v1207 = vmul.f32 %v1202, %v1205
    %v1208 = vmul.f32 %v1188, 0.0
    %v1209 = vadd.f32 %v1207, %v1208
    %s1210 = scalar_lea.vmem [#allocation2], 8
    %v1211 = vld [vmem:[%s1210] sm:$0xff]
    %s1212 = scalar_lea.vmem [#allocation3], 8
    %v1213 = vld [vmem:[%s1212] sm:$0xff]
    %s1214 = scalar_lea.vmem %s1, 8
    %v1215 = vld [vmem:[%s1214] sm:$0xff]
    %1217 = vrot.lane.b32.xlu0 %v1209, 96
    %v1218 = vpop.permute.xlu0 %1217
    %v1219 = vsel %vm439, %v1218, 0
    %1221 = vmatprep.subr.mxu0 0.0
    %1222 = vmatpush1.msra.mxu0 0.0
    %1223 = vmatprep.subr.mxu0 0.0
    %1224 = vmatpush1.msra.mxu0 0.0
    %1225 = vmatprep.subr.mxu0 0.0
    %1226 = vmatpush1.msra.mxu0 0.0
    %1227 = vmatprep.subr.mxu0 0.0
    %1228 = vmatpush1.msra.mxu0 0.0
    %1229 = vmatprep.subr.mxu0 0.0
    %1230 = vmatpush1.msra.mxu0 0.0
    %1231 = vmatprep.subr.mxu0 0.0
    %1232 = vmatpush1.msra.mxu0 0.0
    %1233 = vmatprep.subr.mxu0 0.0
    %1234 = vmatpush1.msra.mxu0 0.0
    %1235 = vmatprep.subr.mxu0 0.0
    %1236 = vmatpush1.msra.mxu0 0.0
    %1237 = vmatprep.subr.mxu0 0.0
    %1238 = vmatpush1.msra.mxu0 0.0
    %1239 = vmatprep.subr.mxu0 0.0
    %1240 = vmatpush1.msra.mxu0 0.0
    %1241 = vmatprep.subr.mxu0 0.0
    %1242 = vmatpush1.msra.mxu0 0.0
    %1243 = vmatprep.subr.mxu0 0.0
    %1244 = vmatpush1.msra.mxu0 0.0
    %1245 = vmatprep.subr.mxu0 0.0
    %1246 = vmatpush1.msra.mxu0 %v746
    %1247 = vmatprep.subr.mxu0 0.0
    %1248 = vmatpush1.msra.mxu0 %v745
    %1249 = vmatprep.subr.mxu0 0.0
    %1250 = vmatpush1.msra.mxu0 %v744
    %1251 = vmatprep.subr.mxu0 0.0
    %1252 = vmatpush1.msra.mxu0 %v743
    %1253 = vmatprep.subr.mxu0 0.0
    %1254 = vmatpush2.msra.mxu0 0.0
    %1255 = vmatprep.subr.mxu0 0.0
    %1256 = vmatpush2.msra.mxu0 0.0
    %1257 = vmatprep.subr.mxu0 0.0
    %1258 = vmatpush2.msra.mxu0 0.0
    %1259 = vmatprep.subr.mxu0 0.0
    %1260 = vmatpush2.msra.mxu0 0.0
    %1261 = vmatprep.subr.mxu0 0.0
    %1262 = vmatpush2.msra.mxu0 0.0
    %1263 = vmatprep.subr.mxu0 0.0
    %1264 = vmatpush2.msra.mxu0 0.0
    %1265 = vmatprep.subr.mxu0 0.0
    %1266 = vmatpush2.msra.mxu0 0.0
    %1267 = vmatprep.subr.mxu0 0.0
    %1268 = vmatpush2.msra.mxu0 0.0
    %1269 = vmatprep.subr.mxu0 0.0
    %1270 = vmatpush2.msra.mxu0 0.0
    %1271 = vmatprep.subr.mxu0 0.0
    %1272 = vmatpush2.msra.mxu0 0.0
    %1273 = vmatprep.subr.mxu0 0.0
    %1274 = vmatpush2.msra.mxu0 0.0
    %1275 = vmatprep.subr.mxu0 0.0
    %1276 = vmatpush2.msra.mxu0 0.0
    %1277 = vmatprep.subr.mxu0 0.0
    %1278 = vmatpush2.msra.mxu0 0.0
    %1279 = vmatprep.subr.mxu0 0.0
    %1280 = vmatpush2.msra.mxu0 0.0
    %1281 = vmatprep.subr.mxu0 0.0
    %1282 = vmatpush2.msra.mxu0 0.0
    %1283 = vmatprep.subr.mxu0 0.0
    %1284 = vmatpush2.msra.mxu0 0.0
    %1285 = vmatprep.mubr.f32.mxu0 0.0
    %1286 = vmatmul.mubr.f32.gmra.mxu0 %v1219
    %v1287 = vpop.f32.mrf.mxu0
    %v1288 = vadd.f32 0.0, %v1287
    %v1289 = vpop.f32.mrf.mxu0
    %1290 = vdwg.mxu0
    %v1291 = vadd.f32 %v1211, %v1288
    %v1292 = vmax.f32 %v1291, 0.0
    %v1294 = vsel %vm439, %v1292, 0
    %1296 = vmatprep.subr.mxu0 0.0
    %1297 = vmatpush1.msra.mxu0 0.0
    %1298 = vmatprep.subr.mxu0 0.0
    %1299 = vmatpush1.msra.mxu0 0.0
    %1300 = vmatprep.subr.mxu0 0.0
    %1301 = vmatpush1.msra.mxu0 0.0
    %1302 = vmatprep.subr.mxu0 0.0
    %1303 = vmatpush1.msra.mxu0 0.0
    %1304 = vmatprep.subr.mxu0 0.0
    %1305 = vmatpush1.msra.mxu0 0.0
    %1306 = vmatprep.subr.mxu0 0.0
    %1307 = vmatpush1.msra.mxu0 0.0
    %1308 = vmatprep.subr.mxu0 0.0
    %1309 = vmatpush1.msra.mxu0 0.0
    %1310 = vmatprep.subr.mxu0 0.0
    %1311 = vmatpush1.msra.mxu0 0.0
    %1312 = vmatprep.subr.mxu0 0.0
    %1313 = vmatpush1.msra.mxu0 0.0
    %1314 = vmatprep.subr.mxu0 0.0
    %1315 = vmatpush1.msra.mxu0 0.0
    %1316 = vmatprep.subr.mxu0 0.0
    %1317 = vmatpush1.msra.mxu0 0.0
    %1318 = vmatprep.subr.mxu0 0.0
    %1319 = vmatpush1.msra.mxu0 0.0
    %1320 = vmatprep.subr.mxu0 0.0
    %1321 = vmatpush1.msra.mxu0 %v750
    %1322 = vmatprep.subr.mxu0 0.0
    %1323 = vmatpush1.msra.mxu0 %v749
    %1324 = vmatprep.subr.mxu0 0.0
    %1325 = vmatpush1.msra.mxu0 %v748
    %1326 = vmatprep.subr.mxu0 0.0
    %1327 = vmatpush1.msra.mxu0 %v747
    %1328 = vmatprep.subr.mxu0 0.0
    %1329 = vmatpush2.msra.mxu0 0.0
    %1330 = vmatprep.subr.mxu0 0.0
    %1331 = vmatpush2.msra.mxu0 0.0
    %1332 = vmatprep.subr.mxu0 0.0
    %1333 = vmatpush2.msra.mxu0 0.0
    %1334 = vmatprep.subr.mxu0 0.0
    %1335 = vmatpush2.msra.mxu0 0.0
    %1336 = vmatprep.subr.mxu0 0.0
    %1337 = vmatpush2.msra.mxu0 0.0
    %1338 = vmatprep.subr.mxu0 0.0
    %1339 = vmatpush2.msra.mxu0 0.0
    %1340 = vmatprep.subr.mxu0 0.0
    %1341 = vmatpush2.msra.mxu0 0.0
    %1342 = vmatprep.subr.mxu0 0.0
    %1343 = vmatpush2.msra.mxu0 0.0
    %1344 = vmatprep.subr.mxu0 0.0
    %1345 = vmatpush2.msra.mxu0 0.0
    %1346 = vmatprep.subr.mxu0 0.0
    %1347 = vmatpush2.msra.mxu0 0.0
    %1348 = vmatprep.subr.mxu0 0.0
    %1349 = vmatpush2.msra.mxu0 0.0
    %1350 = vmatprep.subr.mxu0 0.0
    %1351 = vmatpush2.msra.mxu0 0.0
    %1352 = vmatprep.subr.mxu0 0.0
    %1353 = vmatpush2.msra.mxu0 0.0
    %1354 = vmatprep.subr.mxu0 0.0
    %1355 = vmatpush2.msra.mxu0 0.0
    %1356 = vmatprep.subr.mxu0 0.0
    %1357 = vmatpush2.msra.mxu0 0.0
    %1358 = vmatprep.subr.mxu0 0.0
    %1359 = vmatpush2.msra.mxu0 0.0
    %1360 = vmatprep.mubr.f32.mxu0 0.0
    %1361 = vmatmul.mubr.f32.gmra.mxu0 %v1294
    %v1362 = vpop.f32.mrf.mxu0
    %v1363 = vadd.f32 %v756, %v1362
    %v1364 = vpop.f32.mrf.mxu0
    %1365 = vdwg.mxu0
    %v1366 = vmax.f32 %v1363, 0.0
    %v1368 = vsel %vm439, %v1366, 0
    %1370 = vmatprep.subr.mxu0 0.0
    %1371 = vmatpush1.msra.mxu0 0.0
    %1372 = vmatprep.subr.mxu0 0.0
    %1373 = vmatpush1.msra.mxu0 0.0
    %1374 = vmatprep.subr.mxu0 0.0
    %1375 = vmatpush1.msra.mxu0 0.0
    %1376 = vmatprep.subr.mxu0 0.0
    %1377 = vmatpush1.msra.mxu0 0.0
    %1378 = vmatprep.subr.mxu0 0.0
    %1379 = vmatpush1.msra.mxu0 0.0
    %1380 = vmatprep.subr.mxu0 0.0
    %1381 = vmatpush1.msra.mxu0 0.0
    %1382 = vmatprep.subr.mxu0 0.0
    %1383 = vmatpush1.msra.mxu0 0.0
    %1384 = vmatprep.subr.mxu0 0.0
    %1385 = vmatpush1.msra.mxu0 0.0
    %1386 = vmatprep.subr.mxu0 0.0
    %1387 = vmatpush1.msra.mxu0 0.0
    %1388 = vmatprep.subr.mxu0 0.0
    %1389 = vmatpush1.msra.mxu0 0.0
    %1390 = vmatprep.subr.mxu0 0.0
    %1391 = vmatpush1.msra.mxu0 0.0
    %1392 = vmatprep.subr.mxu0 0.0
    %1393 = vmatpush1.msra.mxu0 0.0
    %1394 = vmatprep.subr.mxu0 0.0
    %1395 = vmatpush1.msra.mxu0 %v761
    %1396 = vmatprep.subr.mxu0 0.0
    %1397 = vmatpush1.msra.mxu0 %v760
    %1398 = vmatprep.subr.mxu0 0.0
    %1399 = vmatpush1.msra.mxu0 %v759
    %1400 = vmatprep.subr.mxu0 0.0
    %1401 = vmatpush1.msra.mxu0 %v758
    %1402 = vmatprep.subr.mxu0 0.0
    %1403 = vmatpush2.msra.mxu0 0.0
    %1404 = vmatprep.subr.mxu0 0.0
    %1405 = vmatpush2.msra.mxu0 0.0
    %1406 = vmatprep.subr.mxu0 0.0
    %1407 = vmatpush2.msra.mxu0 0.0
    %1408 = vmatprep.subr.mxu0 0.0
    %1409 = vmatpush2.msra.mxu0 0.0
    %1410 = vmatprep.subr.mxu0 0.0
    %1411 = vmatpush2.msra.mxu0 0.0
    %1412 = vmatprep.subr.mxu0 0.0
    %1413 = vmatpush2.msra.mxu0 0.0
    %1414 = vmatprep.subr.mxu0 0.0
    %1415 = vmatpush2.msra.mxu0 0.0
    %1416 = vmatprep.subr.mxu0 0.0
    %1417 = vmatpush2.msra.mxu0 0.0
    %1418 = vmatprep.subr.mxu0 0.0
    %1419 = vmatpush2.msra.mxu0 0.0
    %1420 = vmatprep.subr.mxu0 0.0
    %1421 = vmatpush2.msra.mxu0 0.0
    %1422 = vmatprep.subr.mxu0 0.0
    %1423 = vmatpush2.msra.mxu0 0.0
    %1424 = vmatprep.subr.mxu0 0.0
    %1425 = vmatpush2.msra.mxu0 0.0
    %1426 = vmatprep.subr.mxu0 0.0
    %1427 = vmatpush2.msra.mxu0 0.0
    %1428 = vmatprep.subr.mxu0 0.0
    %1429 = vmatpush2.msra.mxu0 0.0
    %1430 = vmatprep.subr.mxu0 0.0
    %1431 = vmatpush2.msra.mxu0 0.0
    %1432 = vmatprep.subr.mxu0 0.0
    %1433 = vmatpush2.msra.mxu0 0.0
    %1434 = vmatprep.mubr.f32.mxu0 0.0
    %1435 = vmatmul.mubr.f32.gmra.mxu0 %v1368
    %v1436 = vpop.f32.mrf.mxu0
    %v1437 = vadd.f32 %v767, %v1436
    %v1438 = vpop.f32.mrf.mxu0
    %1439 = vdwg.mxu0
    %v1440 = vmax.f32 %v1437, 0.0
    %v1441 = vand.u32 2147483647, %v1437
    %v1442 = vsub.f32 0.0, %v1441
    %v1443 = vmul.f32 %v1442, 1.442695
    %v1444 = vpow.pop %v1443
    %v1445 = vadd.f32 %v1444, 1.0
    %v1446 = vlog2.pop %v1445
    %v1447 = vmul.f32 %v1446, 0.6931472
    %v1448 = vmul.f32 -0.5, %v1444
    %v1449 = vadd.f32 %v1448, 1.0
    %v1450 = vmul.f32 %v1449, %v1444
    %v1451 = vand.u32 2147483647, %v1444
    %vm1452 = vcmp.lt.f32.partialorder %v1451, 0.0004427343
    %v1453 = vsel %vm1452, %v1450, %v1447
    %v1454 = vadd.f32 %v1440, %v1453
    %v1455 = vsel %vm784, %v1437, %v1454
    %1457 = vrot.lane.b32.xlu0 %v1455, 112
    %v1458 = vpop.permute.xlu0 %1457
    %v1460 = vmul.f32 %v1215, %v1458
    %v1461 = vadd.f32 %v1460, %v1437
    %v1463 = vsel %vm299, %v1461, 0
    %1465 = vmatprep.subr.mxu0 0.0
    %1466 = vmatpush1.msra.mxu0 0.0
    %1467 = vmatprep.subr.mxu0 0.0
    %1468 = vmatpush1.msra.mxu0 0.0
    %1469 = vmatprep.subr.mxu0 0.0
    %1470 = vmatpush1.msra.mxu0 0.0
    %1471 = vmatprep.subr.mxu0 0.0
    %1472 = vmatpush1.msra.mxu0 0.0
    %1473 = vmatprep.subr.mxu0 0.0
    %1474 = vmatpush1.msra.mxu0 0.0
    %1475 = vmatprep.subr.mxu0 0.0
    %1476 = vmatpush1.msra.mxu0 0.0
    %1477 = vmatprep.subr.mxu0 0.0
    %1478 = vmatpush1.msra.mxu0 0.0
    %1479 = vmatprep.subr.mxu0 0.0
    %1480 = vmatpush1.msra.mxu0 0.0
    %1481 = vmatprep.subr.mxu0 0.0
    %1482 = vmatpush1.msra.mxu0 0.0
    %1483 = vmatprep.subr.mxu0 0.0
    %1484 = vmatpush1.msra.mxu0 0.0
    %1485 = vmatprep.subr.mxu0 0.0
    %1486 = vmatpush1.msra.mxu0 0.0
    %1487 = vmatprep.subr.mxu0 0.0
    %1488 = vmatpush1.msra.mxu0 0.0
    %1489 = vmatprep.subr.mxu0 0.0
    %1490 = vmatpush1.msra.mxu0 0.0
    %1491 = vmatprep.subr.mxu0 0.0
    %1492 = vmatpush1.msra.mxu0 0.0
    %1493 = vmatprep.subr.mxu0 0.0
    %1494 = vmatpush1.msra.mxu0 %v770
    %1495 = vmatprep.subr.mxu0 0.0
    %1496 = vmatpush1.msra.mxu0 %v769
    %1497 = vmatprep.subr.mxu0 0.0
    %1498 = vmatpush2.msra.mxu0 0.0
    %1499 = vmatprep.subr.mxu0 0.0
    %1500 = vmatpush2.msra.mxu0 0.0
    %1501 = vmatprep.subr.mxu0 0.0
    %1502 = vmatpush2.msra.mxu0 0.0
    %1503 = vmatprep.subr.mxu0 0.0
    %1504 = vmatpush2.msra.mxu0 0.0
    %1505 = vmatprep.subr.mxu0 0.0
    %1506 = vmatpush2.msra.mxu0 0.0
    %1507 = vmatprep.subr.mxu0 0.0
    %1508 = vmatpush2.msra.mxu0 0.0
    %1509 = vmatprep.subr.mxu0 0.0
    %1510 = vmatpush2.msra.mxu0 0.0
    %1511 = vmatprep.subr.mxu0 0.0
    %1512 = vmatpush2.msra.mxu0 0.0
    %1513 = vmatprep.subr.mxu0 0.0
    %1514 = vmatpush2.msra.mxu0 0.0
    %1515 = vmatprep.subr.mxu0 0.0
    %1516 = vmatpush2.msra.mxu0 0.0
    %1517 = vmatprep.subr.mxu0 0.0
    %1518 = vmatpush2.msra.mxu0 0.0
    %1519 = vmatprep.subr.mxu0 0.0
    %1520 = vmatpush2.msra.mxu0 0.0
    %1521 = vmatprep.subr.mxu0 0.0
    %1522 = vmatpush2.msra.mxu0 0.0
    %1523 = vmatprep.subr.mxu0 0.0
    %1524 = vmatpush2.msra.mxu0 0.0
    %1525 = vmatprep.subr.mxu0 0.0
    %1526 = vmatpush2.msra.mxu0 0.0
    %1527 = vmatprep.subr.mxu0 0.0
    %1528 = vmatpush2.msra.mxu0 0.0
    %1529 = vmatprep.mubr.f32.mxu0 0.0
    %1530 = vmatmul.mubr.f32.gmra.mxu0 %v1463
    %v1531 = vpop.f32.mrf.mxu0
    %v1532 = vadd.f32 %v776, %v1531
    %v1533 = vpop.f32.mrf.mxu0
    %1534 = vdwg.mxu0
    %v1535 = vmax.f32 %v1532, 0.0
    %v1537 = vsel %vm439, %v1535, 0
    %1539 = vmatprep.subr.mxu0 0.0
    %1540 = vmatpush1.msra.mxu0 0.0
    %1541 = vmatprep.subr.mxu0 0.0
    %1542 = vmatpush1.msra.mxu0 0.0
    %1543 = vmatprep.subr.mxu0 0.0
    %1544 = vmatpush1.msra.mxu0 0.0
    %1545 = vmatprep.subr.mxu0 0.0
    %1546 = vmatpush1.msra.mxu0 0.0
    %1547 = vmatprep.subr.mxu0 0.0
    %1548 = vmatpush1.msra.mxu0 0.0
    %1549 = vmatprep.subr.mxu0 0.0
    %1550 = vmatpush1.msra.mxu0 0.0
    %1551 = vmatprep.subr.mxu0 0.0
    %1552 = vmatpush1.msra.mxu0 0.0
    %1553 = vmatprep.subr.mxu0 0.0
    %1554 = vmatpush1.msra.mxu0 0.0
    %1555 = vmatprep.subr.mxu0 0.0
    %1556 = vmatpush1.msra.mxu0 0.0
    %1557 = vmatprep.subr.mxu0 0.0
    %1558 = vmatpush1.msra.mxu0 0.0
    %1559 = vmatprep.subr.mxu0 0.0
    %1560 = vmatpush1.msra.mxu0 0.0
    %1561 = vmatprep.subr.mxu0 0.0
    %1562 = vmatpush1.msra.mxu0 0.0
    %1563 = vmatprep.subr.mxu0 0.0
    %1564 = vmatpush1.msra.mxu0 %v781
    %1565 = vmatprep.subr.mxu0 0.0
    %1566 = vmatpush1.msra.mxu0 %v780
    %1567 = vmatprep.subr.mxu0 0.0
    %1568 = vmatpush1.msra.mxu0 %v779
    %1569 = vmatprep.subr.mxu0 0.0
    %1570 = vmatpush1.msra.mxu0 %v778
    %1571 = vmatprep.subr.mxu0 0.0
    %1572 = vmatpush2.msra.mxu0 0.0
    %1573 = vmatprep.subr.mxu0 0.0
    %1574 = vmatpush2.msra.mxu0 0.0
    %1575 = vmatprep.subr.mxu0 0.0
    %1576 = vmatpush2.msra.mxu0 0.0
    %1577 = vmatprep.subr.mxu0 0.0
    %1578 = vmatpush2.msra.mxu0 0.0
    %1579 = vmatprep.subr.mxu0 0.0
    %1580 = vmatpush2.msra.mxu0 0.0
    %1581 = vmatprep.subr.mxu0 0.0
    %1582 = vmatpush2.msra.mxu0 0.0
    %1583 = vmatprep.subr.mxu0 0.0
    %1584 = vmatpush2.msra.mxu0 0.0
    %1585 = vmatprep.subr.mxu0 0.0
    %1586 = vmatpush2.msra.mxu0 0.0
    %1587 = vmatprep.subr.mxu0 0.0
    %1588 = vmatpush2.msra.mxu0 0.0
    %1589 = vmatprep.subr.mxu0 0.0
    %1590 = vmatpush2.msra.mxu0 0.0
    %1591 = vmatprep.subr.mxu0 0.0
    %1592 = vmatpush2.msra.mxu0 0.0
    %1593 = vmatprep.subr.mxu0 0.0
    %1594 = vmatpush2.msra.mxu0 0.0
    %1595 = vmatprep.subr.mxu0 0.0
    %1596 = vmatpush2.msra.mxu0 0.0
    %1597 = vmatprep.subr.mxu0 0.0
    %1598 = vmatpush2.msra.mxu0 0.0
    %1599 = vmatprep.subr.mxu0 0.0
    %1600 = vmatpush2.msra.mxu0 0.0
    %1601 = vmatprep.subr.mxu0 0.0
    %1602 = vmatpush2.msra.mxu0 0.0
    %1603 = vmatprep.mubr.f32.mxu0 0.0
    %1604 = vmatmul.mubr.f32.gmra.mxu0 %v1537
    %v1605 = vpop.f32.mrf.mxu0
    %v1606 = vadd.f32 0.0, %v1605
    %v1607 = vpop.f32.mrf.mxu0
    %1608 = vdwg.mxu0
    %v1609 = vadd.f32 %v1213, %v1606
    %1611 = vrot.lane.b32.xlu0 %v1288, 96
    %v1612 = vpop.permute.xlu0 %1611
    %v1614 = vadd.f32 %v1609, %v1612
    %v1615 = vmul.f32 %v1614, 0.5
    %v1616 = vtanh.pop %v1615
    %v1617 = vadd.f32 %v1616, 1.0
    %v1618 = vmul.f32 %v1617, 0.5
    %1619 = vrot.lane.b32.xlu0 %v1288, 32
    %v1620 = vpop.permute.xlu0 %1619
    %v1622 = vmul.f32 %v1618, %v1620
    %1624 = vrot.lane.b32.xlu0 %v1622, 64
    %v1625 = vpop.permute.xlu0 %1624
    %v1627 = vadd.f32 %v1609, %v1625
    %v1628 = vtanh.pop %v1627
    %s1630 = scalar_lea.vmem [#allocation4], 8
    %1631 = vst.msk [vmem:[%s1630] sm:$0xff] %vm439, %v1218
    %s1632 = scalar_lea.vmem [#allocation5], 8
    %1633 = vst.msk [vmem:[%s1632] sm:$0xff] %vm439, %v1535
    %s1634 = scalar_lea.vmem %s25, 8
    %1635 = vst.msk [vmem:[%s1634] sm:$0xff] %vm439, %v1455
    %v1636 = vsub.f32 1.0, %v1618
    %1638 = vrot.lane.b32.xlu0 %v1628, 96
    %v1639 = vpop.permute.xlu0 %1638
    %v1641 = vmul.f32 %v1636, %v1639
    %v1642 = vmul.f32 %v1618, %v1209
    %v1643 = vadd.f32 %v1641, %v1642
    %s1644 = scalar_lea.vmem [#allocation2], 16
    %v1645 = vld [vmem:[%s1644] sm:$0xff]
    %s1646 = scalar_lea.vmem [#allocation3], 16
    %v1647 = vld [vmem:[%s1646] sm:$0xff]
    %s1648 = scalar_lea.vmem %s1, 16
    %v1649 = vld [vmem:[%s1648] sm:$0xff]
    %1651 = vrot.lane.b32.xlu0 %v1643, 96
    %v1652 = vpop.permute.xlu0 %1651
    %v1653 = vsel %vm439, %v1652, 0
    %1655 = vmatprep.subr.mxu0 0.0
    %1656 = vmatpush1.msra.mxu0 0.0
    %1657 = vmatprep.subr.mxu0 0.0
    %1658 = vmatpush1.msra.mxu0 0.0
    %1659 = vmatprep.subr.mxu0 0.0
    %1660 = vmatpush1.msra.mxu0 0.0
    %1661 = vmatprep.subr.mxu0 0.0
    %1662 = vmatpush1.msra.mxu0 0.0
    %1663 = vmatprep.subr.mxu0 0.0
    %1664 = vmatpush1.msra.mxu0 0.0
    %1665 = vmatprep.subr.mxu0 0.0
    %1666 = vmatpush1.msra.mxu0 0.0
    %1667 = vmatprep.subr.mxu0 0.0
    %1668 = vmatpush1.msra.mxu0 0.0
    %1669 = vmatprep.subr.mxu0 0.0
    %1670 = vmatpush1.msra.mxu0 0.0
    %1671 = vmatprep.subr.mxu0 0.0
    %1672 = vmatpush1.msra.mxu0 0.0
    %1673 = vmatprep.subr.mxu0 0.0
    %1674 = vmatpush1.msra.mxu0 0.0
    %1675 = vmatprep.subr.mxu0 0.0
    %1676 = vmatpush1.msra.mxu0 0.0
    %1677 = vmatprep.subr.mxu0 0.0
    %1678 = vmatpush1.msra.mxu0 0.0
    %1679 = vmatprep.subr.mxu0 0.0
    %1680 = vmatpush1.msra.mxu0 %v746
    %1681 = vmatprep.subr.mxu0 0.0
    %1682 = vmatpush1.msra.mxu0 %v745
    %1683 = vmatprep.subr.mxu0 0.0
    %1684 = vmatpush1.msra.mxu0 %v744
    %1685 = vmatprep.subr.mxu0 0.0
    %1686 = vmatpush1.msra.mxu0 %v743
    %1687 = vmatprep.subr.mxu0 0.0
    %1688 = vmatpush2.msra.mxu0 0.0
    %1689 = vmatprep.subr.mxu0 0.0
    %1690 = vmatpush2.msra.mxu0 0.0
    %1691 = vmatprep.subr.mxu0 0.0
    %1692 = vmatpush2.msra.mxu0 0.0
    %1693 = vmatprep.subr.mxu0 0.0
    %1694 = vmatpush2.msra.mxu0 0.0
    %1695 = vmatprep.subr.mxu0 0.0
    %1696 = vmatpush2.msra.mxu0 0.0
    %1697 = vmatprep.subr.mxu0 0.0
    %1698 = vmatpush2.msra.mxu0 0.0
    %1699 = vmatprep.subr.mxu0 0.0
    %1700 = vmatpush2.msra.mxu0 0.0
    %1701 = vmatprep.subr.mxu0 0.0
    %1702 = vmatpush2.msra.mxu0 0.0
    %1703 = vmatprep.subr.mxu0 0.0
    %1704 = vmatpush2.msra.mxu0 0.0
    %1705 = vmatprep.subr.mxu0 0.0
    %1706 = vmatpush2.msra.mxu0 0.0
    %1707 = vmatprep.subr.mxu0 0.0
    %1708 = vmatpush2.msra.mxu0 0.0
    %1709 = vmatprep.subr.mxu0 0.0
    %1710 = vmatpush2.msra.mxu0 0.0
    %1711 = vmatprep.subr.mxu0 0.0
    %1712 = vmatpush2.msra.mxu0 0.0
    %1713 = vmatprep.subr.mxu0 0.0
    %1714 = vmatpush2.msra.mxu0 0.0
    %1715 = vmatprep.subr.mxu0 0.0
    %1716 = vmatpush2.msra.mxu0 0.0
    %1717 = vmatprep.subr.mxu0 0.0
    %1718 = vmatpush2.msra.mxu0 0.0
    %1719 = vmatprep.mubr.f32.mxu0 0.0
    %1720 = vmatmul.mubr.f32.gmra.mxu0 %v1653
    %v1721 = vpop.f32.mrf.mxu0
    %v1722 = vadd.f32 0.0, %v1721
    %v1723 = vpop.f32.mrf.mxu0
    %1724 = vdwg.mxu0
    %v1725 = vadd.f32 %v1645, %v1722
    %v1726 = vmax.f32 %v1725, 0.0
    %v1728 = vsel %vm439, %v1726, 0
    %1730 = vmatprep.subr.mxu0 0.0
    %1731 = vmatpush1.msra.mxu0 0.0
    %1732 = vmatprep.subr.mxu0 0.0
    %1733 = vmatpush1.msra.mxu0 0.0
    %1734 = vmatprep.subr.mxu0 0.0
    %1735 = vmatpush1.msra.mxu0 0.0
    %1736 = vmatprep.subr.mxu0 0.0
    %1737 = vmatpush1.msra.mxu0 0.0
    %1738 = vmatprep.subr.mxu0 0.0
    %1739 = vmatpush1.msra.mxu0 0.0
    %1740 = vmatprep.subr.mxu0 0.0
    %1741 = vmatpush1.msra.mxu0 0.0
    %1742 = vmatprep.subr.mxu0 0.0
    %1743 = vmatpush1.msra.mxu0 0.0
    %1744 = vmatprep.subr.mxu0 0.0
    %1745 = vmatpush1.msra.mxu0 0.0
    %1746 = vmatprep.subr.mxu0 0.0
    %1747 = vmatpush1.msra.mxu0 0.0
    %1748 = vmatprep.subr.mxu0 0.0
    %1749 = vmatpush1.msra.mxu0 0.0
    %1750 = vmatprep.subr.mxu0 0.0
    %1751 = vmatpush1.msra.mxu0 0.0
    %1752 = vmatprep.subr.mxu0 0.0
    %1753 = vmatpush1.msra.mxu0 0.0
    %1754 = vmatprep.subr.mxu0 0.0
    %1755 = vmatpush1.msra.mxu0 %v750
    %1756 = vmatprep.subr.mxu0 0.0
    %1757 = vmatpush1.msra.mxu0 %v749
    %1758 = vmatprep.subr.mxu0 0.0
    %1759 = vmatpush1.msra.mxu0 %v748
    %1760 = vmatprep.subr.mxu0 0.0
    %1761 = vmatpush1.msra.mxu0 %v747
    %1762 = vmatprep.subr.mxu0 0.0
    %1763 = vmatpush2.msra.mxu0 0.0
    %1764 = vmatprep.subr.mxu0 0.0
    %1765 = vmatpush2.msra.mxu0 0.0
    %1766 = vmatprep.subr.mxu0 0.0
    %1767 = vmatpush2.msra.mxu0 0.0
    %1768 = vmatprep.subr.mxu0 0.0
    %1769 = vmatpush2.msra.mxu0 0.0
    %1770 = vmatprep.subr.mxu0 0.0
    %1771 = vmatpush2.msra.mxu0 0.0
    %1772 = vmatprep.subr.mxu0 0.0
    %1773 = vmatpush2.msra.mxu0 0.0
    %1774 = vmatprep.subr.mxu0 0.0
    %1775 = vmatpush2.msra.mxu0 0.0
    %1776 = vmatprep.subr.mxu0 0.0
    %1777 = vmatpush2.msra.mxu0 0.0
    %1778 = vmatprep.subr.mxu0 0.0
    %1779 = vmatpush2.msra.mxu0 0.0
    %1780 = vmatprep.subr.mxu0 0.0
    %1781 = vmatpush2.msra.mxu0 0.0
    %1782 = vmatprep.subr.mxu0 0.0
    %1783 = vmatpush2.msra.mxu0 0.0
    %1784 = vmatprep.subr.mxu0 0.0
    %1785 = vmatpush2.msra.mxu0 0.0
    %1786 = vmatprep.subr.mxu0 0.0
    %1787 = vmatpush2.msra.mxu0 0.0
    %1788 = vmatprep.subr.mxu0 0.0
    %1789 = vmatpush2.msra.mxu0 0.0
    %1790 = vmatprep.subr.mxu0 0.0
    %1791 = vmatpush2.msra.mxu0 0.0
    %1792 = vmatprep.subr.mxu0 0.0
    %1793 = vmatpush2.msra.mxu0 0.0
    %1794 = vmatprep.mubr.f32.mxu0 0.0
    %1795 = vmatmul.mubr.f32.gmra.mxu0 %v1728
    %v1796 = vpop.f32.mrf.mxu0
    %v1797 = vadd.f32 %v756, %v1796
    %v1798 = vpop.f32.mrf.mxu0
    %1799 = vdwg.mxu0
    %v1800 = vmax.f32 %v1797, 0.0
    %v1802 = vsel %vm439, %v1800, 0
    %1804 = vmatprep.subr.mxu0 0.0
    %1805 = vmatpush1.msra.mxu0 0.0
    %1806 = vmatprep.subr.mxu0 0.0
    %1807 = vmatpush1.msra.mxu0 0.0
    %1808 = vmatprep.subr.mxu0 0.0
    %1809 = vmatpush1.msra.mxu0 0.0
    %1810 = vmatprep.subr.mxu0 0.0
    %1811 = vmatpush1.msra.mxu0 0.0
    %1812 = vmatprep.subr.mxu0 0.0
    %1813 = vmatpush1.msra.mxu0 0.0
    %1814 = vmatprep.subr.mxu0 0.0
    %1815 = vmatpush1.msra.mxu0 0.0
    %1816 = vmatprep.subr.mxu0 0.0
    %1817 = vmatpush1.msra.mxu0 0.0
    %1818 = vmatprep.subr.mxu0 0.0
    %1819 = vmatpush1.msra.mxu0 0.0
    %1820 = vmatprep.subr.mxu0 0.0
    %1821 = vmatpush1.msra.mxu0 0.0
    %1822 = vmatprep.subr.mxu0 0.0
    %1823 = vmatpush1.msra.mxu0 0.0
    %1824 = vmatprep.subr.mxu0 0.0
    %1825 = vmatpush1.msra.mxu0 0.0
    %1826 = vmatprep.subr.mxu0 0.0
    %1827 = vmatpush1.msra.mxu0 0.0
    %1828 = vmatprep.subr.mxu0 0.0
    %1829 = vmatpush1.msra.mxu0 %v761
    %1830 = vmatprep.subr.mxu0 0.0
    %1831 = vmatpush1.msra.mxu0 %v760
    %1832 = vmatprep.subr.mxu0 0.0
    %1833 = vmatpush1.msra.mxu0 %v759
    %1834 = vmatprep.subr.mxu0 0.0
    %1835 = vmatpush1.msra.mxu0 %v758
    %1836 = vmatprep.subr.mxu0 0.0
    %1837 = vmatpush2.msra.mxu0 0.0
    %1838 = vmatprep.subr.mxu0 0.0
    %1839 = vmatpush2.msra.mxu0 0.0
    %1840 = vmatprep.subr.mxu0 0.0
    %1841 = vmatpush2.msra.mxu0 0.0
    %1842 = vmatprep.subr.mxu0 0.0
    %1843 = vmatpush2.msra.mxu0 0.0
    %1844 = vmatprep.subr.mxu0 0.0
    %1845 = vmatpush2.msra.mxu0 0.0
    %1846 = vmatprep.subr.mxu0 0.0
    %1847 = vmatpush2.msra.mxu0 0.0
    %1848 = vmatprep.subr.mxu0 0.0
    %1849 = vmatpush2.msra.mxu0 0.0
    %1850 = vmatprep.subr.mxu0 0.0
    %1851 = vmatpush2.msra.mxu0 0.0
    %1852 = vmatprep.subr.mxu0 0.0
    %1853 = vmatpush2.msra.mxu0 0.0
    %1854 = vmatprep.subr.mxu0 0.0
    %1855 = vmatpush2.msra.mxu0 0.0
    %1856 = vmatprep.subr.mxu0 0.0
    %1857 = vmatpush2.msra.mxu0 0.0
    %1858 = vmatprep.subr.mxu0 0.0
    %1859 = vmatpush2.msra.mxu0 0.0
    %1860 = vmatprep.subr.mxu0 0.0
    %1861 = vmatpush2.msra.mxu0 0.0
    %1862 = vmatprep.subr.mxu0 0.0
    %1863 = vmatpush2.msra.mxu0 0.0
    %1864 = vmatprep.subr.mxu0 0.0
    %1865 = vmatpush2.msra.mxu0 0.0
    %1866 = vmatprep.subr.mxu0 0.0
    %1867 = vmatpush2.msra.mxu0 0.0
    %1868 = vmatprep.mubr.f32.mxu0 0.0
    %1869 = vmatmul.mubr.f32.gmra.mxu0 %v1802
    %v1870 = vpop.f32.mrf.mxu0
    %v1871 = vadd.f32 %v767, %v1870
    %v1872 = vpop.f32.mrf.mxu0
    %1873 = vdwg.mxu0
    %v1874 = vmax.f32 %v1871, 0.0
    %v1875 = vand.u32 2147483647, %v1871
    %v1876 = vsub.f32 0.0, %v1875
    %v1877 = vmul.f32 %v1876, 1.442695
    %v1878 = vpow.pop %v1877
    %v1879 = vadd.f32 %v1878, 1.0
    %v1880 = vlog2.pop %v1879
    %v1881 = vmul.f32 %v1880, 0.6931472
    %v1882 = vmul.f32 -0.5, %v1878
    %v1883 = vadd.f32 %v1882, 1.0
    %v1884 = vmul.f32 %v1883, %v1878
    %v1885 = vand.u32 2147483647, %v1878
    %vm1886 = vcmp.lt.f32.partialorder %v1885, 0.0004427343
    %v1887 = vsel %vm1886, %v1884, %v1881
    %v1888 = vadd.f32 %v1874, %v1887
    %v1889 = vsel %vm784, %v1871, %v1888
    %1891 = vrot.lane.b32.xlu0 %v1889, 112
    %v1892 = vpop.permute.xlu0 %1891
    %v1894 = vmul.f32 %v1649, %v1892
    %v1895 = vadd.f32 %v1894, %v1871
    %v1897 = vsel %vm299, %v1895, 0
    %1899 = vmatprep.subr.mxu0 0.0
    %1900 = vmatpush1.msra.mxu0 0.0
    %1901 = vmatprep.subr.mxu0 0.0
    %1902 = vmatpush1.msra.mxu0 0.0
    %1903 = vmatprep.subr.mxu0 0.0
    %1904 = vmatpush1.msra.mxu0 0.0
    %1905 = vmatprep.subr.mxu0 0.0
    %1906 = vmatpush1.msra.mxu0 0.0
    %1907 = vmatprep.subr.mxu0 0.0
    %1908 = vmatpush1.msra.mxu0 0.0
    %1909 = vmatprep.subr.mxu0 0.0
    %1910 = vmatpush1.msra.mxu0 0.0
    %1911 = vmatprep.subr.mxu0 0.0
    %1912 = vmatpush1.msra.mxu0 0.0
    %1913 = vmatprep.subr.mxu0 0.0
    %1914 = vmatpush1.msra.mxu0 0.0
    %1915 = vmatprep.subr.mxu0 0.0
    %1916 = vmatpush1.msra.mxu0 0.0
    %1917 = vmatprep.subr.mxu0 0.0
    %1918 = vmatpush1.msra.mxu0 0.0
    %1919 = vmatprep.subr.mxu0 0.0
    %1920 = vmatpush1.msra.mxu0 0.0
    %1921 = vmatprep.subr.mxu0 0.0
    %1922 = vmatpush1.msra.mxu0 0.0
    %1923 = vmatprep.subr.mxu0 0.0
    %1924 = vmatpush1.msra.mxu0 0.0
    %1925 = vmatprep.subr.mxu0 0.0
    %1926 = vmatpush1.msra.mxu0 0.0
    %1927 = vmatprep.subr.mxu0 0.0
    %1928 = vmatpush1.msra.mxu0 %v770
    %1929 = vmatprep.subr.mxu0 0.0
    %1930 = vmatpush1.msra.mxu0 %v769
    %1931 = vmatprep.subr.mxu0 0.0
    %1932 = vmatpush2.msra.mxu0 0.0
    %1933 = vmatprep.subr.mxu0 0.0
    %1934 = vmatpush2.msra.mxu0 0.0
    %1935 = vmatprep.subr.mxu0 0.0
    %1936 = vmatpush2.msra.mxu0 0.0
    %1937 = vmatprep.subr.mxu0 0.0
    %1938 = vmatpush2.msra.mxu0 0.0
    %1939 = vmatprep.subr.mxu0 0.0
    %1940 = vmatpush2.msra.mxu0 0.0
    %1941 = vmatprep.subr.mxu0 0.0
    %1942 = vmatpush2.msra.mxu0 0.0
    %1943 = vmatprep.subr.mxu0 0.0
    %1944 = vmatpush2.msra.mxu0 0.0
    %1945 = vmatprep.subr.mxu0 0.0
    %1946 = vmatpush2.msra.mxu0 0.0
    %1947 = vmatprep.subr.mxu0 0.0
    %1948 = vmatpush2.msra.mxu0 0.0
    %1949 = vmatprep.subr.mxu0 0.0
    %1950 = vmatpush2.msra.mxu0 0.0
    %1951 = vmatprep.subr.mxu0 0.0
    %1952 = vmatpush2.msra.mxu0 0.0
    %1953 = vmatprep.subr.mxu0 0.0
    %1954 = vmatpush2.msra.mxu0 0.0
    %1955 = vmatprep.subr.mxu0 0.0
    %1956 = vmatpush2.msra.mxu0 0.0
    %1957 = vmatprep.subr.mxu0 0.0
    %1958 = vmatpush2.msra.mxu0 0.0
    %1959 = vmatprep.subr.mxu0 0.0
    %1960 = vmatpush2.msra.mxu0 0.0
    %1961 = vmatprep.subr.mxu0 0.0
    %1962 = vmatpush2.msra.mxu0 0.0
    %1963 = vmatprep.mubr.f32.mxu0 0.0
    %1964 = vmatmul.mubr.f32.gmra.mxu0 %v1897
    %v1965 = vpop.f32.mrf.mxu0
    %v1966 = vadd.f32 %v776, %v1965
    %v1967 = vpop.f32.mrf.mxu0
    %1968 = vdwg.mxu0
    %v1969 = vmax.f32 %v1966, 0.0
    %v1971 = vsel %vm439, %v1969, 0
    %1973 = vmatprep.subr.mxu0 0.0
    %1974 = vmatpush1.msra.mxu0 0.0
    %1975 = vmatprep.subr.mxu0 0.0
    %1976 = vmatpush1.msra.mxu0 0.0
    %1977 = vmatprep.subr.mxu0 0.0
    %1978 = vmatpush1.msra.mxu0 0.0
    %1979 = vmatprep.subr.mxu0 0.0
    %1980 = vmatpush1.msra.mxu0 0.0
    %1981 = vmatprep.subr.mxu0 0.0
    %1982 = vmatpush1.msra.mxu0 0.0
    %1983 = vmatprep.subr.mxu0 0.0
    %1984 = vmatpush1.msra.mxu0 0.0
    %1985 = vmatprep.subr.mxu0 0.0
    %1986 = vmatpush1.msra.mxu0 0.0
    %1987 = vmatprep.subr.mxu0 0.0
    %1988 = vmatpush1.msra.mxu0 0.0
    %1989 = vmatprep.subr.mxu0 0.0
    %1990 = vmatpush1.msra.mxu0 0.0
    %1991 = vmatprep.subr.mxu0 0.0
    %1992 = vmatpush1.msra.mxu0 0.0
    %1993 = vmatprep.subr.mxu0 0.0
    %1994 = vmatpush1.msra.mxu0 0.0
    %1995 = vmatprep.subr.mxu0 0.0
    %1996 = vmatpush1.msra.mxu0 0.0
    %1997 = vmatprep.subr.mxu0 0.0
    %1998 = vmatpush1.msra.mxu0 %v781
    %1999 = vmatprep.subr.mxu0 0.0
    %2000 = vmatpush1.msra.mxu0 %v780
    %2001 = vmatprep.subr.mxu0 0.0
    %2002 = vmatpush1.msra.mxu0 %v779
    %2003 = vmatprep.subr.mxu0 0.0
    %2004 = vmatpush1.msra.mxu0 %v778
    %2005 = vmatprep.subr.mxu0 0.0
    %2006 = vmatpush2.msra.mxu0 0.0
    %2007 = vmatprep.subr.mxu0 0.0
    %2008 = vmatpush2.msra.mxu0 0.0
    %2009 = vmatprep.subr.mxu0 0.0
    %2010 = vmatpush2.msra.mxu0 0.0
    %2011 = vmatprep.subr.mxu0 0.0
    %2012 = vmatpush2.msra.mxu0 0.0
    %2013 = vmatprep.subr.mxu0 0.0
    %2014 = vmatpush2.msra.mxu0 0.0
    %2015 = vmatprep.subr.mxu0 0.0
    %2016 = vmatpush2.msra.mxu0 0.0
    %2017 = vmatprep.subr.mxu0 0.0
    %2018 = vmatpush2.msra.mxu0 0.0
    %2019 = vmatprep.subr.mxu0 0.0
    %2020 = vmatpush2.msra.mxu0 0.0
    %2021 = vmatprep.subr.mxu0 0.0
    %2022 = vmatpush2.msra.mxu0 0.0
    %2023 = vmatprep.subr.mxu0 0.0
    %2024 = vmatpush2.msra.mxu0 0.0
    %2025 = vmatprep.subr.mxu0 0.0
    %2026 = vmatpush2.msra.mxu0 0.0
    %2027 = vmatprep.subr.mxu0 0.0
    %2028 = vmatpush2.msra.mxu0 0.0
    %2029 = vmatprep.subr.mxu0 0.0
    %2030 = vmatpush2.msra.mxu0 0.0
    %2031 = vmatprep.subr.mxu0 0.0
    %2032 = vmatpush2.msra.mxu0 0.0
    %2033 = vmatprep.subr.mxu0 0.0
    %2034 = vmatpush2.msra.mxu0 0.0
    %2035 = vmatprep.subr.mxu0 0.0
    %2036 = vmatpush2.msra.mxu0 0.0
    %2037 = vmatprep.mubr.f32.mxu0 0.0
    %2038 = vmatmul.mubr.f32.gmra.mxu0 %v1971
    %v2039 = vpop.f32.mrf.mxu0
    %v2040 = vadd.f32 0.0, %v2039
    %v2041 = vpop.f32.mrf.mxu0
    %2042 = vdwg.mxu0
    %v2043 = vadd.f32 %v1647, %v2040
    %2045 = vrot.lane.b32.xlu0 %v1722, 96
    %v2046 = vpop.permute.xlu0 %2045
    %v2048 = vadd.f32 %v2043, %v2046
    %v2049 = vmul.f32 %v2048, 0.5
    %v2050 = vtanh.pop %v2049
    %v2051 = vadd.f32 %v2050, 1.0
    %v2052 = vmul.f32 %v2051, 0.5
    %2053 = vrot.lane.b32.xlu0 %v1722, 32
    %v2054 = vpop.permute.xlu0 %2053
    %v2056 = vmul.f32 %v2052, %v2054
    %2058 = vrot.lane.b32.xlu0 %v2056, 64
    %v2059 = vpop.permute.xlu0 %2058
    %v2061 = vadd.f32 %v2043, %v2059
    %v2062 = vtanh.pop %v2061
    %s2064 = scalar_lea.vmem [#allocation4], 16
    %2065 = vst.msk [vmem:[%s2064] sm:$0xff] %vm439, %v1652
    %s2066 = scalar_lea.vmem [#allocation5], 16
    %2067 = vst.msk [vmem:[%s2066] sm:$0xff] %vm439, %v1969
    %s2068 = scalar_lea.vmem %s25, 16
    %2069 = vst.msk [vmem:[%s2068] sm:$0xff] %vm439, %v1889
    %v2070 = vsub.f32 1.0, %v2052
    %2072 = vrot.lane.b32.xlu0 %v2062, 96
    %v2073 = vpop.permute.xlu0 %2072
    %v2075 = vmul.f32 %v2070, %v2073
    %v2076 = vmul.f32 %v2052, %v1643
    %v2077 = vadd.f32 %v2075, %v2076
    %s2078 = scalar_lea.vmem [#allocation2], 24
    %v2079 = vld [vmem:[%s2078] sm:$0xff]
    %s2080 = scalar_lea.vmem [#allocation3], 24
    %v2081 = vld [vmem:[%s2080] sm:$0xff]
    %s2082 = scalar_lea.vmem %s1, 24
    %v2083 = vld [vmem:[%s2082] sm:$0xff]
    %2085 = vrot.lane.b32.xlu0 %v2077, 96
    %v2086 = vpop.permute.xlu0 %2085
    %v2087 = vsel %vm439, %v2086, 0
    %2089 = vmatprep.subr.mxu0 0.0
    %2090 = vmatpush1.msra.mxu0 0.0
    %2091 = vmatprep.subr.mxu0 0.0
    %2092 = vmatpush1.msra.mxu0 0.0
    %2093 = vmatprep.subr.mxu0 0.0
    %2094 = vmatpush1.msra.mxu0 0.0
    %2095 = vmatprep.subr.mxu0 0.0
    %2096 = vmatpush1.msra.mxu0 0.0
    %2097 = vmatprep.subr.mxu0 0.0
    %2098 = vmatpush1.msra.mxu0 0.0
    %2099 = vmatprep.subr.mxu0 0.0
    %2100 = vmatpush1.msra.mxu0 0.0
    %2101 = vmatprep.subr.mxu0 0.0
    %2102 = vmatpush1.msra.mxu0 0.0
    %2103 = vmatprep.subr.mxu0 0.0
    %2104 = vmatpush1.msra.mxu0 0.0
    %2105 = vmatprep.subr.mxu0 0.0
    %2106 = vmatpush1.msra.mxu0 0.0
    %2107 = vmatprep.subr.mxu0 0.0
    %2108 = vmatpush1.msra.mxu0 0.0
    %2109 = vmatprep.subr.mxu0 0.0
    %2110 = vmatpush1.msra.mxu0 0.0
    %2111 = vmatprep.subr.mxu0 0.0
    %2112 = vmatpush1.msra.mxu0 0.0
    %2113 = vmatprep.subr.mxu0 0.0
    %2114 = vmatpush1.msra.mxu0 %v746
    %2115 = vmatprep.subr.mxu0 0.0
    %2116 = vmatpush1.msra.mxu0 %v745
    %2117 = vmatprep.subr.mxu0 0.0
    %2118 = vmatpush1.msra.mxu0 %v744
    %2119 = vmatprep.subr.mxu0 0.0
    %2120 = vmatpush1.msra.mxu0 %v743
    %2121 = vmatprep.subr.mxu0 0.0
    %2122 = vmatpush2.msra.mxu0 0.0
    %2123 = vmatprep.subr.mxu0 0.0
    %2124 = vmatpush2.msra.mxu0 0.0
    %2125 = vmatprep.subr.mxu0 0.0
    %2126 = vmatpush2.msra.mxu0 0.0
    %2127 = vmatprep.subr.mxu0 0.0
    %2128 = vmatpush2.msra.mxu0 0.0
    %2129 = vmatprep.subr.mxu0 0.0
    %2130 = vmatpush2.msra.mxu0 0.0
    %2131 = vmatprep.subr.mxu0 0.0
    %2132 = vmatpush2.msra.mxu0 0.0
    %2133 = vmatprep.subr.mxu0 0.0
    %2134 = vmatpush2.msra.mxu0 0.0
    %2135 = vmatprep.subr.mxu0 0.0
    %2136 = vmatpush2.msra.mxu0 0.0
    %2137 = vmatprep.subr.mxu0 0.0
    %2138 = vmatpush2.msra.mxu0 0.0
    %2139 = vmatprep.subr.mxu0 0.0
    %2140 = vmatpush2.msra.mxu0 0.0
    %2141 = vmatprep.subr.mxu0 0.0
    %2142 = vmatpush2.msra.mxu0 0.0
    %2143 = vmatprep.subr.mxu0 0.0
    %2144 = vmatpush2.msra.mxu0 0.0
    %2145 = vmatprep.subr.mxu0 0.0
    %2146 = vmatpush2.msra.mxu0 0.0
    %2147 = vmatprep.subr.mxu0 0.0
    %2148 = vmatpush2.msra.mxu0 0.0
    %2149 = vmatprep.subr.mxu0 0.0
    %2150 = vmatpush2.msra.mxu0 0.0
    %2151 = vmatprep.subr.mxu0 0.0
    %2152 = vmatpush2.msra.mxu0 0.0
    %2153 = vmatprep.mubr.f32.mxu0 0.0
    %2154 = vmatmul.mubr.f32.gmra.mxu0 %v2087
    %v2155 = vpop.f32.mrf.mxu0
    %v2156 = vadd.f32 0.0, %v2155
    %v2157 = vpop.f32.mrf.mxu0
    %2158 = vdwg.mxu0
    %v2159 = vadd.f32 %v2079, %v2156
    %v2160 = vmax.f32 %v2159, 0.0
    %v2162 = vsel %vm439, %v2160, 0
    %2164 = vmatprep.subr.mxu0 0.0
    %2165 = vmatpush1.msra.mxu0 0.0
    %2166 = vmatprep.subr.mxu0 0.0
    %2167 = vmatpush1.msra.mxu0 0.0
    %2168 = vmatprep.subr.mxu0 0.0
    %2169 = vmatpush1.msra.mxu0 0.0
    %2170 = vmatprep.subr.mxu0 0.0
    %2171 = vmatpush1.msra.mxu0 0.0
    %2172 = vmatprep.subr.mxu0 0.0
    %2173 = vmatpush1.msra.mxu0 0.0
    %2174 = vmatprep.subr.mxu0 0.0
    %2175 = vmatpush1.msra.mxu0 0.0
    %2176 = vmatprep.subr.mxu0 0.0
    %2177 = vmatpush1.msra.mxu0 0.0
    %2178 = vmatprep.subr.mxu0 0.0
    %2179 = vmatpush1.msra.mxu0 0.0
    %2180 = vmatprep.subr.mxu0 0.0
    %2181 = vmatpush1.msra.mxu0 0.0
    %2182 = vmatprep.subr.mxu0 0.0
    %2183 = vmatpush1.msra.mxu0 0.0
    %2184 = vmatprep.subr.mxu0 0.0
    %2185 = vmatpush1.msra.mxu0 0.0
    %2186 = vmatprep.subr.mxu0 0.0
    %2187 = vmatpush1.msra.mxu0 0.0
    %2188 = vmatprep.subr.mxu0 0.0
    %2189 = vmatpush1.msra.mxu0 %v750
    %2190 = vmatprep.subr.mxu0 0.0
    %2191 = vmatpush1.msra.mxu0 %v749
    %2192 = vmatprep.subr.mxu0 0.0
    %2193 = vmatpush1.msra.mxu0 %v748
    %2194 = vmatprep.subr.mxu0 0.0
    %2195 = vmatpush1.msra.mxu0 %v747
    %2196 = vmatprep.subr.mxu0 0.0
    %2197 = vmatpush2.msra.mxu0 0.0
    %2198 = vmatprep.subr.mxu0 0.0
    %2199 = vmatpush2.msra.mxu0 0.0
    %2200 = vmatprep.subr.mxu0 0.0
    %2201 = vmatpush2.msra.mxu0 0.0
    %2202 = vmatprep.subr.mxu0 0.0
    %2203 = vmatpush2.msra.mxu0 0.0
    %2204 = vmatprep.subr.mxu0 0.0
    %2205 = vmatpush2.msra.mxu0 0.0
    %2206 = vmatprep.subr.mxu0 0.0
    %2207 = vmatpush2.msra.mxu0 0.0
    %2208 = vmatprep.subr.mxu0 0.0
    %2209 = vmatpush2.msra.mxu0 0.0
    %2210 = vmatprep.subr.mxu0 0.0
    %2211 = vmatpush2.msra.mxu0 0.0
    %2212 = vmatprep.subr.mxu0 0.0
    %2213 = vmatpush2.msra.mxu0 0.0
    %2214 = vmatprep.subr.mxu0 0.0
    %2215 = vmatpush2.msra.mxu0 0.0
    %2216 = vmatprep.subr.mxu0 0.0
    %2217 = vmatpush2.msra.mxu0 0.0
    %2218 = vmatprep.subr.mxu0 0.0
    %2219 = vmatpush2.msra.mxu0 0.0
    %2220 = vmatprep.subr.mxu0 0.0
    %2221 = vmatpush2.msra.mxu0 0.0
    %2222 = vmatprep.subr.mxu0 0.0
    %2223 = vmatpush2.msra.mxu0 0.0
    %2224 = vmatprep.subr.mxu0 0.0
    %2225 = vmatpush2.msra.mxu0 0.0
    %2226 = vmatprep.subr.mxu0 0.0
    %2227 = vmatpush2.msra.mxu0 0.0
    %2228 = vmatprep.mubr.f32.mxu0 0.0
    %2229 = vmatmul.mubr.f32.gmra.mxu0 %v2162
    %v2230 = vpop.f32.mrf.mxu0
    %v2231 = vadd.f32 %v756, %v2230
    %v2232 = vpop.f32.mrf.mxu0
    %2233 = vdwg.mxu0
    %v2234 = vmax.f32 %v2231, 0.0
    %v2236 = vsel %vm439, %v2234, 0
    %2238 = vmatprep.subr.mxu0 0.0
    %2239 = vmatpush1.msra.mxu0 0.0
    %2240 = vmatprep.subr.mxu0 0.0
    %2241 = vmatpush1.msra.mxu0 0.0
    %2242 = vmatprep.subr.mxu0 0.0
    %2243 = vmatpush1.msra.mxu0 0.0
    %2244 = vmatprep.subr.mxu0 0.0
    %2245 = vmatpush1.msra.mxu0 0.0
    %2246 = vmatprep.subr.mxu0 0.0
    %2247 = vmatpush1.msra.mxu0 0.0
    %2248 = vmatprep.subr.mxu0 0.0
    %2249 = vmatpush1.msra.mxu0 0.0
    %2250 = vmatprep.subr.mxu0 0.0
    %2251 = vmatpush1.msra.mxu0 0.0
    %2252 = vmatprep.subr.mxu0 0.0
    %2253 = vmatpush1.msra.mxu0 0.0
    %2254 = vmatprep.subr.mxu0 0.0
    %2255 = vmatpush1.msra.mxu0 0.0
    %2256 = vmatprep.subr.mxu0 0.0
    %2257 = vmatpush1.msra.mxu0 0.0
    %2258 = vmatprep.subr.mxu0 0.0
    %2259 = vmatpush1.msra.mxu0 0.0
    %2260 = vmatprep.subr.mxu0 0.0
    %2261 = vmatpush1.msra.mxu0 0.0
    %2262 = vmatprep.subr.mxu0 0.0
    %2263 = vmatpush1.msra.mxu0 %v761
    %2264 = vmatprep.subr.mxu0 0.0
    %2265 = vmatpush1.msra.mxu0 %v760
    %2266 = vmatprep.subr.mxu0 0.0
    %2267 = vmatpush1.msra.mxu0 %v759
    %2268 = vmatprep.subr.mxu0 0.0
    %2269 = vmatpush1.msra.mxu0 %v758
    %2270 = vmatprep.subr.mxu0 0.0
    %2271 = vmatpush2.msra.mxu0 0.0
    %2272 = vmatprep.subr.mxu0 0.0
    %2273 = vmatpush2.msra.mxu0 0.0
    %2274 = vmatprep.subr.mxu0 0.0
    %2275 = vmatpush2.msra.mxu0 0.0
    %2276 = vmatprep.subr.mxu0 0.0
    %2277 = vmatpush2.msra.mxu0 0.0
    %2278 = vmatprep.subr.mxu0 0.0
    %2279 = vmatpush2.msra.mxu0 0.0
    %2280 = vmatprep.subr.mxu0 0.0
    %2281 = vmatpush2.msra.mxu0 0.0
    %2282 = vmatprep.subr.mxu0 0.0
    %2283 = vmatpush2.msra.mxu0 0.0
    %2284 = vmatprep.subr.mxu0 0.0
    %2285 = vmatpush2.msra.mxu0 0.0
    %2286 = vmatprep.subr.mxu0 0.0
    %2287 = vmatpush2.msra.mxu0 0.0
    %2288 = vmatprep.subr.mxu0 0.0
    %2289 = vmatpush2.msra.mxu0 0.0
    %2290 = vmatprep.subr.mxu0 0.0
    %2291 = vmatpush2.msra.mxu0 0.0
    %2292 = vmatprep.subr.mxu0 0.0
    %2293 = vmatpush2.msra.mxu0 0.0
    %2294 = vmatprep.subr.mxu0 0.0
    %2295 = vmatpush2.msra.mxu0 0.0
    %2296 = vmatprep.subr.mxu0 0.0
    %2297 = vmatpush2.msra.mxu0 0.0
    %2298 = vmatprep.subr.mxu0 0.0
    %2299 = vmatpush2.msra.mxu0 0.0
    %2300 = vmatprep.subr.mxu0 0.0
    %2301 = vmatpush2.msra.mxu0 0.0
    %2302 = vmatprep.mubr.f32.mxu0 0.0
    %2303 = vmatmul.mubr.f32.gmra.mxu0 %v2236
    %v2304 = vpop.f32.mrf.mxu0
    %v2305 = vadd.f32 %v767, %v2304
    %v2306 = vpop.f32.mrf.mxu0
    %2307 = vdwg.mxu0
    %v2308 = vmax.f32 %v2305, 0.0
    %v2309 = vand.u32 2147483647, %v2305
    %v2310 = vsub.f32 0.0, %v2309
    %v2311 = vmul.f32 %v2310, 1.442695
    %v2312 = vpow.pop %v2311
    %v2313 = vadd.f32 %v2312, 1.0
    %v2314 = vlog2.pop %v2313
    %v2315 = vmul.f32 %v2314, 0.6931472
    %v2316 = vmul.f32 -0.5, %v2312
    %v2317 = vadd.f32 %v2316, 1.0
    %v2318 = vmul.f32 %v2317, %v2312
    %v2319 = vand.u32 2147483647, %v2312
    %vm2320 = vcmp.lt.f32.partialorder %v2319, 0.0004427343
    %v2321 = vsel %vm2320, %v2318, %v2315
    %v2322 = vadd.f32 %v2308, %v2321
    %v2323 = vsel %vm784, %v2305, %v2322
    %2325 = vrot.lane.b32.xlu0 %v2323, 112
    %v2326 = vpop.permute.xlu0 %2325
    %v2328 = vmul.f32 %v2083, %v2326
    %v2329 = vadd.f32 %v2328, %v2305
    %v2331 = vsel %vm299, %v2329, 0
    %2333 = vmatprep.subr.mxu0 0.0
    %2334 = vmatpush1.msra.mxu0 0.0
    %2335 = vmatprep.subr.mxu0 0.0
    %2336 = vmatpush1.msra.mxu0 0.0
    %2337 = vmatprep.subr.mxu0 0.0
    %2338 = vmatpush1.msra.mxu0 0.0
    %2339 = vmatprep.subr.mxu0 0.0
    %2340 = vmatpush1.msra.mxu0 0.0
    %2341 = vmatprep.subr.mxu0 0.0
    %2342 = vmatpush1.msra.mxu0 0.0
    %2343 = vmatprep.subr.mxu0 0.0
    %2344 = vmatpush1.msra.mxu0 0.0
    %2345 = vmatprep.subr.mxu0 0.0
    %2346 = vmatpush1.msra.mxu0 0.0
    %2347 = vmatprep.subr.mxu0 0.0
    %2348 = vmatpush1.msra.mxu0 0.0
    %2349 = vmatprep.subr.mxu0 0.0
    %2350 = vmatpush1.msra.mxu0 0.0
    %2351 = vmatprep.subr.mxu0 0.0
    %2352 = vmatpush1.msra.mxu0 0.0
    %2353 = vmatprep.subr.mxu0 0.0
    %2354 = vmatpush1.msra.mxu0 0.0
    %2355 = vmatprep.subr.mxu0 0.0
    %2356 = vmatpush1.msra.mxu0 0.0
    %2357 = vmatprep.subr.mxu0 0.0
    %2358 = vmatpush1.msra.mxu0 0.0
    %2359 = vmatprep.subr.mxu0 0.0
    %2360 = vmatpush1.msra.mxu0 0.0
    %2361 = vmatprep.subr.mxu0 0.0
    %2362 = vmatpush1.msra.mxu0 %v770
    %2363 = vmatprep.subr.mxu0 0.0
    %2364 = vmatpush1.msra.mxu0 %v769
    %2365 = vmatprep.subr.mxu0 0.0
    %2366 = vmatpush2.msra.mxu0 0.0
    %2367 = vmatprep.subr.mxu0 0.0
    %2368 = vmatpush2.msra.mxu0 0.0
    %2369 = vmatprep.subr.mxu0 0.0
    %2370 = vmatpush2.msra.mxu0 0.0
    %2371 = vmatprep.subr.mxu0 0.0
    %2372 = vmatpush2.msra.mxu0 0.0
    %2373 = vmatprep.subr.mxu0 0.0
    %2374 = vmatpush2.msra.mxu0 0.0
    %2375 = vmatprep.subr.mxu0 0.0
    %2376 = vmatpush2.msra.mxu0 0.0
    %2377 = vmatprep.subr.mxu0 0.0
    %2378 = vmatpush2.msra.mxu0 0.0
    %2379 = vmatprep.subr.mxu0 0.0
    %2380 = vmatpush2.msra.mxu0 0.0
    %2381 = vmatprep.subr.mxu0 0.0
    %2382 = vmatpush2.msra.mxu0 0.0
    %2383 = vmatprep.subr.mxu0 0.0
    %2384 = vmatpush2.msra.mxu0 0.0
    %2385 = vmatprep.subr.mxu0 0.0
    %2386 = vmatpush2.msra.mxu0 0.0
    %2387 = vmatprep.subr.mxu0 0.0
    %2388 = vmatpush2.msra.mxu0 0.0
    %2389 = vmatprep.subr.mxu0 0.0
    %2390 = vmatpush2.msra.mxu0 0.0
    %2391 = vmatprep.subr.mxu0 0.0
    %2392 = vmatpush2.msra.mxu0 0.0
    %2393 = vmatprep.subr.mxu0 0.0
    %2394 = vmatpush2.msra.mxu0 0.0
    %2395 = vmatprep.subr.mxu0 0.0
    %2396 = vmatpush2.msra.mxu0 0.0
    %2397 = vmatprep.mubr.f32.mxu0 0.0
    %2398 = vmatmul.mubr.f32.gmra.mxu0 %v2331
    %v2399 = vpop.f32.mrf.mxu0
    %v2400 = vadd.f32 %v776, %v2399
    %v2401 = vpop.f32.mrf.mxu0
    %2402 = vdwg.mxu0
    %v2403 = vmax.f32 %v2400, 0.0
    %v2405 = vsel %vm439, %v2403, 0
    %2407 = vmatprep.subr.mxu0 0.0
    %2408 = vmatpush1.msra.mxu0 0.0
    %2409 = vmatprep.subr.mxu0 0.0
    %2410 = vmatpush1.msra.mxu0 0.0
    %2411 = vmatprep.subr.mxu0 0.0
    %2412 = vmatpush1.msra.mxu0 0.0
    %2413 = vmatprep.subr.mxu0 0.0
    %2414 = vmatpush1.msra.mxu0 0.0
    %2415 = vmatprep.subr.mxu0 0.0
    %2416 = vmatpush1.msra.mxu0 0.0
    %2417 = vmatprep.subr.mxu0 0.0
    %2418 = vmatpush1.msra.mxu0 0.0
    %2419 = vmatprep.subr.mxu0 0.0
    %2420 = vmatpush1.msra.mxu0 0.0
    %2421 = vmatprep.subr.mxu0 0.0
    %2422 = vmatpush1.msra.mxu0 0.0
    %2423 = vmatprep.subr.mxu0 0.0
    %2424 = vmatpush1.msra.mxu0 0.0
    %2425 = vmatprep.subr.mxu0 0.0
    %2426 = vmatpush1.msra.mxu0 0.0
    %2427 = vmatprep.subr.mxu0 0.0
    %2428 = vmatpush1.msra.mxu0 0.0
    %2429 = vmatprep.subr.mxu0 0.0
    %2430 = vmatpush1.msra.mxu0 0.0
    %2431 = vmatprep.subr.mxu0 0.0
    %2432 = vmatpush1.msra.mxu0 %v781
    %2433 = vmatprep.subr.mxu0 0.0
    %2434 = vmatpush1.msra.mxu0 %v780
    %2435 = vmatprep.subr.mxu0 0.0
    %2436 = vmatpush1.msra.mxu0 %v779
    %2437 = vmatprep.subr.mxu0 0.0
    %2438 = vmatpush1.msra.mxu0 %v778
    %2439 = vmatprep.subr.mxu0 0.0
    %2440 = vmatpush2.msra.mxu0 0.0
    %2441 = vmatprep.subr.mxu0 0.0
    %2442 = vmatpush2.msra.mxu0 0.0
    %2443 = vmatprep.subr.mxu0 0.0
    %2444 = vmatpush2.msra.mxu0 0.0
    %2445 = vmatprep.subr.mxu0 0.0
    %2446 = vmatpush2.msra.mxu0 0.0
    %2447 = vmatprep.subr.mxu0 0.0
    %2448 = vmatpush2.msra.mxu0 0.0
    %2449 = vmatprep.subr.mxu0 0.0
    %2450 = vmatpush2.msra.mxu0 0.0
    %2451 = vmatprep.subr.mxu0 0.0
    %2452 = vmatpush2.msra.mxu0 0.0
    %2453 = vmatprep.subr.mxu0 0.0
    %2454 = vmatpush2.msra.mxu0 0.0
    %2455 = vmatprep.subr.mxu0 0.0
    %2456 = vmatpush2.msra.mxu0 0.0
    %2457 = vmatprep.subr.mxu0 0.0
    %2458 = vmatpush2.msra.mxu0 0.0
    %2459 = vmatprep.subr.mxu0 0.0
    %2460 = vmatpush2.msra.mxu0 0.0
    %2461 = vmatprep.subr.mxu0 0.0
    %2462 = vmatpush2.msra.mxu0 0.0
    %2463 = vmatprep.subr.mxu0 0.0
    %2464 = vmatpush2.msra.mxu0 0.0
    %2465 = vmatprep.subr.mxu0 0.0
    %2466 = vmatpush2.msra.mxu0 0.0
    %2467 = vmatprep.subr.mxu0 0.0
    %2468 = vmatpush2.msra.mxu0 0.0
    %2469 = vmatprep.subr.mxu0 0.0
    %2470 = vmatpush2.msra.mxu0 0.0
    %2471 = vmatprep.mubr.f32.mxu0 0.0
    %2472 = vmatmul.mubr.f32.gmra.mxu0 %v2405
    %v2473 = vpop.f32.mrf.mxu0
    %v2474 = vadd.f32 0.0, %v2473
    %v2475 = vpop.f32.mrf.mxu0
    %2476 = vdwg.mxu0
    %v2477 = vadd.f32 %v2081, %v2474
    %2479 = vrot.lane.b32.xlu0 %v2156, 96
    %v2480 = vpop.permute.xlu0 %2479
    %v2482 = vadd.f32 %v2477, %v2480
    %v2483 = vmul.f32 %v2482, 0.5
    %v2484 = vtanh.pop %v2483
    %v2485 = vadd.f32 %v2484, 1.0
    %v2486 = vmul.f32 %v2485, 0.5
    %2487 = vrot.lane.b32.xlu0 %v2156, 32
    %v2488 = vpop.permute.xlu0 %2487
    %v2490 = vmul.f32 %v2486, %v2488
    %2492 = vrot.lane.b32.xlu0 %v2490, 64
    %v2493 = vpop.permute.xlu0 %2492
    %v2495 = vadd.f32 %v2477, %v2493
    %v2496 = vtanh.pop %v2495
    %s2498 = scalar_lea.vmem [#allocation4], 24
    %2499 = vst.msk [vmem:[%s2498] sm:$0xff] %vm439, %v2086
    %s2500 = scalar_lea.vmem [#allocation5], 24
    %2501 = vst.msk [vmem:[%s2500] sm:$0xff] %vm439, %v2403
    %s2502 = scalar_lea.vmem %s25, 24
    %2503 = vst.msk [vmem:[%s2502] sm:$0xff] %vm439, %v2323
    %v2504 = vsub.f32 1.0, %v2486
    %2506 = vrot.lane.b32.xlu0 %v2496, 96
    %v2507 = vpop.permute.xlu0 %2506
    %v2509 = vmul.f32 %v2504, %v2507
    %v2510 = vmul.f32 %v2486, %v2077
    %v2511 = vadd.f32 %v2509, %v2510
    %s2512 = scalar_lea.vmem [#allocation2], 32
    %v2513 = vld [vmem:[%s2512] sm:$0xff]
    %s2514 = scalar_lea.vmem [#allocation3], 32
    %v2515 = vld [vmem:[%s2514] sm:$0xff]
    %s2516 = scalar_lea.vmem %s1, 32
    %v2517 = vld [vmem:[%s2516] sm:$0xff]
    %2519 = vrot.lane.b32.xlu0 %v2511, 96
    %v2520 = vpop.permute.xlu0 %2519
    %v2521 = vsel %vm439, %v2520, 0
    %2523 = vmatprep.subr.mxu0 0.0
    %2524 = vmatpush1.msra.mxu0 0.0
    %2525 = vmatprep.subr.mxu0 0.0
    %2526 = vmatpush1.msra.mxu0 0.0
    %2527 = vmatprep.subr.mxu0 0.0
    %2528 = vmatpush1.msra.mxu0 0.0
    %2529 = vmatprep.subr.mxu0 0.0
    %2530 = vmatpush1.msra.mxu0 0.0
    %2531 = vmatprep.subr.mxu0 0.0
    %2532 = vmatpush1.msra.mxu0 0.0
    %2533 = vmatprep.subr.mxu0 0.0
    %2534 = vmatpush1.msra.mxu0 0.0
    %2535 = vmatprep.subr.mxu0 0.0
    %2536 = vmatpush1.msra.mxu0 0.0
    %2537 = vmatprep.subr.mxu0 0.0
    %2538 = vmatpush1.msra.mxu0 0.0
    %2539 = vmatprep.subr.mxu0 0.0
    %2540 = vmatpush1.msra.mxu0 0.0
    %2541 = vmatprep.subr.mxu0 0.0
    %2542 = vmatpush1.msra.mxu0 0.0
    %2543 = vmatprep.subr.mxu0 0.0
    %2544 = vmatpush1.msra.mxu0 0.0
    %2545 = vmatprep.subr.mxu0 0.0
    %2546 = vmatpush1.msra.mxu0 0.0
    %2547 = vmatprep.subr.mxu0 0.0
    %2548 = vmatpush1.msra.mxu0 %v746
    %2549 = vmatprep.subr.mxu0 0.0
    %2550 = vmatpush1.msra.mxu0 %v745
    %2551 = vmatprep.subr.mxu0 0.0
    %2552 = vmatpush1.msra.mxu0 %v744
    %2553 = vmatprep.subr.mxu0 0.0
    %2554 = vmatpush1.msra.mxu0 %v743
    %2555 = vmatprep.subr.mxu0 0.0
    %2556 = vmatpush2.msra.mxu0 0.0
    %2557 = vmatprep.subr.mxu0 0.0
    %2558 = vmatpush2.msra.mxu0 0.0
    %2559 = vmatprep.subr.mxu0 0.0
    %2560 = vmatpush2.msra.mxu0 0.0
    %2561 = vmatprep.subr.mxu0 0.0
    %2562 = vmatpush2.msra.mxu0 0.0
    %2563 = vmatprep.subr.mxu0 0.0
    %2564 = vmatpush2.msra.mxu0 0.0
    %2565 = vmatprep.subr.mxu0 0.0
    %2566 = vmatpush2.msra.mxu0 0.0
    %2567 = vmatprep.subr.mxu0 0.0
    %2568 = vmatpush2.msra.mxu0 0.0
    %2569 = vmatprep.subr.mxu0 0.0
    %2570 = vmatpush2.msra.mxu0 0.0
    %2571 = vmatprep.subr.mxu0 0.0
    %2572 = vmatpush2.msra.mxu0 0.0
    %2573 = vmatprep.subr.mxu0 0.0
    %2574 = vmatpush2.msra.mxu0 0.0
    %2575 = vmatprep.subr.mxu0 0.0
    %2576 = vmatpush2.msra.mxu0 0.0
    %2577 = vmatprep.subr.mxu0 0.0
    %2578 = vmatpush2.msra.mxu0 0.0
    %2579 = vmatprep.subr.mxu0 0.0
    %2580 = vmatpush2.msra.mxu0 0.0
    %2581 = vmatprep.subr.mxu0 0.0
    %2582 = vmatpush2.msra.mxu0 0.0
    %2583 = vmatprep.subr.mxu0 0.0
    %2584 = vmatpush2.msra.mxu0 0.0
    %2585 = vmatprep.subr.mxu0 0.0
    %2586 = vmatpush2.msra.mxu0 0.0
    %2587 = vmatprep.mubr.f32.mxu0 0.0
    %2588 = vmatmul.mubr.f32.gmra.mxu0 %v2521
    %v2589 = vpop.f32.mrf.mxu0
    %v2590 = vadd.f32 0.0, %v2589
    %v2591 = vpop.f32.mrf.mxu0
    %2592 = vdwg.mxu0
    %v2593 = vadd.f32 %v2513, %v2590
    %v2594 = vmax.f32 %v2593, 0.0
    %v2596 = vsel %vm439, %v2594, 0
    %2598 = vmatprep.subr.mxu0 0.0
    %2599 = vmatpush1.msra.mxu0 0.0
    %2600 = vmatprep.subr.mxu0 0.0
    %2601 = vmatpush1.msra.mxu0 0.0
    %2602 = vmatprep.subr.mxu0 0.0
    %2603 = vmatpush1.msra.mxu0 0.0
    %2604 = vmatprep.subr.mxu0 0.0
    %2605 = vmatpush1.msra.mxu0 0.0
    %2606 = vmatprep.subr.mxu0 0.0
    %2607 = vmatpush1.msra.mxu0 0.0
    %2608 = vmatprep.subr.mxu0 0.0
    %2609 = vmatpush1.msra.mxu0 0.0
    %2610 = vmatprep.subr.mxu0 0.0
    %2611 = vmatpush1.msra.mxu0 0.0
    %2612 = vmatprep.subr.mxu0 0.0
    %2613 = vmatpush1.msra.mxu0 0.0
    %2614 = vmatprep.subr.mxu0 0.0
    %2615 = vmatpush1.msra.mxu0 0.0
    %2616 = vmatprep.subr.mxu0 0.0
    %2617 = vmatpush1.msra.mxu0 0.0
    %2618 = vmatprep.subr.mxu0 0.0
    %2619 = vmatpush1.msra.mxu0 0.0
    %2620 = vmatprep.subr.mxu0 0.0
    %2621 = vmatpush1.msra.mxu0 0.0
    %2622 = vmatprep.subr.mxu0 0.0
    %2623 = vmatpush1.msra.mxu0 %v750
    %2624 = vmatprep.subr.mxu0 0.0
    %2625 = vmatpush1.msra.mxu0 %v749
    %2626 = vmatprep.subr.mxu0 0.0
    %2627 = vmatpush1.msra.mxu0 %v748
    %2628 = vmatprep.subr.mxu0 0.0
    %2629 = vmatpush1.msra.mxu0 %v747
    %2630 = vmatprep.subr.mxu0 0.0
    %2631 = vmatpush2.msra.mxu0 0.0
    %2632 = vmatprep.subr.mxu0 0.0
    %2633 = vmatpush2.msra.mxu0 0.0
    %2634 = vmatprep.subr.mxu0 0.0
    %2635 = vmatpush2.msra.mxu0 0.0
    %2636 = vmatprep.subr.mxu0 0.0
    %2637 = vmatpush2.msra.mxu0 0.0
    %2638 = vmatprep.subr.mxu0 0.0
    %2639 = vmatpush2.msra.mxu0 0.0
    %2640 = vmatprep.subr.mxu0 0.0
    %2641 = vmatpush2.msra.mxu0 0.0
    %2642 = vmatprep.subr.mxu0 0.0
    %2643 = vmatpush2.msra.mxu0 0.0
    %2644 = vmatprep.subr.mxu0 0.0
    %2645 = vmatpush2.msra.mxu0 0.0
    %2646 = vmatprep.subr.mxu0 0.0
    %2647 = vmatpush2.msra.mxu0 0.0
    %2648 = vmatprep.subr.mxu0 0.0
    %2649 = vmatpush2.msra.mxu0 0.0
    %2650 = vmatprep.subr.mxu0 0.0
    %2651 = vmatpush2.msra.mxu0 0.0
    %2652 = vmatprep.subr.mxu0 0.0
    %2653 = vmatpush2.msra.mxu0 0.0
    %2654 = vmatprep.subr.mxu0 0.0
    %2655 = vmatpush2.msra.mxu0 0.0
    %2656 = vmatprep.subr.mxu0 0.0
    %2657 = vmatpush2.msra.mxu0 0.0
    %2658 = vmatprep.subr.mxu0 0.0
    %2659 = vmatpush2.msra.mxu0 0.0
    %2660 = vmatprep.subr.mxu0 0.0
    %2661 = vmatpush2.msra.mxu0 0.0
    %2662 = vmatprep.mubr.f32.mxu0 0.0
    %2663 = vmatmul.mubr.f32.gmra.mxu0 %v2596
    %v2664 = vpop.f32.mrf.mxu0
    %v2665 = vadd.f32 %v756, %v2664
    %v2666 = vpop.f32.mrf.mxu0
    %2667 = vdwg.mxu0
    %v2668 = vmax.f32 %v2665, 0.0
    %v2670 = vsel %vm439, %v2668, 0
    %2672 = vmatprep.subr.mxu0 0.0
    %2673 = vmatpush1.msra.mxu0 0.0
    %2674 = vmatprep.subr.mxu0 0.0
    %2675 = vmatpush1.msra.mxu0 0.0
    %2676 = vmatprep.subr.mxu0 0.0
    %2677 = vmatpush1.msra.mxu0 0.0
    %2678 = vmatprep.subr.mxu0 0.0
    %2679 = vmatpush1.msra.mxu0 0.0
    %2680 = vmatprep.subr.mxu0 0.0
    %2681 = vmatpush1.msra.mxu0 0.0
    %2682 = vmatprep.subr.mxu0 0.0
    %2683 = vmatpush1.msra.mxu0 0.0
    %2684 = vmatprep.subr.mxu0 0.0
    %2685 = vmatpush1.msra.mxu0 0.0
    %2686 = vmatprep.subr.mxu0 0.0
    %2687 = vmatpush1.msra.mxu0 0.0
    %2688 = vmatprep.subr.mxu0 0.0
    %2689 = vmatpush1.msra.mxu0 0.0
    %2690 = vmatprep.subr.mxu0 0.0
    %2691 = vmatpush1.msra.mxu0 0.0
    %2692 = vmatprep.subr.mxu0 0.0
    %2693 = vmatpush1.msra.mxu0 0.0
    %2694 = vmatprep.subr.mxu0 0.0
    %2695 = vmatpush1.msra.mxu0 0.0
    %2696 = vmatprep.subr.mxu0 0.0
    %2697 = vmatpush1.msra.mxu0 %v761
    %2698 = vmatprep.subr.mxu0 0.0
    %2699 = vmatpush1.msra.mxu0 %v760
    %2700 = vmatprep.subr.mxu0 0.0
    %2701 = vmatpush1.msra.mxu0 %v759
    %2702 = vmatprep.subr.mxu0 0.0
    %2703 = vmatpush1.msra.mxu0 %v758
    %2704 = vmatprep.subr.mxu0 0.0
    %2705 = vmatpush2.msra.mxu0 0.0
    %2706 = vmatprep.subr.mxu0 0.0
    %2707 = vmatpush2.msra.mxu0 0.0
    %2708 = vmatprep.subr.mxu0 0.0
    %2709 = vmatpush2.msra.mxu0 0.0
    %2710 = vmatprep.subr.mxu0 0.0
    %2711 = vmatpush2.msra.mxu0 0.0
    %2712 = vmatprep.subr.mxu0 0.0
    %2713 = vmatpush2.msra.mxu0 0.0
    %2714 = vmatprep.subr.mxu0 0.0
    %2715 = vmatpush2.msra.mxu0 0.0
    %2716 = vmatprep.subr.mxu0 0.0
    %2717 = vmatpush2.msra.mxu0 0.0
    %2718 = vmatprep.subr.mxu0 0.0
    %2719 = vmatpush2.msra.mxu0 0.0
    %2720 = vmatprep.subr.mxu0 0.0
    %2721 = vmatpush2.msra.mxu0 0.0
    %2722 = vmatprep.subr.mxu0 0.0
    %2723 = vmatpush2.msra.mxu0 0.0
    %2724 = vmatprep.subr.mxu0 0.0
    %2725 = vmatpush2.msra.mxu0 0.0
    %2726 = vmatprep.subr.mxu0 0.0
    %2727 = vmatpush2.msra.mxu0 0.0
    %2728 = vmatprep.subr.mxu0 0.0
    %2729 = vmatpush2.msra.mxu0 0.0
    %2730 = vmatprep.subr.mxu0 0.0
    %2731 = vmatpush2.msra.mxu0 0.0
    %2732 = vmatprep.subr.mxu0 0.0
    %2733 = vmatpush2.msra.mxu0 0.0
    %2734 = vmatprep.subr.mxu0 0.0
    %2735 = vmatpush2.msra.mxu0 0.0
    %2736 = vmatprep.mubr.f32.mxu0 0.0
    %2737 = vmatmul.mubr.f32.gmra.mxu0 %v2670
    %v2738 = vpop.f32.mrf.mxu0
    %v2739 = vadd.f32 %v767, %v2738
    %v2740 = vpop.f32.mrf.mxu0
    %2741 = vdwg.mxu0
    %v2742 = vmax.f32 %v2739, 0.0
    %v2743 = vand.u32 2147483647, %v2739
    %v2744 = vsub.f32 0.0, %v2743
    %v2745 = vmul.f32 %v2744, 1.442695
    %v2746 = vpow.pop %v2745
    %v2747 = vadd.f32 %v2746, 1.0
    %v2748 = vlog2.pop %v2747
    %v2749 = vmul.f32 %v2748, 0.6931472
    %v2750 = vmul.f32 -0.5, %v2746
    %v2751 = vadd.f32 %v2750, 1.0
    %v2752 = vmul.f32 %v2751, %v2746
    %v2753 = vand.u32 2147483647, %v2746
    %vm2754 = vcmp.lt.f32.partialorder %v2753, 0.0004427343
    %v2755 = vsel %vm2754, %v2752, %v2749
    %v2756 = vadd.f32 %v2742, %v2755
    %v2757 = vsel %vm784, %v2739, %v2756
    %2759 = vrot.lane.b32.xlu0 %v2757, 112
    %v2760 = vpop.permute.xlu0 %2759
    %v2762 = vmul.f32 %v2517, %v2760
    %v2763 = vadd.f32 %v2762, %v2739
    %v2765 = vsel %vm299, %v2763, 0
    %2767 = vmatprep.subr.mxu0 0.0
    %2768 = vmatpush1.msra.mxu0 0.0
    %2769 = vmatprep.subr.mxu0 0.0
    %2770 = vmatpush1.msra.mxu0 0.0
    %2771 = vmatprep.subr.mxu0 0.0
    %2772 = vmatpush1.msra.mxu0 0.0
    %2773 = vmatprep.subr.mxu0 0.0
    %2774 = vmatpush1.msra.mxu0 0.0
    %2775 = vmatprep.subr.mxu0 0.0
    %2776 = vmatpush1.msra.mxu0 0.0
    %2777 = vmatprep.subr.mxu0 0.0
    %2778 = vmatpush1.msra.mxu0 0.0
    %2779 = vmatprep.subr.mxu0 0.0
    %2780 = vmatpush1.msra.mxu0 0.0
    %2781 = vmatprep.subr.mxu0 0.0
    %2782 = vmatpush1.msra.mxu0 0.0
    %2783 = vmatprep.subr.mxu0 0.0
    %2784 = vmatpush1.msra.mxu0 0.0
    %2785 = vmatprep.subr.mxu0 0.0
    %2786 = vmatpush1.msra.mxu0 0.0
    %2787 = vmatprep.subr.mxu0 0.0
    %2788 = vmatpush1.msra.mxu0 0.0
    %2789 = vmatprep.subr.mxu0 0.0
    %2790 = vmatpush1.msra.mxu0 0.0
    %2791 = vmatprep.subr.mxu0 0.0
    %2792 = vmatpush1.msra.mxu0 0.0
    %2793 = vmatprep.subr.mxu0 0.0
    %2794 = vmatpush1.msra.mxu0 0.0
    %2795 = vmatprep.subr.mxu0 0.0
    %2796 = vmatpush1.msra.mxu0 %v770
    %2797 = vmatprep.subr.mxu0 0.0
    %2798 = vmatpush1.msra.mxu0 %v769
    %2799 = vmatprep.subr.mxu0 0.0
    %2800 = vmatpush2.msra.mxu0 0.0
    %2801 = vmatprep.subr.mxu0 0.0
    %2802 = vmatpush2.msra.mxu0 0.0
    %2803 = vmatprep.subr.mxu0 0.0
    %2804 = vmatpush2.msra.mxu0 0.0
    %2805 = vmatprep.subr.mxu0 0.0
    %2806 = vmatpush2.msra.mxu0 0.0
    %2807 = vmatprep.subr.mxu0 0.0
    %2808 = vmatpush2.msra.mxu0 0.0
    %2809 = vmatprep.subr.mxu0 0.0
    %2810 = vmatpush2.msra.mxu0 0.0
    %2811 = vmatprep.subr.mxu0 0.0
    %2812 = vmatpush2.msra.mxu0 0.0
    %2813 = vmatprep.subr.mxu0 0.0
    %2814 = vmatpush2.msra.mxu0 0.0
    %2815 = vmatprep.subr.mxu0 0.0
    %2816 = vmatpush2.msra.mxu0 0.0
    %2817 = vmatprep.subr.mxu0 0.0
    %2818 = vmatpush2.msra.mxu0 0.0
    %2819 = vmatprep.subr.mxu0 0.0
    %2820 = vmatpush2.msra.mxu0 0.0
    %2821 = vmatprep.subr.mxu0 0.0
    %2822 = vmatpush2.msra.mxu0 0.0
    %2823 = vmatprep.subr.mxu0 0.0
    %2824 = vmatpush2.msra.mxu0 0.0
    %2825 = vmatprep.subr.mxu0 0.0
    %2826 = vmatpush2.msra.mxu0 0.0
    %2827 = vmatprep.subr.mxu0 0.0
    %2828 = vmatpush2.msra.mxu0 0.0
    %2829 = vmatprep.subr.mxu0 0.0
    %2830 = vmatpush2.msra.mxu0 0.0
    %2831 = vmatprep.mubr.f32.mxu0 0.0
    %2832 = vmatmul.mubr.f32.gmra.mxu0 %v2765
    %v2833 = vpop.f32.mrf.mxu0
    %v2834 = vadd.f32 %v776, %v2833
    %v2835 = vpop.f32.mrf.mxu0
    %2836 = vdwg.mxu0
    %v2837 = vmax.f32 %v2834, 0.0
    %v2839 = vsel %vm439, %v2837, 0
    %2841 = vmatprep.subr.mxu0 0.0
    %2842 = vmatpush1.msra.mxu0 0.0
    %2843 = vmatprep.subr.mxu0 0.0
    %2844 = vmatpush1.msra.mxu0 0.0
    %2845 = vmatprep.subr.mxu0 0.0
    %2846 = vmatpush1.msra.mxu0 0.0
    %2847 = vmatprep.subr.mxu0 0.0
    %2848 = vmatpush1.msra.mxu0 0.0
    %2849 = vmatprep.subr.mxu0 0.0
    %2850 = vmatpush1.msra.mxu0 0.0
    %2851 = vmatprep.subr.mxu0 0.0
    %2852 = vmatpush1.msra.mxu0 0.0
    %2853 = vmatprep.subr.mxu0 0.0
    %2854 = vmatpush1.msra.mxu0 0.0
    %2855 = vmatprep.subr.mxu0 0.0
    %2856 = vmatpush1.msra.mxu0 0.0
    %2857 = vmatprep.subr.mxu0 0.0
    %2858 = vmatpush1.msra.mxu0 0.0
    %2859 = vmatprep.subr.mxu0 0.0
    %2860 = vmatpush1.msra.mxu0 0.0
    %2861 = vmatprep.subr.mxu0 0.0
    %2862 = vmatpush1.msra.mxu0 0.0
    %2863 = vmatprep.subr.mxu0 0.0
    %2864 = vmatpush1.msra.mxu0 0.0
    %2865 = vmatprep.subr.mxu0 0.0
    %2866 = vmatpush1.msra.mxu0 %v781
    %2867 = vmatprep.subr.mxu0 0.0
    %2868 = vmatpush1.msra.mxu0 %v780
    %2869 = vmatprep.subr.mxu0 0.0
    %2870 = vmatpush1.msra.mxu0 %v779
    %2871 = vmatprep.subr.mxu0 0.0
    %2872 = vmatpush1.msra.mxu0 %v778
    %2873 = vmatprep.subr.mxu0 0.0
    %2874 = vmatpush2.msra.mxu0 0.0
    %2875 = vmatprep.subr.mxu0 0.0
    %2876 = vmatpush2.msra.mxu0 0.0
    %2877 = vmatprep.subr.mxu0 0.0
    %2878 = vmatpush2.msra.mxu0 0.0
    %2879 = vmatprep.subr.mxu0 0.0
    %2880 = vmatpush2.msra.mxu0 0.0
    %2881 = vmatprep.subr.mxu0 0.0
    %2882 = vmatpush2.msra.mxu0 0.0
    %2883 = vmatprep.subr.mxu0 0.0
    %2884 = vmatpush2.msra.mxu0 0.0
    %2885 = vmatprep.subr.mxu0 0.0
    %2886 = vmatpush2.msra.mxu0 0.0
    %2887 = vmatprep.subr.mxu0 0.0
    %2888 = vmatpush2.msra.mxu0 0.0
    %2889 = vmatprep.subr.mxu0 0.0
    %2890 = vmatpush2.msra.mxu0 0.0
    %2891 = vmatprep.subr.mxu0 0.0
    %2892 = vmatpush2.msra.mxu0 0.0
    %2893 = vmatprep.subr.mxu0 0.0
    %2894 = vmatpush2.msra.mxu0 0.0
    %2895 = vmatprep.subr.mxu0 0.0
    %2896 = vmatpush2.msra.mxu0 0.0
    %2897 = vmatprep.subr.mxu0 0.0
    %2898 = vmatpush2.msra.mxu0 0.0
    %2899 = vmatprep.subr.mxu0 0.0
    %2900 = vmatpush2.msra.mxu0 0.0
    %2901 = vmatprep.subr.mxu0 0.0
    %2902 = vmatpush2.msra.mxu0 0.0
    %2903 = vmatprep.subr.mxu0 0.0
    %2904 = vmatpush2.msra.mxu0 0.0
    %2905 = vmatprep.mubr.f32.mxu0 0.0
    %2906 = vmatmul.mubr.f32.gmra.mxu0 %v2839
    %v2907 = vpop.f32.mrf.mxu0
    %v2908 = vadd.f32 0.0, %v2907
    %v2909 = vpop.f32.mrf.mxu0
    %2910 = vdwg.mxu0
    %v2911 = vadd.f32 %v2515, %v2908
    %2913 = vrot.lane.b32.xlu0 %v2590, 96
    %v2914 = vpop.permute.xlu0 %2913
    %v2916 = vadd.f32 %v2911, %v2914
    %v2917 = vmul.f32 %v2916, 0.5
    %v2918 = vtanh.pop %v2917
    %v2919 = vadd.f32 %v2918, 1.0
    %v2920 = vmul.f32 %v2919, 0.5
    %2921 = vrot.lane.b32.xlu0 %v2590, 32
    %v2922 = vpop.permute.xlu0 %2921
    %v2924 = vmul.f32 %v2920, %v2922
    %2926 = vrot.lane.b32.xlu0 %v2924, 64
    %v2927 = vpop.permute.xlu0 %2926
    %v2929 = vadd.f32 %v2911, %v2927
    %v2930 = vtanh.pop %v2929
    %s2932 = scalar_lea.vmem [#allocation4], 32
    %2933 = vst.msk [vmem:[%s2932] sm:$0xff] %vm439, %v2520
    %s2934 = scalar_lea.vmem [#allocation5], 32
    %2935 = vst.msk [vmem:[%s2934] sm:$0xff] %vm439, %v2837
    %s2936 = scalar_lea.vmem %s25, 32
    %2937 = vst.msk [vmem:[%s2936] sm:$0xff] %vm439, %v2757
    %v2938 = vsub.f32 1.0, %v2920
    %2940 = vrot.lane.b32.xlu0 %v2930, 96
    %v2941 = vpop.permute.xlu0 %2940
    %v2943 = vmul.f32 %v2938, %v2941
    %v2944 = vmul.f32 %v2920, %v2511
    %v2945 = vadd.f32 %v2943, %v2944
    %s2946 = scalar_lea.vmem [#allocation2], 40
    %v2947 = vld [vmem:[%s2946] sm:$0xff]
    %s2948 = scalar_lea.vmem [#allocation3], 40
    %v2949 = vld [vmem:[%s2948] sm:$0xff]
    %s2950 = scalar_lea.vmem %s1, 40
    %v2951 = vld [vmem:[%s2950] sm:$0xff]
    %2953 = vrot.lane.b32.xlu0 %v2945, 96
    %v2954 = vpop.permute.xlu0 %2953
    %v2955 = vsel %vm439, %v2954, 0
    %2957 = vmatprep.subr.mxu0 0.0
    %2958 = vmatpush1.msra.mxu0 0.0
    %2959 = vmatprep.subr.mxu0 0.0
    %2960 = vmatpush1.msra.mxu0 0.0
    %2961 = vmatprep.subr.mxu0 0.0
    %2962 = vmatpush1.msra.mxu0 0.0
    %2963 = vmatprep.subr.mxu0 0.0
    %2964 = vmatpush1.msra.mxu0 0.0
    %2965 = vmatprep.subr.mxu0 0.0
    %2966 = vmatpush1.msra.mxu0 0.0
    %2967 = vmatprep.subr.mxu0 0.0
    %2968 = vmatpush1.msra.mxu0 0.0
    %2969 = vmatprep.subr.mxu0 0.0
    %2970 = vmatpush1.msra.mxu0 0.0
    %2971 = vmatprep.subr.mxu0 0.0
    %2972 = vmatpush1.msra.mxu0 0.0
    %2973 = vmatprep.subr.mxu0 0.0
    %2974 = vmatpush1.msra.mxu0 0.0
    %2975 = vmatprep.subr.mxu0 0.0
    %2976 = vmatpush1.msra.mxu0 0.0
    %2977 = vmatprep.subr.mxu0 0.0
    %2978 = vmatpush1.msra.mxu0 0.0
    %2979 = vmatprep.subr.mxu0 0.0
    %2980 = vmatpush1.msra.mxu0 0.0
    %2981 = vmatprep.subr.mxu0 0.0
    %2982 = vmatpush1.msra.mxu0 %v746
    %2983 = vmatprep.subr.mxu0 0.0
    %2984 = vmatpush1.msra.mxu0 %v745
    %2985 = vmatprep.subr.mxu0 0.0
    %2986 = vmatpush1.msra.mxu0 %v744
    %2987 = vmatprep.subr.mxu0 0.0
    %2988 = vmatpush1.msra.mxu0 %v743
    %2989 = vmatprep.subr.mxu0 0.0
    %2990 = vmatpush2.msra.mxu0 0.0
    %2991 = vmatprep.subr.mxu0 0.0
    %2992 = vmatpush2.msra.mxu0 0.0
    %2993 = vmatprep.subr.mxu0 0.0
    %2994 = vmatpush2.msra.mxu0 0.0
    %2995 = vmatprep.subr.mxu0 0.0
    %2996 = vmatpush2.msra.mxu0 0.0
    %2997 = vmatprep.subr.mxu0 0.0
    %2998 = vmatpush2.msra.mxu0 0.0
    %2999 = vmatprep.subr.mxu0 0.0
    %3000 = vmatpush2.msra.mxu0 0.0
    %3001 = vmatprep.subr.mxu0 0.0
    %3002 = vmatpush2.msra.mxu0 0.0
    %3003 = vmatprep.subr.mxu0 0.0
    %3004 = vmatpush2.msra.mxu0 0.0
    %3005 = vmatprep.subr.mxu0 0.0
    %3006 = vmatpush2.msra.mxu0 0.0
    %3007 = vmatprep.subr.mxu0 0.0
    %3008 = vmatpush2.msra.mxu0 0.0
    %3009 = vmatprep.subr.mxu0 0.0
    %3010 = vmatpush2.msra.mxu0 0.0
    %3011 = vmatprep.subr.mxu0 0.0
    %3012 = vmatpush2.msra.mxu0 0.0
    %3013 = vmatprep.subr.mxu0 0.0
    %3014 = vmatpush2.msra.mxu0 0.0
    %3015 = vmatprep.subr.mxu0 0.0
    %3016 = vmatpush2.msra.mxu0 0.0
    %3017 = vmatprep.subr.mxu0 0.0
    %3018 = vmatpush2.msra.mxu0 0.0
    %3019 = vmatprep.subr.mxu0 0.0
    %3020 = vmatpush2.msra.mxu0 0.0
    %3021 = vmatprep.mubr.f32.mxu0 0.0
    %3022 = vmatmul.mubr.f32.gmra.mxu0 %v2955
    %v3023 = vpop.f32.mrf.mxu0
    %v3024 = vadd.f32 0.0, %v3023
    %v3025 = vpop.f32.mrf.mxu0
    %3026 = vdwg.mxu0
    %v3027 = vadd.f32 %v2947, %v3024
    %v3028 = vmax.f32 %v3027, 0.0
    %v3030 = vsel %vm439, %v3028, 0
    %3032 = vmatprep.subr.mxu0 0.0
    %3033 = vmatpush1.msra.mxu0 0.0
    %3034 = vmatprep.subr.mxu0 0.0
    %3035 = vmatpush1.msra.mxu0 0.0
    %3036 = vmatprep.subr.mxu0 0.0
    %3037 = vmatpush1.msra.mxu0 0.0
    %3038 = vmatprep.subr.mxu0 0.0
    %3039 = vmatpush1.msra.mxu0 0.0
    %3040 = vmatprep.subr.mxu0 0.0
    %3041 = vmatpush1.msra.mxu0 0.0
    %3042 = vmatprep.subr.mxu0 0.0
    %3043 = vmatpush1.msra.mxu0 0.0
    %3044 = vmatprep.subr.mxu0 0.0
    %3045 = vmatpush1.msra.mxu0 0.0
    %3046 = vmatprep.subr.mxu0 0.0
    %3047 = vmatpush1.msra.mxu0 0.0
    %3048 = vmatprep.subr.mxu0 0.0
    %3049 = vmatpush1.msra.mxu0 0.0
    %3050 = vmatprep.subr.mxu0 0.0
    %3051 = vmatpush1.msra.mxu0 0.0
    %3052 = vmatprep.subr.mxu0 0.0
    %3053 = vmatpush1.msra.mxu0 0.0
    %3054 = vmatprep.subr.mxu0 0.0
    %3055 = vmatpush1.msra.mxu0 0.0
    %3056 = vmatprep.subr.mxu0 0.0
    %3057 = vmatpush1.msra.mxu0 %v750
    %3058 = vmatprep.subr.mxu0 0.0
    %3059 = vmatpush1.msra.mxu0 %v749
    %3060 = vmatprep.subr.mxu0 0.0
    %3061 = vmatpush1.msra.mxu0 %v748
    %3062 = vmatprep.subr.mxu0 0.0
    %3063 = vmatpush1.msra.mxu0 %v747
    %3064 = vmatprep.subr.mxu0 0.0
    %3065 = vmatpush2.msra.mxu0 0.0
    %3066 = vmatprep.subr.mxu0 0.0
    %3067 = vmatpush2.msra.mxu0 0.0
    %3068 = vmatprep.subr.mxu0 0.0
    %3069 = vmatpush2.msra.mxu0 0.0
    %3070 = vmatprep.subr.mxu0 0.0
    %3071 = vmatpush2.msra.mxu0 0.0
    %3072 = vmatprep.subr.mxu0 0.0
    %3073 = vmatpush2.msra.mxu0 0.0
    %3074 = vmatprep.subr.mxu0 0.0
    %3075 = vmatpush2.msra.mxu0 0.0
    %3076 = vmatprep.subr.mxu0 0.0
    %3077 = vmatpush2.msra.mxu0 0.0
    %3078 = vmatprep.subr.mxu0 0.0
    %3079 = vmatpush2.msra.mxu0 0.0
    %3080 = vmatprep.subr.mxu0 0.0
    %3081 = vmatpush2.msra.mxu0 0.0
    %3082 = vmatprep.subr.mxu0 0.0
    %3083 = vmatpush2.msra.mxu0 0.0
    %3084 = vmatprep.subr.mxu0 0.0
    %3085 = vmatpush2.msra.mxu0 0.0
    %3086 = vmatprep.subr.mxu0 0.0
    %3087 = vmatpush2.msra.mxu0 0.0
    %3088 = vmatprep.subr.mxu0 0.0
    %3089 = vmatpush2.msra.mxu0 0.0
    %3090 = vmatprep.subr.mxu0 0.0
    %3091 = vmatpush2.msra.mxu0 0.0
    %3092 = vmatprep.subr.mxu0 0.0
    %3093 = vmatpush2.msra.mxu0 0.0
    %3094 = vmatprep.subr.mxu0 0.0
    %3095 = vmatpush2.msra.mxu0 0.0
    %3096 = vmatprep.mubr.f32.mxu0 0.0
    %3097 = vmatmul.mubr.f32.gmra.mxu0 %v3030
    %v3098 = vpop.f32.mrf.mxu0
    %v3099 = vadd.f32 %v756, %v3098
    %v3100 = vpop.f32.mrf.mxu0
    %3101 = vdwg.mxu0
    %v3102 = vmax.f32 %v3099, 0.0
    %v3104 = vsel %vm439, %v3102, 0
    %3106 = vmatprep.subr.mxu0 0.0
    %3107 = vmatpush1.msra.mxu0 0.0
    %3108 = vmatprep.subr.mxu0 0.0
    %3109 = vmatpush1.msra.mxu0 0.0
    %3110 = vmatprep.subr.mxu0 0.0
    %3111 = vmatpush1.msra.mxu0 0.0
    %3112 = vmatprep.subr.mxu0 0.0
    %3113 = vmatpush1.msra.mxu0 0.0
    %3114 = vmatprep.subr.mxu0 0.0
    %3115 = vmatpush1.msra.mxu0 0.0
    %3116 = vmatprep.subr.mxu0 0.0
    %3117 = vmatpush1.msra.mxu0 0.0
    %3118 = vmatprep.subr.mxu0 0.0
    %3119 = vmatpush1.msra.mxu0 0.0
    %3120 = vmatprep.subr.mxu0 0.0
    %3121 = vmatpush1.msra.mxu0 0.0
    %3122 = vmatprep.subr.mxu0 0.0
    %3123 = vmatpush1.msra.mxu0 0.0
    %3124 = vmatprep.subr.mxu0 0.0
    %3125 = vmatpush1.msra.mxu0 0.0
    %3126 = vmatprep.subr.mxu0 0.0
    %3127 = vmatpush1.msra.mxu0 0.0
    %3128 = vmatprep.subr.mxu0 0.0
    %3129 = vmatpush1.msra.mxu0 0.0
    %3130 = vmatprep.subr.mxu0 0.0
    %3131 = vmatpush1.msra.mxu0 %v761
    %3132 = vmatprep.subr.mxu0 0.0
    %3133 = vmatpush1.msra.mxu0 %v760
    %3134 = vmatprep.subr.mxu0 0.0
    %3135 = vmatpush1.msra.mxu0 %v759
    %3136 = vmatprep.subr.mxu0 0.0
    %3137 = vmatpush1.msra.mxu0 %v758
    %3138 = vmatprep.subr.mxu0 0.0
    %3139 = vmatpush2.msra.mxu0 0.0
    %3140 = vmatprep.subr.mxu0 0.0
    %3141 = vmatpush2.msra.mxu0 0.0
    %3142 = vmatprep.subr.mxu0 0.0
    %3143 = vmatpush2.msra.mxu0 0.0
    %3144 = vmatprep.subr.mxu0 0.0
    %3145 = vmatpush2.msra.mxu0 0.0
    %3146 = vmatprep.subr.mxu0 0.0
    %3147 = vmatpush2.msra.mxu0 0.0
    %3148 = vmatprep.subr.mxu0 0.0
    %3149 = vmatpush2.msra.mxu0 0.0
    %3150 = vmatprep.subr.mxu0 0.0
    %3151 = vmatpush2.msra.mxu0 0.0
    %3152 = vmatprep.subr.mxu0 0.0
    %3153 = vmatpush2.msra.mxu0 0.0
    %3154 = vmatprep.subr.mxu0 0.0
    %3155 = vmatpush2.msra.mxu0 0.0
    %3156 = vmatprep.subr.mxu0 0.0
    %3157 = vmatpush2.msra.mxu0 0.0
    %3158 = vmatprep.subr.mxu0 0.0
    %3159 = vmatpush2.msra.mxu0 0.0
    %3160 = vmatprep.subr.mxu0 0.0
    %3161 = vmatpush2.msra.mxu0 0.0
    %3162 = vmatprep.subr.mxu0 0.0
    %3163 = vmatpush2.msra.mxu0 0.0
    %3164 = vmatprep.subr.mxu0 0.0
    %3165 = vmatpush2.msra.mxu0 0.0
    %3166 = vmatprep.subr.mxu0 0.0
    %3167 = vmatpush2.msra.mxu0 0.0
    %3168 = vmatprep.subr.mxu0 0.0
    %3169 = vmatpush2.msra.mxu0 0.0
    %3170 = vmatprep.mubr.f32.mxu0 0.0
    %3171 = vmatmul.mubr.f32.gmra.mxu0 %v3104
    %v3172 = vpop.f32.mrf.mxu0
    %v3173 = vadd.f32 %v767, %v3172
    %v3174 = vpop.f32.mrf.mxu0
    %3175 = vdwg.mxu0
    %v3176 = vmax.f32 %v3173, 0.0
    %v3177 = vand.u32 2147483647, %v3173
    %v3178 = vsub.f32 0.0, %v3177
    %v3179 = vmul.f32 %v3178, 1.442695
    %v3180 = vpow.pop %v3179
    %v3181 = vadd.f32 %v3180, 1.0
    %v3182 = vlog2.pop %v3181
    %v3183 = vmul.f32 %v3182, 0.6931472
    %v3184 = vmul.f32 -0.5, %v3180
    %v3185 = vadd.f32 %v3184, 1.0
    %v3186 = vmul.f32 %v3185, %v3180
    %v3187 = vand.u32 2147483647, %v3180
    %vm3188 = vcmp.lt.f32.partialorder %v3187, 0.0004427343
    %v3189 = vsel %vm3188, %v3186, %v3183
    %v3190 = vadd.f32 %v3176, %v3189
    %v3191 = vsel %vm784, %v3173, %v3190
    %3193 = vrot.lane.b32.xlu0 %v3191, 112
    %v3194 = vpop.permute.xlu0 %3193
    %v3196 = vmul.f32 %v2951, %v3194
    %v3197 = vadd.f32 %v3196, %v3173
    %v3199 = vsel %vm299, %v3197, 0
    %3201 = vmatprep.subr.mxu0 0.0
    %3202 = vmatpush1.msra.mxu0 0.0
    %3203 = vmatprep.subr.mxu0 0.0
    %3204 = vmatpush1.msra.mxu0 0.0
    %3205 = vmatprep.subr.mxu0 0.0
    %3206 = vmatpush1.msra.mxu0 0.0
    %3207 = vmatprep.subr.mxu0 0.0
    %3208 = vmatpush1.msra.mxu0 0.0
    %3209 = vmatprep.subr.mxu0 0.0
    %3210 = vmatpush1.msra.mxu0 0.0
    %3211 = vmatprep.subr.mxu0 0.0
    %3212 = vmatpush1.msra.mxu0 0.0
    %3213 = vmatprep.subr.mxu0 0.0
    %3214 = vmatpush1.msra.mxu0 0.0
    %3215 = vmatprep.subr.mxu0 0.0
    %3216 = vmatpush1.msra.mxu0 0.0
    %3217 = vmatprep.subr.mxu0 0.0
    %3218 = vmatpush1.msra.mxu0 0.0
    %3219 = vmatprep.subr.mxu0 0.0
    %3220 = vmatpush1.msra.mxu0 0.0
    %3221 = vmatprep.subr.mxu0 0.0
    %3222 = vmatpush1.msra.mxu0 0.0
    %3223 = vmatprep.subr.mxu0 0.0
    %3224 = vmatpush1.msra.mxu0 0.0
    %3225 = vmatprep.subr.mxu0 0.0
    %3226 = vmatpush1.msra.mxu0 0.0
    %3227 = vmatprep.subr.mxu0 0.0
    %3228 = vmatpush1.msra.mxu0 0.0
    %3229 = vmatprep.subr.mxu0 0.0
    %3230 = vmatpush1.msra.mxu0 %v770
    %3231 = vmatprep.subr.mxu0 0.0
    %3232 = vmatpush1.msra.mxu0 %v769
    %3233 = vmatprep.subr.mxu0 0.0
    %3234 = vmatpush2.msra.mxu0 0.0
    %3235 = vmatprep.subr.mxu0 0.0
    %3236 = vmatpush2.msra.mxu0 0.0
    %3237 = vmatprep.subr.mxu0 0.0
    %3238 = vmatpush2.msra.mxu0 0.0
    %3239 = vmatprep.subr.mxu0 0.0
    %3240 = vmatpush2.msra.mxu0 0.0
    %3241 = vmatprep.subr.mxu0 0.0
    %3242 = vmatpush2.msra.mxu0 0.0
    %3243 = vmatprep.subr.mxu0 0.0
    %3244 = vmatpush2.msra.mxu0 0.0
    %3245 = vmatprep.subr.mxu0 0.0
    %3246 = vmatpush2.msra.mxu0 0.0
    %3247 = vmatprep.subr.mxu0 0.0
    %3248 = vmatpush2.msra.mxu0 0.0
    %3249 = vmatprep.subr.mxu0 0.0
    %3250 = vmatpush2.msra.mxu0 0.0
    %3251 = vmatprep.subr.mxu0 0.0
    %3252 = vmatpush2.msra.mxu0 0.0
    %3253 = vmatprep.subr.mxu0 0.0
    %3254 = vmatpush2.msra.mxu0 0.0
    %3255 = vmatprep.subr.mxu0 0.0
    %3256 = vmatpush2.msra.mxu0 0.0
    %3257 = vmatprep.subr.mxu0 0.0
    %3258 = vmatpush2.msra.mxu0 0.0
    %3259 = vmatprep.subr.mxu0 0.0
    %3260 = vmatpush2.msra.mxu0 0.0
    %3261 = vmatprep.subr.mxu0 0.0
    %3262 = vmatpush2.msra.mxu0 0.0
    %3263 = vmatprep.subr.mxu0 0.0
    %3264 = vmatpush2.msra.mxu0 0.0
    %3265 = vmatprep.mubr.f32.mxu0 0.0
    %3266 = vmatmul.mubr.f32.gmra.mxu0 %v3199
    %v3267 = vpop.f32.mrf.mxu0
    %v3268 = vadd.f32 %v776, %v3267
    %v3269 = vpop.f32.mrf.mxu0
    %3270 = vdwg.mxu0
    %v3271 = vmax.f32 %v3268, 0.0
    %v3273 = vsel %vm439, %v3271, 0
    %3275 = vmatprep.subr.mxu0 0.0
    %3276 = vmatpush1.msra.mxu0 0.0
    %3277 = vmatprep.subr.mxu0 0.0
    %3278 = vmatpush1.msra.mxu0 0.0
    %3279 = vmatprep.subr.mxu0 0.0
    %3280 = vmatpush1.msra.mxu0 0.0
    %3281 = vmatprep.subr.mxu0 0.0
    %3282 = vmatpush1.msra.mxu0 0.0
    %3283 = vmatprep.subr.mxu0 0.0
    %3284 = vmatpush1.msra.mxu0 0.0
    %3285 = vmatprep.subr.mxu0 0.0
    %3286 = vmatpush1.msra.mxu0 0.0
    %3287 = vmatprep.subr.mxu0 0.0
    %3288 = vmatpush1.msra.mxu0 0.0
    %3289 = vmatprep.subr.mxu0 0.0
    %3290 = vmatpush1.msra.mxu0 0.0
    %3291 = vmatprep.subr.mxu0 0.0
    %3292 = vmatpush1.msra.mxu0 0.0
    %3293 = vmatprep.subr.mxu0 0.0
    %3294 = vmatpush1.msra.mxu0 0.0
    %3295 = vmatprep.subr.mxu0 0.0
    %3296 = vmatpush1.msra.mxu0 0.0
    %3297 = vmatprep.subr.mxu0 0.0
    %3298 = vmatpush1.msra.mxu0 0.0
    %3299 = vmatprep.subr.mxu0 0.0
    %3300 = vmatpush1.msra.mxu0 %v781
    %3301 = vmatprep.subr.mxu0 0.0
    %3302 = vmatpush1.msra.mxu0 %v780
    %3303 = vmatprep.subr.mxu0 0.0
    %3304 = vmatpush1.msra.mxu0 %v779
    %3305 = vmatprep.subr.mxu0 0.0
    %3306 = vmatpush1.msra.mxu0 %v778
    %3307 = vmatprep.subr.mxu0 0.0
    %3308 = vmatpush2.msra.mxu0 0.0
    %3309 = vmatprep.subr.mxu0 0.0
    %3310 = vmatpush2.msra.mxu0 0.0
    %3311 = vmatprep.subr.mxu0 0.0
    %3312 = vmatpush2.msra.mxu0 0.0
    %3313 = vmatprep.subr.mxu0 0.0
    %3314 = vmatpush2.msra.mxu0 0.0
    %3315 = vmatprep.subr.mxu0 0.0
    %3316 = vmatpush2.msra.mxu0 0.0
    %3317 = vmatprep.subr.mxu0 0.0
    %3318 = vmatpush2.msra.mxu0 0.0
    %3319 = vmatprep.subr.mxu0 0.0
    %3320 = vmatpush2.msra.mxu0 0.0
    %3321 = vmatprep.subr.mxu0 0.0
    %3322 = vmatpush2.msra.mxu0 0.0
    %3323 = vmatprep.subr.mxu0 0.0
    %3324 = vmatpush2.msra.mxu0 0.0
    %3325 = vmatprep.subr.mxu0 0.0
    %3326 = vmatpush2.msra.mxu0 0.0
    %3327 = vmatprep.subr.mxu0 0.0
    %3328 = vmatpush2.msra.mxu0 0.0
    %3329 = vmatprep.subr.mxu0 0.0
    %3330 = vmatpush2.msra.mxu0 0.0
    %3331 = vmatprep.subr.mxu0 0.0
    %3332 = vmatpush2.msra.mxu0 0.0
    %3333 = vmatprep.subr.mxu0 0.0
    %3334 = vmatpush2.msra.mxu0 0.0
    %3335 = vmatprep.subr.mxu0 0.0
    %3336 = vmatpush2.msra.mxu0 0.0
    %3337 = vmatprep.subr.mxu0 0.0
    %3338 = vmatpush2.msra.mxu0 0.0
    %3339 = vmatprep.mubr.f32.mxu0 0.0
    %3340 = vmatmul.mubr.f32.gmra.mxu0 %v3273
    %v3341 = vpop.f32.mrf.mxu0
    %v3342 = vadd.f32 0.0, %v3341
    %v3343 = vpop.f32.mrf.mxu0
    %3344 = vdwg.mxu0
    %v3345 = vadd.f32 %v2949, %v3342
    %3347 = vrot.lane.b32.xlu0 %v3024, 96
    %v3348 = vpop.permute.xlu0 %3347
    %v3350 = vadd.f32 %v3345, %v3348
    %v3351 = vmul.f32 %v3350, 0.5
    %v3352 = vtanh.pop %v3351
    %v3353 = vadd.f32 %v3352, 1.0
    %v3354 = vmul.f32 %v3353, 0.5
    %3355 = vrot.lane.b32.xlu0 %v3024, 32
    %v3356 = vpop.permute.xlu0 %3355
    %v3358 = vmul.f32 %v3354, %v3356
    %3360 = vrot.lane.b32.xlu0 %v3358, 64
    %v3361 = vpop.permute.xlu0 %3360
    %v3363 = vadd.f32 %v3345, %v3361
    %v3364 = vtanh.pop %v3363
    %s3366 = scalar_lea.vmem [#allocation4], 40
    %3367 = vst.msk [vmem:[%s3366] sm:$0xff] %vm439, %v2954
    %s3368 = scalar_lea.vmem [#allocation5], 40
    %3369 = vst.msk [vmem:[%s3368] sm:$0xff] %vm439, %v3271
    %s3370 = scalar_lea.vmem %s25, 40
    %3371 = vst.msk [vmem:[%s3370] sm:$0xff] %vm439, %v3191
    %v3372 = vsub.f32 1.0, %v3354
    %3374 = vrot.lane.b32.xlu0 %v3364, 96
    %v3375 = vpop.permute.xlu0 %3374
    %v3377 = vmul.f32 %v3372, %v3375
    %v3378 = vmul.f32 %v3354, %v2945
    %v3379 = vadd.f32 %v3377, %v3378
    %s3380 = scalar_lea.vmem [#allocation2], 48
    %v3381 = vld [vmem:[%s3380] sm:$0xff]
    %s3382 = scalar_lea.vmem %s1, 48
    %v3383 = vld [vmem:[%s3382] sm:$0xff]
    %3385 = vrot.lane.b32.xlu0 %v3379, 96
    %v3386 = vpop.permute.xlu0 %3385
    %v3387 = vsel %vm439, %v3386, 0
    %3389 = vmatprep.subr.mxu0 0.0
    %3390 = vmatpush1.msra.mxu0 0.0
    %3391 = vmatprep.subr.mxu0 0.0
    %3392 = vmatpush1.msra.mxu0 0.0
    %3393 = vmatprep.subr.mxu0 0.0
    %3394 = vmatpush1.msra.mxu0 0.0
    %3395 = vmatprep.subr.mxu0 0.0
    %3396 = vmatpush1.msra.mxu0 0.0
    %3397 = vmatprep.subr.mxu0 0.0
    %3398 = vmatpush1.msra.mxu0 0.0
    %3399 = vmatprep.subr.mxu0 0.0
    %3400 = vmatpush1.msra.mxu0 0.0
    %3401 = vmatprep.subr.mxu0 0.0
    %3402 = vmatpush1.msra.mxu0 0.0
    %3403 = vmatprep.subr.mxu0 0.0
    %3404 = vmatpush1.msra.mxu0 0.0
    %3405 = vmatprep.subr.mxu0 0.0
    %3406 = vmatpush1.msra.mxu0 0.0
    %3407 = vmatprep.subr.mxu0 0.0
    %3408 = vmatpush1.msra.mxu0 0.0
    %3409 = vmatprep.subr.mxu0 0.0
    %3410 = vmatpush1.msra.mxu0 0.0
    %3411 = vmatprep.subr.mxu0 0.0
    %3412 = vmatpush1.msra.mxu0 0.0
    %3413 = vmatprep.subr.mxu0 0.0
    %3414 = vmatpush1.msra.mxu0 %v746
    %3415 = vmatprep.subr.mxu0 0.0
    %3416 = vmatpush1.msra.mxu0 %v745
    %3417 = vmatprep.subr.mxu0 0.0
    %3418 = vmatpush1.msra.mxu0 %v744
    %3419 = vmatprep.subr.mxu0 0.0
    %3420 = vmatpush1.msra.mxu0 %v743
    %3421 = vmatprep.subr.mxu0 0.0
    %3422 = vmatpush2.msra.mxu0 0.0
    %3423 = vmatprep.subr.mxu0 0.0
    %3424 = vmatpush2.msra.mxu0 0.0
    %3425 = vmatprep.subr.mxu0 0.0
    %3426 = vmatpush2.msra.mxu0 0.0
    %3427 = vmatprep.subr.mxu0 0.0
    %3428 = vmatpush2.msra.mxu0 0.0
    %3429 = vmatprep.subr.mxu0 0.0
    %3430 = vmatpush2.msra.mxu0 0.0
    %3431 = vmatprep.subr.mxu0 0.0
    %3432 = vmatpush2.msra.mxu0 0.0
    %3433 = vmatprep.subr.mxu0 0.0
    %3434 = vmatpush2.msra.mxu0 0.0
    %3435 = vmatprep.subr.mxu0 0.0
    %3436 = vmatpush2.msra.mxu0 0.0
    %3437 = vmatprep.subr.mxu0 0.0
    %3438 = vmatpush2.msra.mxu0 0.0
    %3439 = vmatprep.subr.mxu0 0.0
    %3440 = vmatpush2.msra.mxu0 0.0
    %3441 = vmatprep.subr.mxu0 0.0
    %3442 = vmatpush2.msra.mxu0 0.0
    %3443 = vmatprep.subr.mxu0 0.0
    %3444 = vmatpush2.msra.mxu0 0.0
    %3445 = vmatprep.subr.mxu0 0.0
    %3446 = vmatpush2.msra.mxu0 0.0
    %3447 = vmatprep.subr.mxu0 0.0
    %3448 = vmatpush2.msra.mxu0 0.0
    %3449 = vmatprep.subr.mxu0 0.0
    %3450 = vmatpush2.msra.mxu0 0.0
    %3451 = vmatprep.subr.mxu0 0.0
    %3452 = vmatpush2.msra.mxu0 0.0
    %3453 = vmatprep.mubr.f32.mxu0 0.0
    %3454 = vmatmul.mubr.f32.gmra.mxu0 %v3387
    %v3455 = vpop.f32.mrf.mxu0
    %v3456 = vadd.f32 0.0, %v3455
    %v3457 = vpop.f32.mrf.mxu0
    %3458 = vdwg.mxu0
    %v3459 = vadd.f32 %v3381, %v3456
    %v3460 = vmax.f32 %v3459, 0.0
    %v3462 = vsel %vm439, %v3460, 0
    %3464 = vmatprep.subr.mxu0 0.0
    %3465 = vmatpush1.msra.mxu0 0.0
    %3466 = vmatprep.subr.mxu0 0.0
    %3467 = vmatpush1.msra.mxu0 0.0
    %3468 = vmatprep.subr.mxu0 0.0
    %3469 = vmatpush1.msra.mxu0 0.0
    %3470 = vmatprep.subr.mxu0 0.0
    %3471 = vmatpush1.msra.mxu0 0.0
    %3472 = vmatprep.subr.mxu0 0.0
    %3473 = vmatpush1.msra.mxu0 0.0
    %3474 = vmatprep.subr.mxu0 0.0
    %3475 = vmatpush1.msra.mxu0 0.0
    %3476 = vmatprep.subr.mxu0 0.0
    %3477 = vmatpush1.msra.mxu0 0.0
    %3478 = vmatprep.subr.mxu0 0.0
    %3479 = vmatpush1.msra.mxu0 0.0
    %3480 = vmatprep.subr.mxu0 0.0
    %3481 = vmatpush1.msra.mxu0 0.0
    %3482 = vmatprep.subr.mxu0 0.0
    %3483 = vmatpush1.msra.mxu0 0.0
    %3484 = vmatprep.subr.mxu0 0.0
    %3485 = vmatpush1.msra.mxu0 0.0
    %3486 = vmatprep.subr.mxu0 0.0
    %3487 = vmatpush1.msra.mxu0 0.0
    %3488 = vmatprep.subr.mxu0 0.0
    %3489 = vmatpush1.msra.mxu0 %v750
    %3490 = vmatprep.subr.mxu0 0.0
    %3491 = vmatpush1.msra.mxu0 %v749
    %3492 = vmatprep.subr.mxu0 0.0
    %3493 = vmatpush1.msra.mxu0 %v748
    %3494 = vmatprep.subr.mxu0 0.0
    %3495 = vmatpush1.msra.mxu0 %v747
    %3496 = vmatprep.subr.mxu0 0.0
    %3497 = vmatpush2.msra.mxu0 0.0
    %3498 = vmatprep.subr.mxu0 0.0
    %3499 = vmatpush2.msra.mxu0 0.0
    %3500 = vmatprep.subr.mxu0 0.0
    %3501 = vmatpush2.msra.mxu0 0.0
    %3502 = vmatprep.subr.mxu0 0.0
    %3503 = vmatpush2.msra.mxu0 0.0
    %3504 = vmatprep.subr.mxu0 0.0
    %3505 = vmatpush2.msra.mxu0 0.0
    %3506 = vmatprep.subr.mxu0 0.0
    %3507 = vmatpush2.msra.mxu0 0.0
    %3508 = vmatprep.subr.mxu0 0.0
    %3509 = vmatpush2.msra.mxu0 0.0
    %3510 = vmatprep.subr.mxu0 0.0
    %3511 = vmatpush2.msra.mxu0 0.0
    %3512 = vmatprep.subr.mxu0 0.0
    %3513 = vmatpush2.msra.mxu0 0.0
    %3514 = vmatprep.subr.mxu0 0.0
    %3515 = vmatpush2.msra.mxu0 0.0
    %3516 = vmatprep.subr.mxu0 0.0
    %3517 = vmatpush2.msra.mxu0 0.0
    %3518 = vmatprep.subr.mxu0 0.0
    %3519 = vmatpush2.msra.mxu0 0.0
    %3520 = vmatprep.subr.mxu0 0.0
    %3521 = vmatpush2.msra.mxu0 0.0
    %3522 = vmatprep.subr.mxu0 0.0
    %3523 = vmatpush2.msra.mxu0 0.0
    %3524 = vmatprep.subr.mxu0 0.0
    %3525 = vmatpush2.msra.mxu0 0.0
    %3526 = vmatprep.subr.mxu0 0.0
    %3527 = vmatpush2.msra.mxu0 0.0
    %3528 = vmatprep.mubr.f32.mxu0 0.0
    %3529 = vmatmul.mubr.f32.gmra.mxu0 %v3462
    %v3530 = vpop.f32.mrf.mxu0
    %v3531 = vadd.f32 %v756, %v3530
    %v3532 = vpop.f32.mrf.mxu0
    %3533 = vdwg.mxu0
    %v3534 = vmax.f32 %v3531, 0.0
    %v3536 = vsel %vm439, %v3534, 0
    %3538 = vmatprep.subr.mxu0 0.0
    %3539 = vmatpush1.msra.mxu0 0.0
    %3540 = vmatprep.subr.mxu0 0.0
    %3541 = vmatpush1.msra.mxu0 0.0
    %3542 = vmatprep.subr.mxu0 0.0
    %3543 = vmatpush1.msra.mxu0 0.0
    %3544 = vmatprep.subr.mxu0 0.0
    %3545 = vmatpush1.msra.mxu0 0.0
    %3546 = vmatprep.subr.mxu0 0.0
    %3547 = vmatpush1.msra.mxu0 0.0
    %3548 = vmatprep.subr.mxu0 0.0
    %3549 = vmatpush1.msra.mxu0 0.0
    %3550 = vmatprep.subr.mxu0 0.0
    %3551 = vmatpush1.msra.mxu0 0.0
    %3552 = vmatprep.subr.mxu0 0.0
    %3553 = vmatpush1.msra.mxu0 0.0
    %3554 = vmatprep.subr.mxu0 0.0
    %3555 = vmatpush1.msra.mxu0 0.0
    %3556 = vmatprep.subr.mxu0 0.0
    %3557 = vmatpush1.msra.mxu0 0.0
    %3558 = vmatprep.subr.mxu0 0.0
    %3559 = vmatpush1.msra.mxu0 0.0
    %3560 = vmatprep.subr.mxu0 0.0
    %3561 = vmatpush1.msra.mxu0 0.0
    %3562 = vmatprep.subr.mxu0 0.0
    %3563 = vmatpush1.msra.mxu0 %v761
    %3564 = vmatprep.subr.mxu0 0.0
    %3565 = vmatpush1.msra.mxu0 %v760
    %3566 = vmatprep.subr.mxu0 0.0
    %3567 = vmatpush1.msra.mxu0 %v759
    %3568 = vmatprep.subr.mxu0 0.0
    %3569 = vmatpush1.msra.mxu0 %v758
    %3570 = vmatprep.subr.mxu0 0.0
    %3571 = vmatpush2.msra.mxu0 0.0
    %3572 = vmatprep.subr.mxu0 0.0
    %3573 = vmatpush2.msra.mxu0 0.0
    %3574 = vmatprep.subr.mxu0 0.0
    %3575 = vmatpush2.msra.mxu0 0.0
    %3576 = vmatprep.subr.mxu0 0.0
    %3577 = vmatpush2.msra.mxu0 0.0
    %3578 = vmatprep.subr.mxu0 0.0
    %3579 = vmatpush2.msra.mxu0 0.0
    %3580 = vmatprep.subr.mxu0 0.0
    %3581 = vmatpush2.msra.mxu0 0.0
    %3582 = vmatprep.subr.mxu0 0.0
    %3583 = vmatpush2.msra.mxu0 0.0
    %3584 = vmatprep.subr.mxu0 0.0
    %3585 = vmatpush2.msra.mxu0 0.0
    %3586 = vmatprep.subr.mxu0 0.0
    %3587 = vmatpush2.msra.mxu0 0.0
    %3588 = vmatprep.subr.mxu0 0.0
    %3589 = vmatpush2.msra.mxu0 0.0
    %3590 = vmatprep.subr.mxu0 0.0
    %3591 = vmatpush2.msra.mxu0 0.0
    %3592 = vmatprep.subr.mxu0 0.0
    %3593 = vmatpush2.msra.mxu0 0.0
    %3594 = vmatprep.subr.mxu0 0.0
    %3595 = vmatpush2.msra.mxu0 0.0
    %3596 = vmatprep.subr.mxu0 0.0
    %3597 = vmatpush2.msra.mxu0 0.0
    %3598 = vmatprep.subr.mxu0 0.0
    %3599 = vmatpush2.msra.mxu0 0.0
    %3600 = vmatprep.subr.mxu0 0.0
    %3601 = vmatpush2.msra.mxu0 0.0
    %3602 = vmatprep.mubr.f32.mxu0 0.0
    %3603 = vmatmul.mubr.f32.gmra.mxu0 %v3536
    %v3604 = vpop.f32.mrf.mxu0
    %v3605 = vadd.f32 %v767, %v3604
    %v3606 = vpop.f32.mrf.mxu0
    %3607 = vdwg.mxu0
    %v3608 = vmax.f32 %v3605, 0.0
    %v3609 = vand.u32 2147483647, %v3605
    %v3610 = vsub.f32 0.0, %v3609
    %v3611 = vmul.f32 %v3610, 1.442695
    %v3612 = vpow.pop %v3611
    %v3613 = vadd.f32 %v3612, 1.0
    %v3614 = vlog2.pop %v3613
    %v3615 = vmul.f32 %v3614, 0.6931472
    %v3616 = vmul.f32 -0.5, %v3612
    %v3617 = vadd.f32 %v3616, 1.0
    %v3618 = vmul.f32 %v3617, %v3612
    %v3619 = vand.u32 2147483647, %v3612
    %vm3620 = vcmp.lt.f32.partialorder %v3619, 0.0004427343
    %v3621 = vsel %vm3620, %v3618, %v3615
    %v3622 = vadd.f32 %v3608, %v3621
    %v3623 = vsel %vm784, %v3605, %v3622
    %3625 = vrot.lane.b32.xlu0 %v3623, 112
    %v3626 = vpop.permute.xlu0 %3625
    %v3628 = vmul.f32 %v3383, %v3626
    %v3629 = vadd.f32 %v3628, %v3605
    %v3631 = vsel %vm299, %v3629, 0
    %3633 = vmatprep.subr.mxu0 0.0
    %3634 = vmatpush1.msra.mxu0 0.0
    %3635 = vmatprep.subr.mxu0 0.0
    %3636 = vmatpush1.msra.mxu0 0.0
    %3637 = vmatprep.subr.mxu0 0.0
    %3638 = vmatpush1.msra.mxu0 0.0
    %3639 = vmatprep.subr.mxu0 0.0
    %3640 = vmatpush1.msra.mxu0 0.0
    %3641 = vmatprep.subr.mxu0 0.0
    %3642 = vmatpush1.msra.mxu0 0.0
    %3643 = vmatprep.subr.mxu0 0.0
    %3644 = vmatpush1.msra.mxu0 0.0
    %3645 = vmatprep.subr.mxu0 0.0
    %3646 = vmatpush1.msra.mxu0 0.0
    %3647 = vmatprep.subr.mxu0 0.0
    %3648 = vmatpush1.msra.mxu0 0.0
    %3649 = vmatprep.subr.mxu0 0.0
    %3650 = vmatpush1.msra.mxu0 0.0
    %3651 = vmatprep.subr.mxu0 0.0
    %3652 = vmatpush1.msra.mxu0 0.0
    %3653 = vmatprep.subr.mxu0 0.0
    %3654 = vmatpush1.msra.mxu0 0.0
    %3655 = vmatprep.subr.mxu0 0.0
    %3656 = vmatpush1.msra.mxu0 0.0
    %3657 = vmatprep.subr.mxu0 0.0
    %3658 = vmatpush1.msra.mxu0 0.0
    %3659 = vmatprep.subr.mxu0 0.0
    %3660 = vmatpush1.msra.mxu0 0.0
    %3661 = vmatprep.subr.mxu0 0.0
    %3662 = vmatpush1.msra.mxu0 %v770
    %3663 = vmatprep.subr.mxu0 0.0
    %3664 = vmatpush1.msra.mxu0 %v769
    %3665 = vmatprep.subr.mxu0 0.0
    %3666 = vmatpush2.msra.mxu0 0.0
    %3667 = vmatprep.subr.mxu0 0.0
    %3668 = vmatpush2.msra.mxu0 0.0
    %3669 = vmatprep.subr.mxu0 0.0
    %3670 = vmatpush2.msra.mxu0 0.0
    %3671 = vmatprep.subr.mxu0 0.0
    %3672 = vmatpush2.msra.mxu0 0.0
    %3673 = vmatprep.subr.mxu0 0.0
    %3674 = vmatpush2.msra.mxu0 0.0
    %3675 = vmatprep.subr.mxu0 0.0
    %3676 = vmatpush2.msra.mxu0 0.0
    %3677 = vmatprep.subr.mxu0 0.0
    %3678 = vmatpush2.msra.mxu0 0.0
    %3679 = vmatprep.subr.mxu0 0.0
    %3680 = vmatpush2.msra.mxu0 0.0
    %3681 = vmatprep.subr.mxu0 0.0
    %3682 = vmatpush2.msra.mxu0 0.0
    %3683 = vmatprep.subr.mxu0 0.0
    %3684 = vmatpush2.msra.mxu0 0.0
    %3685 = vmatprep.subr.mxu0 0.0
    %3686 = vmatpush2.msra.mxu0 0.0
    %3687 = vmatprep.subr.mxu0 0.0
    %3688 = vmatpush2.msra.mxu0 0.0
    %3689 = vmatprep.subr.mxu0 0.0
    %3690 = vmatpush2.msra.mxu0 0.0
    %3691 = vmatprep.subr.mxu0 0.0
    %3692 = vmatpush2.msra.mxu0 0.0
    %3693 = vmatprep.subr.mxu0 0.0
    %3694 = vmatpush2.msra.mxu0 0.0
    %3695 = vmatprep.subr.mxu0 0.0
    %3696 = vmatpush2.msra.mxu0 0.0
    %3697 = vmatprep.mubr.f32.mxu0 0.0
    %3698 = vmatmul.mubr.f32.gmra.mxu0 %v3631
    %v3699 = vpop.f32.mrf.mxu0
    %v3700 = vadd.f32 %v776, %v3699
    %v3701 = vpop.f32.mrf.mxu0
    %3702 = vdwg.mxu0
    %v3703 = vmax.f32 %v3700, 0.0
    %s3705 = scalar_lea.vmem [#allocation4], 48
    %3706 = vst.msk [vmem:[%s3705] sm:$0xff] %vm439, %v3386
    %s3707 = scalar_lea.vmem [#allocation5], 48
    %3708 = vst.msk [vmem:[%s3707] sm:$0xff] %vm439, %v3703
    %s3709 = scalar_lea.vmem %s25, 48
    %3710 = vst.msk [vmem:[%s3709] sm:$0xff] %vm439, %v3623
    %v3711 = vld [vmem:[#allocation4] sm:$0xff]
    %v3712 = vld [vmem:[#allocation4 + $0x8] sm:$0xff]
    %v3713 = vld [vmem:[#allocation4 + $0x10] sm:$0xff]
    %v3714 = vld [vmem:[#allocation4 + $0x18] sm:$0xff]
    %v3715 = vld [vmem:[#allocation4 + $0x20] sm:$0xff]
    %v3716 = vld [vmem:[#allocation4 + $0x28] sm:$0xff]
    %v3717 = vld [vmem:[#allocation4 + $0x30] sm:$0xff]
    %v3718 = vld [vmem:[#allocation5] sm:$0xff]
    %v3719 = vld [vmem:[#allocation5 + $0x8] sm:$0xff]
    %v3720 = vld [vmem:[#allocation5 + $0x10] sm:$0xff]
    %v3721 = vld [vmem:[#allocation5 + $0x18] sm:$0xff]
    %v3722 = vld [vmem:[#allocation5 + $0x20] sm:$0xff]
    %v3723 = vld [vmem:[#allocation5 + $0x28] sm:$0xff]
    %v3724 = vld [vmem:[#allocation5 + $0x30] sm:$0xff]
    %v3725 = vld [vmem:[#allocation23] sm:$0xff]
    %v3726 = vld [vmem:[#allocation23 + $0x8] sm:$0xff]
    %v3727 = vld [vmem:[#allocation23 + $0x10] sm:$0xff]
    %v3728 = vld [vmem:[#allocation23 + $0x18] sm:$0xff]
    %v3729 = vld [vmem:[%s17] sm:$0x1]
    %v3731 = vlaneseq
    %v3732 = vshrl.u32 %v3731, 7
    %v3733 = vsub.s32 0, %v3732
    %v3734 = vrot.slane %v3729, %v3733
    %v3737 = vsel %vm439, %v3711, 0
    %v3740 = vsel %vm439, %v3712, 0
    %v3743 = vsel %vm439, %v3713, 0
    %v3746 = vsel %vm439, %v3714, 0
    %v3749 = vsel %vm439, %v3715, 0
    %v3752 = vsel %vm439, %v3716, 0
    %v3755 = vsel %vm439, %v3717, 0
    %3757 = vmatprep.subr.mxu0 0.0
    %3758 = vmatpush1.msra.mxu0 0.0
    %3759 = vmatprep.subr.mxu0 0.0
    %3760 = vmatpush1.msra.mxu0 0.0
    %3761 = vmatprep.subr.mxu0 0.0
    %3762 = vmatpush1.msra.mxu0 0.0
    %3763 = vmatprep.subr.mxu0 0.0
    %3764 = vmatpush1.msra.mxu0 0.0
    %3765 = vmatprep.subr.mxu0 0.0
    %3766 = vmatpush1.msra.mxu0 0.0
    %3767 = vmatprep.subr.mxu0 0.0
    %3768 = vmatpush1.msra.mxu0 0.0
    %3769 = vmatprep.subr.mxu0 0.0
    %3770 = vmatpush1.msra.mxu0 0.0
    %3771 = vmatprep.subr.mxu0 0.0
    %3772 = vmatpush1.msra.mxu0 0.0
    %3773 = vmatprep.subr.mxu0 0.0
    %3774 = vmatpush1.msra.mxu0 0.0
    %3775 = vmatprep.subr.mxu0 0.0
    %3776 = vmatpush1.msra.mxu0 0.0
    %3777 = vmatprep.subr.mxu0 0.0
    %3778 = vmatpush1.msra.mxu0 0.0
    %3779 = vmatprep.subr.mxu0 0.0
    %3780 = vmatpush1.msra.mxu0 0.0
    %3781 = vmatprep.subr.mxu0 0.0
    %3782 = vmatpush1.msra.mxu0 %v3728
    %3783 = vmatprep.subr.mxu0 0.0
    %3784 = vmatpush1.msra.mxu0 %v3727
    %3785 = vmatprep.subr.mxu0 0.0
    %3786 = vmatpush1.msra.mxu0 %v3726
    %3787 = vmatprep.subr.mxu0 0.0
    %3788 = vmatpush1.msra.mxu0 %v3725
    %3789 = vmatprep.subr.mxu0 0.0
    %3790 = vmatpush2.msra.mxu0 0.0
    %3791 = vmatprep.subr.mxu0 0.0
    %3792 = vmatpush2.msra.mxu0 0.0
    %3793 = vmatprep.subr.mxu0 0.0
    %3794 = vmatpush2.msra.mxu0 0.0
    %3795 = vmatprep.subr.mxu0 0.0
    %3796 = vmatpush2.msra.mxu0 0.0
    %3797 = vmatprep.subr.mxu0 0.0
    %3798 = vmatpush2.msra.mxu0 0.0
    %3799 = vmatprep.subr.mxu0 0.0
    %3800 = vmatpush2.msra.mxu0 0.0
    %3801 = vmatprep.subr.mxu0 0.0
    %3802 = vmatpush2.msra.mxu0 0.0
    %3803 = vmatprep.subr.mxu0 0.0
    %3804 = vmatpush2.msra.mxu0 0.0
    %3805 = vmatprep.subr.mxu0 0.0
    %3806 = vmatpush2.msra.mxu0 0.0
    %3807 = vmatprep.subr.mxu0 0.0
    %3808 = vmatpush2.msra.mxu0 0.0
    %3809 = vmatprep.subr.mxu0 0.0
    %3810 = vmatpush2.msra.mxu0 0.0
    %3811 = vmatprep.subr.mxu0 0.0
    %3812 = vmatpush2.msra.mxu0 0.0
    %3813 = vmatprep.subr.mxu0 0.0
    %3814 = vmatpush2.msra.mxu0 0.0
    %3815 = vmatprep.subr.mxu0 0.0
    %3816 = vmatpush2.msra.mxu0 0.0
    %3817 = vmatprep.subr.mxu0 0.0
    %3818 = vmatpush2.msra.mxu0 0.0
    %3819 = vmatprep.subr.mxu0 0.0
    %3820 = vmatpush2.msra.mxu0 0.0
    %3821 = vmatprep.mubr.f32.mxu0 0.0
    %3822 = vmatmul.mubr.f32.gmra.mxu0 %v3737
    %v3823 = vpop.f32.mrf.mxu0
    %v3824 = vadd.f32 %v3734, %v3823
    %v3825 = vpop.f32.mrf.mxu0
    %3826 = vmatprep.mubr.f32.mxu0 0.0
    %3827 = vmatmul.mubr.f32.gmra.mxu0 %v3740
    %v3828 = vpop.f32.mrf.mxu0
    %v3829 = vadd.f32 %v3734, %v3828
    %v3830 = vpop.f32.mrf.mxu0
    %3831 = vmatprep.mubr.f32.mxu0 0.0
    %3832 = vmatmul.mubr.f32.gmra.mxu0 %v3743
    %v3833 = vpop.f32.mrf.mxu0
    %v3834 = vadd.f32 %v3734, %v3833
    %v3835 = vpop.f32.mrf.mxu0
    %3836 = vmatprep.mubr.f32.mxu0 0.0
    %3837 = vmatmul.mubr.f32.gmra.mxu0 %v3746
    %v3838 = vpop.f32.mrf.mxu0
    %v3839 = vadd.f32 %v3734, %v3838
    %v3840 = vpop.f32.mrf.mxu0
    %3841 = vmatprep.mubr.f32.mxu0 0.0
    %3842 = vmatmul.mubr.f32.gmra.mxu0 %v3749
    %v3843 = vpop.f32.mrf.mxu0
    %v3844 = vadd.f32 %v3734, %v3843
    %v3845 = vpop.f32.mrf.mxu0
    %3846 = vmatprep.mubr.f32.mxu0 0.0
    %3847 = vmatmul.mubr.f32.gmra.mxu0 %v3752
    %v3848 = vpop.f32.mrf.mxu0
    %v3849 = vadd.f32 %v3734, %v3848
    %v3850 = vpop.f32.mrf.mxu0
    %3851 = vmatprep.mubr.f32.mxu0 0.0
    %3852 = vmatmul.mubr.f32.gmra.mxu0 %v3755
    %v3853 = vpop.f32.mrf.mxu0
    %v3854 = vadd.f32 %v3734, %v3853
    %v3855 = vpop.f32.mrf.mxu0
    %3856 = vdwg.mxu0
    %v3857 = vmax.f32 %v3824, 0.0
    %v3858 = vmax.f32 %v3829, 0.0
    %v3859 = vmax.f32 %v3834, 0.0
    %v3860 = vmax.f32 %v3839, 0.0
    %v3861 = vmax.f32 %v3844, 0.0
    %v3862 = vmax.f32 %v3849, 0.0
    %v3863 = vmax.f32 %v3854, 0.0
    %v3864 = vld [vmem:[#allocation24] sm:$0xff]
    %v3865 = vld [vmem:[#allocation24 + $0x8] sm:$0xff]
    %v3866 = vld [vmem:[#allocation24 + $0x10] sm:$0xff]
    %v3867 = vld [vmem:[#allocation24 + $0x18] sm:$0xff]
    %v3868 = vld [vmem:[%s19] sm:$0x1]
    %v3870 = vlaneseq
    %v3871 = vshrl.u32 %v3870, 7
    %v3872 = vsub.s32 0, %v3871
    %v3873 = vrot.slane %v3868, %v3872
    %v3876 = vsel %vm439, %v3857, 0
    %v3879 = vsel %vm439, %v3858, 0
    %v3882 = vsel %vm439, %v3859, 0
    %v3885 = vsel %vm439, %v3860, 0
    %v3888 = vsel %vm439, %v3861, 0
    %v3891 = vsel %vm439, %v3862, 0
    %v3894 = vsel %vm439, %v3863, 0
    %3896 = vmatprep.subr.mxu0 0.0
    %3897 = vmatpush1.msra.mxu0 0.0
    %3898 = vmatprep.subr.mxu0 0.0
    %3899 = vmatpush1.msra.mxu0 0.0
    %3900 = vmatprep.subr.mxu0 0.0
    %3901 = vmatpush1.msra.mxu0 0.0
    %3902 = vmatprep.subr.mxu0 0.0
    %3903 = vmatpush1.msra.mxu0 0.0
    %3904 = vmatprep.subr.mxu0 0.0
    %3905 = vmatpush1.msra.mxu0 0.0
    %3906 = vmatprep.subr.mxu0 0.0
    %3907 = vmatpush1.msra.mxu0 0.0
    %3908 = vmatprep.subr.mxu0 0.0
    %3909 = vmatpush1.msra.mxu0 0.0
    %3910 = vmatprep.subr.mxu0 0.0
    %3911 = vmatpush1.msra.mxu0 0.0
    %3912 = vmatprep.subr.mxu0 0.0
    %3913 = vmatpush1.msra.mxu0 0.0
    %3914 = vmatprep.subr.mxu0 0.0
    %3915 = vmatpush1.msra.mxu0 0.0
    %3916 = vmatprep.subr.mxu0 0.0
    %3917 = vmatpush1.msra.mxu0 0.0
    %3918 = vmatprep.subr.mxu0 0.0
    %3919 = vmatpush1.msra.mxu0 0.0
    %3920 = vmatprep.subr.mxu0 0.0
    %3921 = vmatpush1.msra.mxu0 %v3867
    %3922 = vmatprep.subr.mxu0 0.0
    %3923 = vmatpush1.msra.mxu0 %v3866
    %3924 = vmatprep.subr.mxu0 0.0
    %3925 = vmatpush1.msra.mxu0 %v3865
    %3926 = vmatprep.subr.mxu0 0.0
    %3927 = vmatpush1.msra.mxu0 %v3864
    %3928 = vmatprep.subr.mxu0 0.0
    %3929 = vmatpush2.msra.mxu0 0.0
    %3930 = vmatprep.subr.mxu0 0.0
    %3931 = vmatpush2.msra.mxu0 0.0
    %3932 = vmatprep.subr.mxu0 0.0
    %3933 = vmatpush2.msra.mxu0 0.0
    %3934 = vmatprep.subr.mxu0 0.0
    %3935 = vmatpush2.msra.mxu0 0.0
    %3936 = vmatprep.subr.mxu0 0.0
    %3937 = vmatpush2.msra.mxu0 0.0
    %3938 = vmatprep.subr.mxu0 0.0
    %3939 = vmatpush2.msra.mxu0 0.0
    %3940 = vmatprep.subr.mxu0 0.0
    %3941 = vmatpush2.msra.mxu0 0.0
    %3942 = vmatprep.subr.mxu0 0.0
    %3943 = vmatpush2.msra.mxu0 0.0
    %3944 = vmatprep.subr.mxu0 0.0
    %3945 = vmatpush2.msra.mxu0 0.0
    %3946 = vmatprep.subr.mxu0 0.0
    %3947 = vmatpush2.msra.mxu0 0.0
    %3948 = vmatprep.subr.mxu0 0.0
    %3949 = vmatpush2.msra.mxu0 0.0
    %3950 = vmatprep.subr.mxu0 0.0
    %3951 = vmatpush2.msra.mxu0 0.0
    %3952 = vmatprep.subr.mxu0 0.0
    %3953 = vmatpush2.msra.mxu0 0.0
    %3954 = vmatprep.subr.mxu0 0.0
    %3955 = vmatpush2.msra.mxu0 0.0
    %3956 = vmatprep.subr.mxu0 0.0
    %3957 = vmatpush2.msra.mxu0 0.0
    %3958 = vmatprep.subr.mxu0 0.0
    %3959 = vmatpush2.msra.mxu0 0.0
    %3960 = vmatprep.mubr.f32.mxu0 0.0
    %3961 = vmatmul.mubr.f32.gmra.mxu0 %v3876
    %v3962 = vpop.f32.mrf.mxu0
    %v3963 = vadd.f32 %v3873, %v3962
    %v3964 = vpop.f32.mrf.mxu0
    %3965 = vmatprep.mubr.f32.mxu0 0.0
    %3966 = vmatmul.mubr.f32.gmra.mxu0 %v3879
    %v3967 = vpop.f32.mrf.mxu0
    %v3968 = vadd.f32 %v3873, %v3967
    %v3969 = vpop.f32.mrf.mxu0
    %3970 = vmatprep.mubr.f32.mxu0 0.0
    %3971 = vmatmul.mubr.f32.gmra.mxu0 %v3882
    %v3972 = vpop.f32.mrf.mxu0
    %v3973 = vadd.f32 %v3873, %v3972
    %v3974 = vpop.f32.mrf.mxu0
    %3975 = vmatprep.mubr.f32.mxu0 0.0
    %3976 = vmatmul.mubr.f32.gmra.mxu0 %v3885
    %v3977 = vpop.f32.mrf.mxu0
    %v3978 = vadd.f32 %v3873, %v3977
    %v3979 = vpop.f32.mrf.mxu0
    %3980 = vmatprep.mubr.f32.mxu0 0.0
    %3981 = vmatmul.mubr.f32.gmra.mxu0 %v3888
    %v3982 = vpop.f32.mrf.mxu0
    %v3983 = vadd.f32 %v3873, %v3982
    %v3984 = vpop.f32.mrf.mxu0
    %3985 = vmatprep.mubr.f32.mxu0 0.0
    %3986 = vmatmul.mubr.f32.gmra.mxu0 %v3891
    %v3987 = vpop.f32.mrf.mxu0
    %v3988 = vadd.f32 %v3873, %v3987
    %v3989 = vpop.f32.mrf.mxu0
    %3990 = vmatprep.mubr.f32.mxu0 0.0
    %3991 = vmatmul.mubr.f32.gmra.mxu0 %v3894
    %v3992 = vpop.f32.mrf.mxu0
    %v3993 = vadd.f32 %v3873, %v3992
    %v3994 = vpop.f32.mrf.mxu0
    %3995 = vdwg.mxu0
    %v3996 = vmax.f32 %v3963, 0.0
    %v3997 = vmax.f32 %v3968, 0.0
    %v3998 = vmax.f32 %v3973, 0.0
    %v3999 = vmax.f32 %v3978, 0.0
    %v4000 = vmax.f32 %v3983, 0.0
    %v4001 = vmax.f32 %v3988, 0.0
    %v4002 = vmax.f32 %v3993, 0.0
    %v4003 = vand.u32 2147483647, %v3963
    %v4004 = vand.u32 2147483647, %v3968
    %v4005 = vand.u32 2147483647, %v3973
    %v4006 = vand.u32 2147483647, %v3978
    %v4007 = vand.u32 2147483647, %v3983
    %v4008 = vand.u32 2147483647, %v3988
    %v4009 = vand.u32 2147483647, %v3993
    %v4010 = vsub.f32 0.0, %v4003
    %v4011 = vsub.f32 0.0, %v4004
    %v4012 = vsub.f32 0.0, %v4005
    %v4013 = vsub.f32 0.0, %v4006
    %v4014 = vsub.f32 0.0, %v4007
    %v4015 = vsub.f32 0.0, %v4008
    %v4016 = vsub.f32 0.0, %v4009
    %v4017 = vmul.f32 %v4010, 1.442695
    %v4018 = vpow.pop %v4017
    %v4019 = vmul.f32 %v4011, 1.442695
    %v4020 = vpow.pop %v4019
    %v4021 = vmul.f32 %v4012, 1.442695
    %v4022 = vpow.pop %v4021
    %v4023 = vmul.f32 %v4013, 1.442695
    %v4024 = vpow.pop %v4023
    %v4025 = vmul.f32 %v4014, 1.442695
    %v4026 = vpow.pop %v4025
    %v4027 = vmul.f32 %v4015, 1.442695
    %v4028 = vpow.pop %v4027
    %v4029 = vmul.f32 %v4016, 1.442695
    %v4030 = vpow.pop %v4029
    %v4031 = vadd.f32 %v4018, 1.0
    %v4032 = vlog2.pop %v4031
    %v4033 = vmul.f32 %v4032, 0.6931472
    %v4034 = vmul.f32 -0.5, %v4018
    %v4035 = vadd.f32 %v4034, 1.0
    %v4036 = vmul.f32 %v4035, %v4018
    %v4037 = vand.u32 2147483647, %v4018
    %vm4038 = vcmp.lt.f32.partialorder %v4037, 0.0004427343
    %v4039 = vsel %vm4038, %v4036, %v4033
    %v4040 = vadd.f32 %v4020, 1.0
    %v4041 = vlog2.pop %v4040
    %v4042 = vmul.f32 %v4041, 0.6931472
    %v4043 = vmul.f32 -0.5, %v4020
    %v4044 = vadd.f32 %v4043, 1.0
    %v4045 = vmul.f32 %v4044, %v4020
    %v4046 = vand.u32 2147483647, %v4020
    %vm4047 = vcmp.lt.f32.partialorder %v4046, 0.0004427343
    %v4048 = vsel %vm4047, %v4045, %v4042
    %v4049 = vadd.f32 %v4022, 1.0
    %v4050 = vlog2.pop %v4049
    %v4051 = vmul.f32 %v4050, 0.6931472
    %v4052 = vmul.f32 -0.5, %v4022
    %v4053 = vadd.f32 %v4052, 1.0
    %v4054 = vmul.f32 %v4053, %v4022
    %v4055 = vand.u32 2147483647, %v4022
    %vm4056 = vcmp.lt.f32.partialorder %v4055, 0.0004427343
    %v4057 = vsel %vm4056, %v4054, %v4051
    %v4058 = vadd.f32 %v4024, 1.0
    %v4059 = vlog2.pop %v4058
    %v4060 = vmul.f32 %v4059, 0.6931472
    %v4061 = vmul.f32 -0.5, %v4024
    %v4062 = vadd.f32 %v4061, 1.0
    %v4063 = vmul.f32 %v4062, %v4024
    %v4064 = vand.u32 2147483647, %v4024
    %vm4065 = vcmp.lt.f32.partialorder %v4064, 0.0004427343
    %v4066 = vsel %vm4065, %v4063, %v4060
    %v4067 = vadd.f32 %v4026, 1.0
    %v4068 = vlog2.pop %v4067
    %v4069 = vmul.f32 %v4068, 0.6931472
    %v4070 = vmul.f32 -0.5, %v4026
    %v4071 = vadd.f32 %v4070, 1.0
    %v4072 = vmul.f32 %v4071, %v4026
    %v4073 = vand.u32 2147483647, %v4026
    %vm4074 = vcmp.lt.f32.partialorder %v4073, 0.0004427343
    %v4075 = vsel %vm4074, %v4072, %v4069
    %v4076 = vadd.f32 %v4028, 1.0
    %v4077 = vlog2.pop %v4076
    %v4078 = vmul.f32 %v4077, 0.6931472
    %v4079 = vmul.f32 -0.5, %v4028
    %v4080 = vadd.f32 %v4079, 1.0
    %v4081 = vmul.f32 %v4080, %v4028
    %v4082 = vand.u32 2147483647, %v4028
    %vm4083 = vcmp.lt.f32.partialorder %v4082, 0.0004427343
    %v4084 = vsel %vm4083, %v4081, %v4078
    %v4085 = vadd.f32 %v4030, 1.0
    %v4086 = vlog2.pop %v4085
    %v4087 = vmul.f32 %v4086, 0.6931472
    %v4088 = vmul.f32 -0.5, %v4030
    %v4089 = vadd.f32 %v4088, 1.0
    %v4090 = vmul.f32 %v4089, %v4030
    %v4091 = vand.u32 2147483647, %v4030
    %vm4092 = vcmp.lt.f32.partialorder %v4091, 0.0004427343
    %v4093 = vsel %vm4092, %v4090, %v4087
    %v4094 = vadd.f32 %v3996, %v4039
    %v4095 = vadd.f32 %v3997, %v4048
    %v4096 = vadd.f32 %v3998, %v4057
    %v4097 = vadd.f32 %v3999, %v4066
    %v4098 = vadd.f32 %v4000, %v4075
    %v4099 = vadd.f32 %v4001, %v4084
    %v4100 = vadd.f32 %v4002, %v4093
    %v4101 = vld [vmem:[#allocation26] sm:$0xff]
    %v4102 = vld [vmem:[#allocation26 + $0x8] sm:$0xff]
    %v4103 = vld [vmem:[#allocation26 + $0x10] sm:$0xff]
    %v4104 = vld [vmem:[#allocation26 + $0x18] sm:$0xff]
    %v4106 = vsel %vm439, %v3718, 0
    %v4109 = vsel %vm439, %v3719, 0
    %v4112 = vsel %vm439, %v3720, 0
    %v4115 = vsel %vm439, %v3721, 0
    %v4118 = vsel %vm439, %v3722, 0
    %v4121 = vsel %vm439, %v3723, 0
    %v4124 = vsel %vm439, %v3724, 0
    %4126 = vmatprep.subr.mxu0 0.0
    %4127 = vmatpush1.msra.mxu0 0.0
    %4128 = vmatprep.subr.mxu0 0.0
    %4129 = vmatpush1.msra.mxu0 0.0
    %4130 = vmatprep.subr.mxu0 0.0
    %4131 = vmatpush1.msra.mxu0 0.0
    %4132 = vmatprep.subr.mxu0 0.0
    %4133 = vmatpush1.msra.mxu0 0.0
    %4134 = vmatprep.subr.mxu0 0.0
    %4135 = vmatpush1.msra.mxu0 0.0
    %4136 = vmatprep.subr.mxu0 0.0
    %4137 = vmatpush1.msra.mxu0 0.0
    %4138 = vmatprep.subr.mxu0 0.0
    %4139 = vmatpush1.msra.mxu0 0.0
    %4140 = vmatprep.subr.mxu0 0.0
    %4141 = vmatpush1.msra.mxu0 0.0
    %4142 = vmatprep.subr.mxu0 0.0
    %4143 = vmatpush1.msra.mxu0 0.0
    %4144 = vmatprep.subr.mxu0 0.0
    %4145 = vmatpush1.msra.mxu0 0.0
    %4146 = vmatprep.subr.mxu0 0.0
    %4147 = vmatpush1.msra.mxu0 0.0
    %4148 = vmatprep.subr.mxu0 0.0
    %4149 = vmatpush1.msra.mxu0 0.0
    %4150 = vmatprep.subr.mxu0 0.0
    %4151 = vmatpush1.msra.mxu0 %v4104
    %4152 = vmatprep.subr.mxu0 0.0
    %4153 = vmatpush1.msra.mxu0 %v4103
    %4154 = vmatprep.subr.mxu0 0.0
    %4155 = vmatpush1.msra.mxu0 %v4102
    %4156 = vmatprep.subr.mxu0 0.0
    %4157 = vmatpush1.msra.mxu0 %v4101
    %4158 = vmatprep.subr.mxu0 0.0
    %4159 = vmatpush2.msra.mxu0 0.0
    %4160 = vmatprep.subr.mxu0 0.0
    %4161 = vmatpush2.msra.mxu0 0.0
    %4162 = vmatprep.subr.mxu0 0.0
    %4163 = vmatpush2.msra.mxu0 0.0
    %4164 = vmatprep.subr.mxu0 0.0
    %4165 = vmatpush2.msra.mxu0 0.0
    %4166 = vmatprep.subr.mxu0 0.0
    %4167 = vmatpush2.msra.mxu0 0.0
    %4168 = vmatprep.subr.mxu0 0.0
    %4169 = vmatpush2.msra.mxu0 0.0
    %4170 = vmatprep.subr.mxu0 0.0
    %4171 = vmatpush2.msra.mxu0 0.0
    %4172 = vmatprep.subr.mxu0 0.0
    %4173 = vmatpush2.msra.mxu0 0.0
    %4174 = vmatprep.subr.mxu0 0.0
    %4175 = vmatpush2.msra.mxu0 0.0
    %4176 = vmatprep.subr.mxu0 0.0
    %4177 = vmatpush2.msra.mxu0 0.0
    %4178 = vmatprep.subr.mxu0 0.0
    %4179 = vmatpush2.msra.mxu0 0.0
    %4180 = vmatprep.subr.mxu0 0.0
    %4181 = vmatpush2.msra.mxu0 0.0
    %4182 = vmatprep.subr.mxu0 0.0
    %4183 = vmatpush2.msra.mxu0 0.0
    %4184 = vmatprep.subr.mxu0 0.0
    %4185 = vmatpush2.msra.mxu0 0.0
    %4186 = vmatprep.subr.mxu0 0.0
    %4187 = vmatpush2.msra.mxu0 0.0
    %4188 = vmatprep.subr.mxu0 0.0
    %4189 = vmatpush2.msra.mxu0 0.0
    %4190 = vmatprep.mubr.f32.mxu0 0.0
    %4191 = vmatmul.mubr.f32.gmra.mxu0 %v4106
    %v4192 = vpop.f32.mrf.mxu0
    %v4193 = vadd.f32 0.0, %v4192
    %v4194 = vpop.f32.mrf.mxu0
    %4195 = vmatprep.mubr.f32.mxu0 0.0
    %4196 = vmatmul.mubr.f32.gmra.mxu0 %v4109
    %v4197 = vpop.f32.mrf.mxu0
    %v4198 = vadd.f32 0.0, %v4197
    %v4199 = vpop.f32.mrf.mxu0
    %4200 = vmatprep.mubr.f32.mxu0 0.0
    %4201 = vmatmul.mubr.f32.gmra.mxu0 %v4112
    %v4202 = vpop.f32.mrf.mxu0
    %v4203 = vadd.f32 0.0, %v4202
    %v4204 = vpop.f32.mrf.mxu0
    %4205 = vmatprep.mubr.f32.mxu0 0.0
    %4206 = vmatmul.mubr.f32.gmra.mxu0 %v4115
    %v4207 = vpop.f32.mrf.mxu0
    %v4208 = vadd.f32 0.0, %v4207
    %v4209 = vpop.f32.mrf.mxu0
    %4210 = vmatprep.mubr.f32.mxu0 0.0
    %4211 = vmatmul.mubr.f32.gmra.mxu0 %v4118
    %v4212 = vpop.f32.mrf.mxu0
    %v4213 = vadd.f32 0.0, %v4212
    %v4214 = vpop.f32.mrf.mxu0
    %4215 = vmatprep.mubr.f32.mxu0 0.0
    %4216 = vmatmul.mubr.f32.gmra.mxu0 %v4121
    %v4217 = vpop.f32.mrf.mxu0
    %v4218 = vadd.f32 0.0, %v4217
    %v4219 = vpop.f32.mrf.mxu0
    %4220 = vmatprep.mubr.f32.mxu0 0.0
    %4221 = vmatmul.mubr.f32.gmra.mxu0 %v4124
    %v4222 = vpop.f32.mrf.mxu0
    %v4223 = vadd.f32 0.0, %v4222
    %v4224 = vpop.f32.mrf.mxu0
    %4225 = vdwg.mxu0
    %4233 = vrot.lane.b32.xlu0 %v4193, 32
    %v4234 = vpop.permute.xlu0 %4233
    %4235 = vrot.lane.b32.xlu0 %v4198, 32
    %v4236 = vpop.permute.xlu0 %4235
    %4237 = vrot.lane.b32.xlu0 %v4203, 32
    %v4238 = vpop.permute.xlu0 %4237
    %4239 = vrot.lane.b32.xlu0 %v4208, 32
    %v4240 = vpop.permute.xlu0 %4239
    %4241 = vrot.lane.b32.xlu0 %v4213, 32
    %v4242 = vpop.permute.xlu0 %4241
    %4243 = vrot.lane.b32.xlu0 %v4218, 32
    %v4244 = vpop.permute.xlu0 %4243
    %4245 = vrot.lane.b32.xlu0 %v4223, 32
    %v4246 = vpop.permute.xlu0 %4245
    %v4254 = vadd.f32 %v3824, %v4234
    %v4255 = vadd.f32 %v3829, %v4236
    %v4256 = vadd.f32 %v3834, %v4238
    %v4257 = vadd.f32 %v3839, %v4240
    %v4258 = vadd.f32 %v3844, %v4242
    %v4259 = vadd.f32 %v3849, %v4244
    %v4260 = vadd.f32 %v3854, %v4246
    %v4261 = vmax.f32 %v4254, 0.0
    %v4262 = vmax.f32 %v4255, 0.0
    %v4263 = vmax.f32 %v4256, 0.0
    %v4264 = vmax.f32 %v4257, 0.0
    %v4265 = vmax.f32 %v4258, 0.0
    %v4266 = vmax.f32 %v4259, 0.0
    %v4267 = vmax.f32 %v4260, 0.0
    %v4268 = vld [vmem:[#allocation27] sm:$0xff]
    %v4269 = vld [vmem:[#allocation27 + $0x8] sm:$0xff]
    %v4270 = vld [vmem:[#allocation27 + $0x10] sm:$0xff]
    %v4271 = vld [vmem:[#allocation27 + $0x18] sm:$0xff]
    %v4272 = vld [vmem:[%s22] sm:$0x1]
    %v4274 = vlaneseq
    %v4275 = vshrl.u32 %v4274, 7
    %v4276 = vsub.s32 0, %v4275
    %v4277 = vrot.slane %v4272, %v4276
    %4286 = vrot.lane.b32.xlu0 %v4261, 96
    %v4287 = vpop.permute.xlu0 %4286
    %4288 = vrot.lane.b32.xlu0 %v4262, 96
    %v4289 = vpop.permute.xlu0 %4288
    %4290 = vrot.lane.b32.xlu0 %v4263, 96
    %v4291 = vpop.permute.xlu0 %4290
    %4292 = vrot.lane.b32.xlu0 %v4264, 96
    %v4293 = vpop.permute.xlu0 %4292
    %4294 = vrot.lane.b32.xlu0 %v4265, 96
    %v4295 = vpop.permute.xlu0 %4294
    %4296 = vrot.lane.b32.xlu0 %v4266, 96
    %v4297 = vpop.permute.xlu0 %4296
    %4298 = vrot.lane.b32.xlu0 %v4267, 96
    %v4299 = vpop.permute.xlu0 %4298
    %v4300 = vsel %vm439, %v4287, 0
    %v4302 = vsel %vm439, %v4289, 0
    %v4304 = vsel %vm439, %v4291, 0
    %v4306 = vsel %vm439, %v4293, 0
    %v4308 = vsel %vm439, %v4295, 0
    %v4310 = vsel %vm439, %v4297, 0
    %v4312 = vsel %vm439, %v4299, 0
    %4314 = vmatprep.subr.mxu0 0.0
    %4315 = vmatpush1.msra.mxu0 0.0
    %4316 = vmatprep.subr.mxu0 0.0
    %4317 = vmatpush1.msra.mxu0 0.0
    %4318 = vmatprep.subr.mxu0 0.0
    %4319 = vmatpush1.msra.mxu0 0.0
    %4320 = vmatprep.subr.mxu0 0.0
    %4321 = vmatpush1.msra.mxu0 0.0
    %4322 = vmatprep.subr.mxu0 0.0
    %4323 = vmatpush1.msra.mxu0 0.0
    %4324 = vmatprep.subr.mxu0 0.0
    %4325 = vmatpush1.msra.mxu0 0.0
    %4326 = vmatprep.subr.mxu0 0.0
    %4327 = vmatpush1.msra.mxu0 0.0
    %4328 = vmatprep.subr.mxu0 0.0
    %4329 = vmatpush1.msra.mxu0 0.0
    %4330 = vmatprep.subr.mxu0 0.0
    %4331 = vmatpush1.msra.mxu0 0.0
    %4332 = vmatprep.subr.mxu0 0.0
    %4333 = vmatpush1.msra.mxu0 0.0
    %4334 = vmatprep.subr.mxu0 0.0
    %4335 = vmatpush1.msra.mxu0 0.0
    %4336 = vmatprep.subr.mxu0 0.0
    %4337 = vmatpush1.msra.mxu0 0.0
    %4338 = vmatprep.subr.mxu0 0.0
    %4339 = vmatpush1.msra.mxu0 %v4271
    %4340 = vmatprep.subr.mxu0 0.0
    %4341 = vmatpush1.msra.mxu0 %v4270
    %4342 = vmatprep.subr.mxu0 0.0
    %4343 = vmatpush1.msra.mxu0 %v4269
    %4344 = vmatprep.subr.mxu0 0.0
    %4345 = vmatpush1.msra.mxu0 %v4268
    %4346 = vmatprep.subr.mxu0 0.0
    %4347 = vmatpush2.msra.mxu0 0.0
    %4348 = vmatprep.subr.mxu0 0.0
    %4349 = vmatpush2.msra.mxu0 0.0
    %4350 = vmatprep.subr.mxu0 0.0
    %4351 = vmatpush2.msra.mxu0 0.0
    %4352 = vmatprep.subr.mxu0 0.0
    %4353 = vmatpush2.msra.mxu0 0.0
    %4354 = vmatprep.subr.mxu0 0.0
    %4355 = vmatpush2.msra.mxu0 0.0
    %4356 = vmatprep.subr.mxu0 0.0
    %4357 = vmatpush2.msra.mxu0 0.0
    %4358 = vmatprep.subr.mxu0 0.0
    %4359 = vmatpush2.msra.mxu0 0.0
    %4360 = vmatprep.subr.mxu0 0.0
    %4361 = vmatpush2.msra.mxu0 0.0
    %4362 = vmatprep.subr.mxu0 0.0
    %4363 = vmatpush2.msra.mxu0 0.0
    %4364 = vmatprep.subr.mxu0 0.0
    %4365 = vmatpush2.msra.mxu0 0.0
    %4366 = vmatprep.subr.mxu0 0.0
    %4367 = vmatpush2.msra.mxu0 0.0
    %4368 = vmatprep.subr.mxu0 0.0
    %4369 = vmatpush2.msra.mxu0 0.0
    %4370 = vmatprep.subr.mxu0 0.0
    %4371 = vmatpush2.msra.mxu0 0.0
    %4372 = vmatprep.subr.mxu0 0.0
    %4373 = vmatpush2.msra.mxu0 0.0
    %4374 = vmatprep.subr.mxu0 0.0
    %4375 = vmatpush2.msra.mxu0 0.0
    %4376 = vmatprep.subr.mxu0 0.0
    %4377 = vmatpush2.msra.mxu0 0.0
    %4378 = vmatprep.mubr.f32.mxu0 0.0
    %4379 = vmatmul.mubr.f32.gmra.mxu0 %v4300
    %v4380 = vpop.f32.mrf.mxu0
    %v4381 = vadd.f32 %v4277, %v4380
    %v4382 = vpop.f32.mrf.mxu0
    %4383 = vmatprep.mubr.f32.mxu0 0.0
    %4384 = vmatmul.mubr.f32.gmra.mxu0 %v4302
    %v4385 = vpop.f32.mrf.mxu0
    %v4386 = vadd.f32 %v4277, %v4385
    %v4387 = vpop.f32.mrf.mxu0
    %4388 = vmatprep.mubr.f32.mxu0 0.0
    %4389 = vmatmul.mubr.f32.gmra.mxu0 %v4304
    %v4390 = vpop.f32.mrf.mxu0
    %v4391 = vadd.f32 %v4277, %v4390
    %v4392 = vpop.f32.mrf.mxu0
    %4393 = vmatprep.mubr.f32.mxu0 0.0
    %4394 = vmatmul.mubr.f32.gmra.mxu0 %v4306
    %v4395 = vpop.f32.mrf.mxu0
    %v4396 = vadd.f32 %v4277, %v4395
    %v4397 = vpop.f32.mrf.mxu0
    %4398 = vmatprep.mubr.f32.mxu0 0.0
    %4399 = vmatmul.mubr.f32.gmra.mxu0 %v4308
    %v4400 = vpop.f32.mrf.mxu0
    %v4401 = vadd.f32 %v4277, %v4400
    %v4402 = vpop.f32.mrf.mxu0
    %4403 = vmatprep.mubr.f32.mxu0 0.0
    %4404 = vmatmul.mubr.f32.gmra.mxu0 %v4310
    %v4405 = vpop.f32.mrf.mxu0
    %v4406 = vadd.f32 %v4277, %v4405
    %v4407 = vpop.f32.mrf.mxu0
    %4408 = vmatprep.mubr.f32.mxu0 0.0
    %4409 = vmatmul.mubr.f32.gmra.mxu0 %v4312
    %v4410 = vpop.f32.mrf.mxu0
    %v4411 = vadd.f32 %v4277, %v4410
    %v4412 = vpop.f32.mrf.mxu0
    %4413 = vdwg.mxu0
    %v4414 = vmax.f32 %v4381, 0.0
    %v4415 = vmax.f32 %v4386, 0.0
    %v4416 = vmax.f32 %v4391, 0.0
    %v4417 = vmax.f32 %v4396, 0.0
    %v4418 = vmax.f32 %v4401, 0.0
    %v4419 = vmax.f32 %v4406, 0.0
    %v4420 = vmax.f32 %v4411, 0.0
    %v4421 = vld [vmem:[#allocation29] sm:$0xff]
    %v4422 = vld [vmem:[#allocation29 + $0x8] sm:$0xff]
    %v4423 = vld [vmem:[#allocation29 + $0x10] sm:$0xff]
    %v4424 = vld [vmem:[#allocation29 + $0x18] sm:$0xff]
    %v4425 = vld [vmem:[%s24] sm:$0x1]
    %v4427 = vlaneseq
    %v4428 = vshrl.u32 %v4427, 7
    %v4429 = vsub.s32 0, %v4428
    %v4430 = vrot.slane %v4425, %v4429
    %v4433 = vsel %vm439, %v4414, 0
    %v4436 = vsel %vm439, %v4415, 0
    %v4439 = vsel %vm439, %v4416, 0
    %v4442 = vsel %vm439, %v4417, 0
    %v4445 = vsel %vm439, %v4418, 0
    %v4448 = vsel %vm439, %v4419, 0
    %v4451 = vsel %vm439, %v4420, 0
    %4453 = vmatprep.subr.mxu0 0.0
    %4454 = vmatpush1.msra.mxu0 0.0
    %4455 = vmatprep.subr.mxu0 0.0
    %4456 = vmatpush1.msra.mxu0 0.0
    %4457 = vmatprep.subr.mxu0 0.0
    %4458 = vmatpush1.msra.mxu0 0.0
    %4459 = vmatprep.subr.mxu0 0.0
    %4460 = vmatpush1.msra.mxu0 0.0
    %4461 = vmatprep.subr.mxu0 0.0
    %4462 = vmatpush1.msra.mxu0 0.0
    %4463 = vmatprep.subr.mxu0 0.0
    %4464 = vmatpush1.msra.mxu0 0.0
    %4465 = vmatprep.subr.mxu0 0.0
    %4466 = vmatpush1.msra.mxu0 0.0
    %4467 = vmatprep.subr.mxu0 0.0
    %4468 = vmatpush1.msra.mxu0 0.0
    %4469 = vmatprep.subr.mxu0 0.0
    %4470 = vmatpush1.msra.mxu0 0.0
    %4471 = vmatprep.subr.mxu0 0.0
    %4472 = vmatpush1.msra.mxu0 0.0
    %4473 = vmatprep.subr.mxu0 0.0
    %4474 = vmatpush1.msra.mxu0 0.0
    %4475 = vmatprep.subr.mxu0 0.0
    %4476 = vmatpush1.msra.mxu0 0.0
    %4477 = vmatprep.subr.mxu0 0.0
    %4478 = vmatpush1.msra.mxu0 %v4424
    %4479 = vmatprep.subr.mxu0 0.0
    %4480 = vmatpush1.msra.mxu0 %v4423
    %4481 = vmatprep.subr.mxu0 0.0
    %4482 = vmatpush1.msra.mxu0 %v4422
    %4483 = vmatprep.subr.mxu0 0.0
    %4484 = vmatpush1.msra.mxu0 %v4421
    %4485 = vmatprep.subr.mxu0 0.0
    %4486 = vmatpush2.msra.mxu0 0.0
    %4487 = vmatprep.subr.mxu0 0.0
    %4488 = vmatpush2.msra.mxu0 0.0
    %4489 = vmatprep.subr.mxu0 0.0
    %4490 = vmatpush2.msra.mxu0 0.0
    %4491 = vmatprep.subr.mxu0 0.0
    %4492 = vmatpush2.msra.mxu0 0.0
    %4493 = vmatprep.subr.mxu0 0.0
    %4494 = vmatpush2.msra.mxu0 0.0
    %4495 = vmatprep.subr.mxu0 0.0
    %4496 = vmatpush2.msra.mxu0 0.0
    %4497 = vmatprep.subr.mxu0 0.0
    %4498 = vmatpush2.msra.mxu0 0.0
    %4499 = vmatprep.subr.mxu0 0.0
    %4500 = vmatpush2.msra.mxu0 0.0
    %4501 = vmatprep.subr.mxu0 0.0
    %4502 = vmatpush2.msra.mxu0 0.0
    %4503 = vmatprep.subr.mxu0 0.0
    %4504 = vmatpush2.msra.mxu0 0.0
    %4505 = vmatprep.subr.mxu0 0.0
    %4506 = vmatpush2.msra.mxu0 0.0
    %4507 = vmatprep.subr.mxu0 0.0
    %4508 = vmatpush2.msra.mxu0 0.0
    %4509 = vmatprep.subr.mxu0 0.0
    %4510 = vmatpush2.msra.mxu0 0.0
    %4511 = vmatprep.subr.mxu0 0.0
    %4512 = vmatpush2.msra.mxu0 0.0
    %4513 = vmatprep.subr.mxu0 0.0
    %4514 = vmatpush2.msra.mxu0 0.0
    %4515 = vmatprep.subr.mxu0 0.0
    %4516 = vmatpush2.msra.mxu0 0.0
    %4517 = vmatprep.mubr.f32.mxu0 0.0
    %4518 = vmatmul.mubr.f32.gmra.mxu0 %v4433
    %v4519 = vpop.f32.mrf.mxu0
    %v4520 = vadd.f32 %v4430, %v4519
    %v4521 = vpop.f32.mrf.mxu0
    %4522 = vmatprep.mubr.f32.mxu0 0.0
    %4523 = vmatmul.mubr.f32.gmra.mxu0 %v4436
    %v4524 = vpop.f32.mrf.mxu0
    %v4525 = vadd.f32 %v4430, %v4524
    %v4526 = vpop.f32.mrf.mxu0
    %4527 = vmatprep.mubr.f32.mxu0 0.0
    %4528 = vmatmul.mubr.f32.gmra.mxu0 %v4439
    %v4529 = vpop.f32.mrf.mxu0
    %v4530 = vadd.f32 %v4430, %v4529
    %v4531 = vpop.f32.mrf.mxu0
    %4532 = vmatprep.mubr.f32.mxu0 0.0
    %4533 = vmatmul.mubr.f32.gmra.mxu0 %v4442
    %v4534 = vpop.f32.mrf.mxu0
    %v4535 = vadd.f32 %v4430, %v4534
    %v4536 = vpop.f32.mrf.mxu0
    %4537 = vmatprep.mubr.f32.mxu0 0.0
    %4538 = vmatmul.mubr.f32.gmra.mxu0 %v4445
    %v4539 = vpop.f32.mrf.mxu0
    %v4540 = vadd.f32 %v4430, %v4539
    %v4541 = vpop.f32.mrf.mxu0
    %4542 = vmatprep.mubr.f32.mxu0 0.0
    %4543 = vmatmul.mubr.f32.gmra.mxu0 %v4448
    %v4544 = vpop.f32.mrf.mxu0
    %v4545 = vadd.f32 %v4430, %v4544
    %v4546 = vpop.f32.mrf.mxu0
    %4547 = vmatprep.mubr.f32.mxu0 0.0
    %4548 = vmatmul.mubr.f32.gmra.mxu0 %v4451
    %v4549 = vpop.f32.mrf.mxu0
    %v4550 = vadd.f32 %v4430, %v4549
    %v4551 = vpop.f32.mrf.mxu0
    %4552 = vdwg.mxu0
    %v4553 = vmul.f32 %v4520, 0.5
    %v4554 = vmul.f32 %v4525, 0.5
    %v4555 = vmul.f32 %v4530, 0.5
    %v4556 = vmul.f32 %v4535, 0.5
    %v4557 = vmul.f32 %v4540, 0.5
    %v4558 = vmul.f32 %v4545, 0.5
    %v4559 = vmul.f32 %v4550, 0.5
    %v4560 = vtanh.pop %v4553
    %v4561 = vtanh.pop %v4554
    %v4562 = vtanh.pop %v4555
    %v4563 = vtanh.pop %v4556
    %v4564 = vtanh.pop %v4557
    %v4565 = vtanh.pop %v4558
    %v4566 = vtanh.pop %v4559
    %v4567 = vadd.f32 %v4560, 1.0
    %v4568 = vadd.f32 %v4561, 1.0
    %v4569 = vadd.f32 %v4562, 1.0
    %v4570 = vadd.f32 %v4563, 1.0
    %v4571 = vadd.f32 %v4564, 1.0
    %v4572 = vadd.f32 %v4565, 1.0
    %v4573 = vadd.f32 %v4566, 1.0
    %v4574 = vmul.f32 %v4567, 0.5
    %v4575 = vmul.f32 %v4568, 0.5
    %v4576 = vmul.f32 %v4569, 0.5
    %v4577 = vmul.f32 %v4570, 0.5
    %v4578 = vmul.f32 %v4571, 0.5
    %v4579 = vmul.f32 %v4572, 0.5
    %v4580 = vmul.f32 %v4573, 0.5
    %v4581 = vmax.f32 %v4520, 0.0
    %v4582 = vmax.f32 %v4525, 0.0
    %v4583 = vmax.f32 %v4530, 0.0
    %v4584 = vmax.f32 %v4535, 0.0
    %v4585 = vmax.f32 %v4540, 0.0
    %v4586 = vmax.f32 %v4545, 0.0
    %v4587 = vmax.f32 %v4550, 0.0
    %v4588 = vand.u32 2147483647, %v4520
    %v4589 = vand.u32 2147483647, %v4525
    %v4590 = vand.u32 2147483647, %v4530
    %v4591 = vand.u32 2147483647, %v4535
    %v4592 = vand.u32 2147483647, %v4540
    %v4593 = vand.u32 2147483647, %v4545
    %v4594 = vand.u32 2147483647, %v4550
    %v4595 = vsub.f32 0.0, %v4588
    %v4596 = vsub.f32 0.0, %v4589
    %v4597 = vsub.f32 0.0, %v4590
    %v4598 = vsub.f32 0.0, %v4591
    %v4599 = vsub.f32 0.0, %v4592
    %v4600 = vsub.f32 0.0, %v4593
    %v4601 = vsub.f32 0.0, %v4594
    %v4602 = vmul.f32 %v4595, 1.442695
    %v4603 = vpow.pop %v4602
    %v4604 = vmul.f32 %v4596, 1.442695
    %v4605 = vpow.pop %v4604
    %v4606 = vmul.f32 %v4597, 1.442695
    %v4607 = vpow.pop %v4606
    %v4608 = vmul.f32 %v4598, 1.442695
    %v4609 = vpow.pop %v4608
    %v4610 = vmul.f32 %v4599, 1.442695
    %v4611 = vpow.pop %v4610
    %v4612 = vmul.f32 %v4600, 1.442695
    %v4613 = vpow.pop %v4612
    %v4614 = vmul.f32 %v4601, 1.442695
    %v4615 = vpow.pop %v4614
    %v4616 = vadd.f32 %v4603, 1.0
    %v4617 = vlog2.pop %v4616
    %v4618 = vmul.f32 %v4617, 0.6931472
    %v4619 = vmul.f32 -0.5, %v4603
    %v4620 = vadd.f32 %v4619, 1.0
    %v4621 = vmul.f32 %v4620, %v4603
    %v4622 = vand.u32 2147483647, %v4603
    %vm4623 = vcmp.lt.f32.partialorder %v4622, 0.0004427343
    %v4624 = vsel %vm4623, %v4621, %v4618
    %v4625 = vadd.f32 %v4605, 1.0
    %v4626 = vlog2.pop %v4625
    %v4627 = vmul.f32 %v4626, 0.6931472
    %v4628 = vmul.f32 -0.5, %v4605
    %v4629 = vadd.f32 %v4628, 1.0
    %v4630 = vmul.f32 %v4629, %v4605
    %v4631 = vand.u32 2147483647, %v4605
    %vm4632 = vcmp.lt.f32.partialorder %v4631, 0.0004427343
    %v4633 = vsel %vm4632, %v4630, %v4627
    %v4634 = vadd.f32 %v4607, 1.0
    %v4635 = vlog2.pop %v4634
    %v4636 = vmul.f32 %v4635, 0.6931472
    %v4637 = vmul.f32 -0.5, %v4607
    %v4638 = vadd.f32 %v4637, 1.0
    %v4639 = vmul.f32 %v4638, %v4607
    %v4640 = vand.u32 2147483647, %v4607
    %vm4641 = vcmp.lt.f32.partialorder %v4640, 0.0004427343
    %v4642 = vsel %vm4641, %v4639, %v4636
    %v4643 = vadd.f32 %v4609, 1.0
    %v4644 = vlog2.pop %v4643
    %v4645 = vmul.f32 %v4644, 0.6931472
    %v4646 = vmul.f32 -0.5, %v4609
    %v4647 = vadd.f32 %v4646, 1.0
    %v4648 = vmul.f32 %v4647, %v4609
    %v4649 = vand.u32 2147483647, %v4609
    %vm4650 = vcmp.lt.f32.partialorder %v4649, 0.0004427343
    %v4651 = vsel %vm4650, %v4648, %v4645
    %v4652 = vadd.f32 %v4611, 1.0
    %v4653 = vlog2.pop %v4652
    %v4654 = vmul.f32 %v4653, 0.6931472
    %v4655 = vmul.f32 -0.5, %v4611
    %v4656 = vadd.f32 %v4655, 1.0
    %v4657 = vmul.f32 %v4656, %v4611
    %v4658 = vand.u32 2147483647, %v4611
    %vm4659 = vcmp.lt.f32.partialorder %v4658, 0.0004427343
    %v4660 = vsel %vm4659, %v4657, %v4654
    %v4661 = vadd.f32 %v4613, 1.0
    %v4662 = vlog2.pop %v4661
    %v4663 = vmul.f32 %v4662, 0.6931472
    %v4664 = vmul.f32 -0.5, %v4613
    %v4665 = vadd.f32 %v4664, 1.0
    %v4666 = vmul.f32 %v4665, %v4613
    %v4667 = vand.u32 2147483647, %v4613
    %vm4668 = vcmp.lt.f32.partialorder %v4667, 0.0004427343
    %v4669 = vsel %vm4668, %v4666, %v4663
    %v4670 = vadd.f32 %v4615, 1.0
    %v4671 = vlog2.pop %v4670
    %v4672 = vmul.f32 %v4671, 0.6931472
    %v4673 = vmul.f32 -0.5, %v4615
    %v4674 = vadd.f32 %v4673, 1.0
    %v4675 = vmul.f32 %v4674, %v4615
    %v4676 = vand.u32 2147483647, %v4615
    %vm4677 = vcmp.lt.f32.partialorder %v4676, 0.0004427343
    %v4678 = vsel %vm4677, %v4675, %v4672
    %v4679 = vadd.f32 %v4581, %v4624
    %v4680 = vadd.f32 %v4582, %v4633
    %v4681 = vadd.f32 %v4583, %v4642
    %v4682 = vadd.f32 %v4584, %v4651
    %v4683 = vadd.f32 %v4585, %v4660
    %v4684 = vadd.f32 %v4586, %v4669
    %v4685 = vadd.f32 %v4587, %v4678
    %v4686 = vsel %vm784, %v4574, %v4679
    %v4687 = vsel %vm784, %v4575, %v4680
    %v4688 = vsel %vm784, %v4576, %v4681
    %v4689 = vsel %vm784, %v4577, %v4682
    %v4690 = vsel %vm784, %v4578, %v4683
    %v4691 = vsel %vm784, %v4579, %v4684
    %v4692 = vsel %vm784, %v4580, %v4685
    %4693 = vst.msk [vmem:[%s26] sm:$0xff] %vm439, %v4686
    %4694 = vst.msk [vmem:[%s26 + $0x8] sm:$0xff] %vm439, %v4687
    %4695 = vst.msk [vmem:[%s26 + $0x10] sm:$0xff] %vm439, %v4688
    %4696 = vst.msk [vmem:[%s26 + $0x18] sm:$0xff] %vm439, %v4689
    %4697 = vst.msk [vmem:[%s26 + $0x20] sm:$0xff] %vm439, %v4690
    %4698 = vst.msk [vmem:[%s26 + $0x28] sm:$0xff] %vm439, %v4691
    %4699 = vst.msk [vmem:[%s26 + $0x30] sm:$0xff] %vm439, %v4692
    %v4700 = vld [vmem:[%s25] sm:$0xff]
    %v4701 = vld [vmem:[%s25 + $0x8] sm:$0xff]
    %v4702 = vld [vmem:[%s25 + $0x10] sm:$0xff]
    %v4703 = vld [vmem:[%s25 + $0x18] sm:$0xff]
    %v4704 = vld [vmem:[%s25 + $0x20] sm:$0xff]
    %v4705 = vld [vmem:[%s25 + $0x28] sm:$0xff]
    %v4706 = vld [vmem:[%s25 + $0x30] sm:$0xff]
    %v4707 = vrcp.pop %v4700
    %v4708 = vmul.f32 %v4094, %v4707
    %v4709 = vrcp.pop %v4701
    %v4710 = vmul.f32 %v4095, %v4709
    %v4711 = vrcp.pop %v4702
    %v4712 = vmul.f32 %v4096, %v4711
    %v4713 = vrcp.pop %v4703
    %v4714 = vmul.f32 %v4097, %v4713
    %v4715 = vrcp.pop %v4704
    %v4716 = vmul.f32 %v4098, %v4715
    %v4717 = vrcp.pop %v4705
    %v4718 = vmul.f32 %v4099, %v4717
    %v4719 = vrcp.pop %v4706
    %v4720 = vmul.f32 %v4100, %v4719
    %v4721 = vlog2.pop %v4708
    %v4722 = vmul.f32 %v4721, 0.6931472
    %v4723 = vlog2.pop %v4710
    %v4724 = vmul.f32 %v4723, 0.6931472
    %v4725 = vlog2.pop %v4712
    %v4726 = vmul.f32 %v4725, 0.6931472
    %v4727 = vlog2.pop %v4714
    %v4728 = vmul.f32 %v4727, 0.6931472
    %v4729 = vlog2.pop %v4716
    %v4730 = vmul.f32 %v4729, 0.6931472
    %v4731 = vlog2.pop %v4718
    %v4732 = vmul.f32 %v4731, 0.6931472
    %v4733 = vlog2.pop %v4720
    %v4734 = vmul.f32 %v4733, 0.6931472
    %v4735 = vmul.f32 %v4722, 2.0
    %v4736 = vmul.f32 %v4724, 2.0
    %v4737 = vmul.f32 %v4726, 2.0
    %v4738 = vmul.f32 %v4728, 2.0
    %v4739 = vmul.f32 %v4730, 2.0
    %v4740 = vmul.f32 %v4732, 2.0
    %v4741 = vmul.f32 %v4734, 2.0
    %v4742 = vmul.f32 %v4700, %v4700
    %v4743 = vmul.f32 %v4701, %v4701
    %v4744 = vmul.f32 %v4702, %v4702
    %v4745 = vmul.f32 %v4703, %v4703
    %v4746 = vmul.f32 %v4704, %v4704
    %v4747 = vmul.f32 %v4705, %v4705
    %v4748 = vmul.f32 %v4706, %v4706
    %v4749 = vsub.f32 %v4700, %v3963
    %v4750 = vsub.f32 %v4701, %v3968
    %v4751 = vsub.f32 %v4702, %v3973
    %v4752 = vsub.f32 %v4703, %v3978
    %v4753 = vsub.f32 %v4704, %v3983
    %v4754 = vsub.f32 %v4705, %v3988
    %v4755 = vsub.f32 %v4706, %v3993
    %v4756 = vmul.f32 %v4749, %v4749
    %v4757 = vmul.f32 %v4750, %v4750
    %v4758 = vmul.f32 %v4751, %v4751
    %v4759 = vmul.f32 %v4752, %v4752
    %v4760 = vmul.f32 %v4753, %v4753
    %v4761 = vmul.f32 %v4754, %v4754
    %v4762 = vmul.f32 %v4755, %v4755
    %4770 = vrot.lane.b32.xlu0 %v4756, 16
    %v4771 = vpop.permute.xlu0 %4770
    %4772 = vrot.lane.b32.xlu0 %v4757, 16
    %v4773 = vpop.permute.xlu0 %4772
    %4774 = vrot.lane.b32.xlu0 %v4758, 16
    %v4775 = vpop.permute.xlu0 %4774
    %4776 = vrot.lane.b32.xlu0 %v4759, 16
    %v4777 = vpop.permute.xlu0 %4776
    %4778 = vrot.lane.b32.xlu0 %v4760, 16
    %v4779 = vpop.permute.xlu0 %4778
    %4780 = vrot.lane.b32.xlu0 %v4761, 16
    %v4781 = vpop.permute.xlu0 %4780
    %4782 = vrot.lane.b32.xlu0 %v4762, 16
    %v4783 = vpop.permute.xlu0 %4782
    %v4791 = vadd.f32 %v4742, %v4771
    %v4792 = vadd.f32 %v4743, %v4773
    %v4793 = vadd.f32 %v4744, %v4775
    %v4794 = vadd.f32 %v4745, %v4777
    %v4795 = vadd.f32 %v4746, %v4779
    %v4796 = vadd.f32 %v4747, %v4781
    %v4797 = vadd.f32 %v4748, %v4783
    %v4798 = vmul.f32 %v4094, %v4094
    %v4799 = vmul.f32 %v4095, %v4095
    %v4800 = vmul.f32 %v4096, %v4096
    %v4801 = vmul.f32 %v4097, %v4097
    %v4802 = vmul.f32 %v4098, %v4098
    %v4803 = vmul.f32 %v4099, %v4099
    %v4804 = vmul.f32 %v4100, %v4100
    %v4805 = vrcp.pop %v4798
    %v4806 = vmul.f32 %v4791, %v4805
    %v4807 = vrcp.pop %v4799
    %v4808 = vmul.f32 %v4792, %v4807
    %v4809 = vrcp.pop %v4800
    %v4810 = vmul.f32 %v4793, %v4809
    %v4811 = vrcp.pop %v4801
    %v4812 = vmul.f32 %v4794, %v4811
    %v4813 = vrcp.pop %v4802
    %v4814 = vmul.f32 %v4795, %v4813
    %v4815 = vrcp.pop %v4803
    %v4816 = vmul.f32 %v4796, %v4815
    %v4817 = vrcp.pop %v4804
    %v4818 = vmul.f32 %v4797, %v4817
    %v4819 = vadd.f32 %v4735, %v4806
    %v4820 = vadd.f32 %v4736, %v4808
    %v4821 = vadd.f32 %v4737, %v4810
    %v4822 = vadd.f32 %v4738, %v4812
    %v4823 = vadd.f32 %v4739, %v4814
    %v4824 = vadd.f32 %v4740, %v4816
    %v4825 = vadd.f32 %v4741, %v4818
    %v4826 = vsub.f32 %v4819, 1.0
    %v4827 = vsub.f32 %v4820, 1.0
    %v4828 = vsub.f32 %v4821, 1.0
    %v4829 = vsub.f32 %v4822, 1.0
    %v4830 = vsub.f32 %v4823, 1.0
    %v4831 = vsub.f32 %v4824, 1.0
    %v4832 = vsub.f32 %v4825, 1.0
    %4840 = vrot.lane.b32.xlu0 %v4826, 112
    %v4841 = vpop.permute.xlu0 %4840
    %4842 = vrot.lane.b32.xlu0 %v4827, 112
    %v4843 = vpop.permute.xlu0 %4842
    %4844 = vrot.lane.b32.xlu0 %v4828, 112
    %v4845 = vpop.permute.xlu0 %4844
    %4846 = vrot.lane.b32.xlu0 %v4829, 112
    %v4847 = vpop.permute.xlu0 %4846
    %4848 = vrot.lane.b32.xlu0 %v4830, 112
    %v4849 = vpop.permute.xlu0 %4848
    %4850 = vrot.lane.b32.xlu0 %v4831, 112
    %v4851 = vpop.permute.xlu0 %4850
    %4852 = vrot.lane.b32.xlu0 %v4832, 112
    %v4853 = vpop.permute.xlu0 %4852
    %v4861 = vsel %vm299, %v4841, 0.0
    %v4862 = vsel %vm299, %v4843, 0.0
    %v4863 = vadd.f32 %v4861, %v4862
    %v4864 = vsel %vm299, %v4845, 0.0
    %v4865 = vadd.f32 %v4863, %v4864
    %v4866 = vsel %vm299, %v4847, 0.0
    %v4867 = vadd.f32 %v4865, %v4866
    %v4868 = vsel %vm299, %v4849, 0.0
    %v4869 = vadd.f32 %v4867, %v4868
    %v4870 = vsel %vm299, %v4851, 0.0
    %v4871 = vadd.f32 %v4869, %v4870
    %v4872 = vsel %vm299, %v4853, 0.0
    %v4873 = vadd.f32 %v4871, %v4872
    %4874 = vadd.xlane.f32.xlu0 %v4873
    %v4875 = vpop.xlane.xlu0 %4874
    %v4876 = vrot.slane %v4875, 4
    %v4877 = vadd.f32 %v4875, %v4876
    %v4878 = vrot.slane %v4877, 2
    %v4879 = vadd.f32 %v4877, %v4878
    %v4880 = vrot.slane %v4879, 1
    %v4881 = vadd.f32 %v4879, %v4880
    %s4882 = vtos %v4881
    %v4883 = vstv %s4882
    %v4884 = vmul.f32 %v4883, 0.5
    %vm4885 = vcmask 0
    %4886 = vst.msk [vmem:[#allocation30] sm:$0x1] %vm4885, %v4884
    %v4887 = vld [vmem:[%s0] sm:$0xff]
    %v4888 = vld [vmem:[%s0 + $0x8] sm:$0xff]
    %v4889 = vld [vmem:[%s0 + $0x10] sm:$0xff]
    %v4890 = vld [vmem:[%s0 + $0x18] sm:$0xff]
    %v4891 = vld [vmem:[%s0 + $0x20] sm:$0xff]
    %v4892 = vld [vmem:[%s0 + $0x28] sm:$0xff]
    %v4893 = vld [vmem:[%s0 + $0x30] sm:$0xff]
    %v4894 = vsub.f32 %v4887, %v4574
    %v4895 = vsub.f32 %v4888, %v4575
    %v4896 = vsub.f32 %v4889, %v4576
    %v4897 = vsub.f32 %v4890, %v4577
    %v4898 = vsub.f32 %v4891, %v4578
    %v4899 = vsub.f32 %v4892, %v4579
    %v4900 = vsub.f32 %v4893, %v4580
    %v4901 = vmul.f32 %v4894, %v4894
    %v4902 = vmul.f32 %v4895, %v4895
    %v4903 = vmul.f32 %v4896, %v4896
    %v4904 = vmul.f32 %v4897, %v4897
    %v4905 = vmul.f32 %v4898, %v4898
    %v4906 = vmul.f32 %v4899, %v4899
    %v4907 = vmul.f32 %v4900, %v4900
    %v4908 = vsel %vm299, %v4901, 0.0
    %v4909 = vsel %vm299, %v4902, 0.0
    %v4910 = vadd.f32 %v4908, %v4909
    %v4911 = vsel %vm299, %v4903, 0.0
    %v4912 = vadd.f32 %v4910, %v4911
    %v4913 = vsel %vm299, %v4904, 0.0
    %v4914 = vadd.f32 %v4912, %v4913
    %v4915 = vsel %vm299, %v4905, 0.0
    %v4916 = vadd.f32 %v4914, %v4915
    %v4917 = vsel %vm299, %v4906, 0.0
    %v4918 = vadd.f32 %v4916, %v4917
    %v4919 = vsel %vm299, %v4907, 0.0
    %v4920 = vadd.f32 %v4918, %v4919
    %4921 = vadd.xlane.f32.xlu0 %v4920
    %v4922 = vpop.xlane.xlu0 %4921
    %v4923 = vrot.slane %v4922, 4
    %v4924 = vadd.f32 %v4922, %v4923
    %v4925 = vrot.slane %v4924, 2
    %v4926 = vadd.f32 %v4924, %v4925
    %v4927 = vrot.slane %v4926, 1
    %v4928 = vadd.f32 %v4926, %v4927
    %s4929 = vtos %v4928
    %v4930 = vstv %s4929
    %4931 = vst.msk [vmem:[#allocation31] sm:$0x1] %vm4885, %v4930
    // Predicated region
    $region162: #{tpu_custom_call.1} parent=1 // pred_check
      _
    $region163: #{tpu_custom_call.1} parent=1 // pred_check_branch
      %4933 = sbr.rel (0) target = $region165
    $region164: #{tpu_custom_call.1} parent=1 // pred_region
      _
    $region165: #{tpu_custom_call.1} parent=1 // pred_fallthru
      _
    // Predicated region
    $region166: #{tpu_custom_call.1} parent=1 // pred_check
      _
    $region167: #{tpu_custom_call.1} parent=1 // pred_check_branch
      %4935 = sbr.rel (0) target = $region169
    $region168: #{tpu_custom_call.1} parent=1 // pred_region
      _
    $region169: #{tpu_custom_call.1} parent=1 // pred_fallthru
      _
    // Predicated region
    $region170: #{tpu_custom_call.1} parent=1 // pred_check
      _
    $region171: #{tpu_custom_call.1} parent=1 // pred_check_branch
      %4937 = sbr.rel (0) target = $region173
    $region172: #{tpu_custom_call.1} parent=1 // pred_region
      %s4939 = ssub.s32 16, 16
      %4940 = vsyncadd [#allocation8], %s4939
      %s4942 = sshll.u32 [#allocation30], 4
      %s4943 = int_to_ptr.vmem [resolvable:$true] %s4942
      %4945 = dma.vmem_to_hbm [thread:$0]  %s4943, 16, %s27, [#allocation8]
    $region173: #{tpu_custom_call.1} parent=1 // pred_fallthru
      _
    // Predicated region
    $region174: #{tpu_custom_call.1} parent=1 // pred_check
      _
    $region175: #{tpu_custom_call.1} parent=1 // pred_check_branch
      %4947 = sbr.rel (0) target = $region177
    $region176: #{tpu_custom_call.1} parent=1 // pred_region
      %s4949 = ssub.s32 16, 16
      %4950 = vsyncadd [#allocation32], %s4949
      %s4952 = sshll.u32 [#allocation31], 4
      %s4953 = int_to_ptr.vmem [resolvable:$true] %s4952
      %4955 = dma.vmem_to_hbm [thread:$0]  %s4953, 16, %s28, [#allocation32]
    $region177: #{tpu_custom_call.1} parent=1 // pred_fallthru
      _
    // Predicated region
    $region178: #{tpu_custom_call.1} parent=1 // pred_check
      _
    $region179: #{tpu_custom_call.1} parent=1 // pred_check_branch
      %4957 = sbr.rel (0) target = $region181
    $region180: #{tpu_custom_call.1} parent=1 // pred_region
      _
    $region181: #{tpu_custom_call.1} parent=1 // pred_fallthru
      _
    // Predicated region
    $region182: #{tpu_custom_call.1} parent=1 // pred_check
      _
    $region183: #{tpu_custom_call.1} parent=1 // pred_check_branch
      %4959 = sbr.rel (0) target = $region185
    $region184: #{tpu_custom_call.1} parent=1 // pred_region
      _
    $region185: #{tpu_custom_call.1} parent=1 // pred_fallthru
      _
    // Predicated region
    $region186: #{tpu_custom_call.1} parent=1 // pred_check
      _
    $region187: #{tpu_custom_call.1} parent=1 // pred_check_branch
      %4961 = sbr.rel (0) target = $region189
    $region188: #{tpu_custom_call.1} parent=1 // pred_region
      %4962 = dma.done [#allocation8], 16
    $region189: #{tpu_custom_call.1} parent=1 // pred_fallthru
      _
    // Predicated region
    $region190: #{tpu_custom_call.1} parent=1 // pred_check
      _
    $region191: #{tpu_custom_call.1} parent=1 // pred_check_branch
      %4964 = sbr.rel (0) target = $region193
    $region192: #{tpu_custom_call.1} parent=1 // pred_region
      %4965 = dma.done [#allocation32], 16
    $region193: #{tpu_custom_call.1} parent=1 // pred_fallthru
      _
    %4966 = vsyncpa [#allocation7], 1
    %4967 = vsyncpa [#allocation10], 1
    %4968 = vsyncpa [#allocation13], 1
    %4969 = vsyncpa [#allocation16], 1
    %4970 = vsyncpa [#allocation19], 1
    %4971 = vsyncpa [#allocation22], 1
    %4972 = vsyncpa [#allocation25], 1
    %4973 = vsyncpa [#allocation28], 1
    %4974 = vsyncpa [#allocation8], 1
    %4975 = vsyncpa [#allocation32], 1

</llo_original>
